<compile_context>
chip_gen: v7x
topology: tpu7x:2x2x1
jax: 0.10.0
libtpu: 0.0.40
codegen_flags: <defaults>
</compile_context>

<pallas_src>
import jax
import jax.numpy as jnp
from jax.experimental import pallas as pl
from jax.experimental.pallas import tpu as pltpu

KSIZE = 7
PAD = (KSIZE - 1) // 2  # 3


def _round_up(a, b):
    return (a + b - 1) // b * b


def _sublane_tile(dtype):
    it = jnp.dtype(dtype).itemsize
    return 8 * max(1, 4 // it)          # 8 for f32, 16 for bf16


def _padded_tile_bytes(rows, cols, dtype):
    it = jnp.dtype(dtype).itemsize
    return (_round_up(max(rows, 1), _sublane_tile(dtype))
            * _round_up(max(cols, 1), 128) * it)


def _largest_divisor_leq(n, cap):
    cap = max(1, min(cap, n))
    for d in range(cap, 0, -1):
        if n % d == 0:
            return d
    return 1


def _tree_sum(vals):
    vals = list(vals)
    while len(vals) > 1:
        nxt = [vals[i] + vals[i + 1] for i in range(0, len(vals) - 1, 2)]
        if len(vals) % 2:
            nxt.append(vals[-1])
        vals = nxt
    return vals[0]


def _make_kernel(C, H, W, ch_chunk):
    HW = H * W
    Hc = H + 2 * PAD          # conv read-window height
    Wc = W + 2 * PAD          # conv read-window width
    inv_c = 1.0 / C

    def kernel(w_ref, x_ref, o_ref, sum_ref, max_ref, pad_ref):
        # w_ref  : (98,) f32 SMEM (flattened conv weight)
        # x_ref  : (1, block_c, HW) VMEM input block (lane-dense)
        # o_ref  : (1, 1, HW) VMEM output block (lane-dense)
        # sum_ref/max_ref : (1, HW) f32 running channel sum / max
        # pad_ref: (2, HP, WP) f32 zero-halo conv planes
        c_idx = pl.program_id(1)
        n_c = pl.num_programs(1)
        bc = x_ref.shape[1]

        @pl.when(c_idx == 0)
        def _init():
            sum_ref[...] = jnp.zeros(sum_ref.shape, jnp.float32)
            max_ref[...] = jnp.full(max_ref.shape, -jnp.inf, jnp.float32)

        # ---- fused channel mean/max partial reduction (lane-dense) --------
        # Small static chunks keep vreg live ranges bounded regardless of
        # block_c; jnp reductions over the sublane axis stay VALU-dense.
        s = sum_ref[...]
        m = max_ref[...]
        for c0 in range(0, bc, ch_chunk):
            cw = min(ch_chunk, bc - c0)
            chunk = x_ref[0, c0:c0 + cw, :].astype(jnp.float32)   # (cw, HW)
            s = s + jnp.sum(chunk, axis=0, keepdims=True)
            m = jnp.maximum(m, jnp.max(chunk, axis=0, keepdims=True))
        sum_ref[...] = s
        max_ref[...] = m

        # ---- finalize on the last channel step: 7x7 conv + sigmoid --------
        @pl.when(c_idx == n_c - 1)
        def _finalize():
            # Zero only the PAD-wide halo of the conv read window; the
            # interior is fully overwritten below and rows/cols beyond
            # (Hc, Wc) are never read by the conv.
            for ch in range(2):
                pad_ref[ch, 0:PAD, 0:Wc] = jnp.zeros((PAD, Wc), jnp.float32)
                pad_ref[ch, H + PAD:Hc, 0:Wc] = jnp.zeros((PAD, Wc), jnp.float32)
                pad_ref[ch, PAD:H + PAD, 0:PAD] = jnp.zeros((H, PAD), jnp.float32)
                pad_ref[ch, PAD:H + PAD, W + PAD:Wc] = jnp.zeros((H, PAD), jnp.float32)

            mean = sum_ref[...] * inv_c          # (1, HW)
            mx = max_ref[...]                    # (1, HW)

            # Row-wise scatter of the two reduced planes from the flat
            # lane-dense layout into the padded (H, W) image scratch.
            for r in range(H):
                pad_ref[0, PAD + r:PAD + r + 1, PAD:PAD + W] = \
                    mean[:, r * W:(r + 1) * W]
                pad_ref[1, PAD + r:PAD + r + 1, PAD:PAD + W] = \
                    mx[:, r * W:(r + 1) * W]

            # Hoisted scalar weight reads (once per finalize step).
            wts = [w_ref[i] for i in range(2 * KSIZE * KSIZE)]

            # 7x7 'same' cross-correlation (PyTorch conv2d).  One lane-offset
            # band per (channel, kw) pair (14 loads); the 7 kh taps are
            # sublane-only slices of the band.  7 independent accumulators
            # (one per kh) break the 98-add dependency chain.
            accs = [jnp.zeros((H, W), jnp.float32) for _ in range(KSIZE)]
            for ch in range(2):
                for kw in range(KSIZE):
                    band = pad_ref[ch, :, kw:kw + W]                 # (HP, W)
                    for kh in range(KSIZE):
                        wgt = wts[ch * KSIZE * KSIZE + kh * KSIZE + kw]
                        accs[kh] = accs[kh] + wgt * band[kh:kh + H, :]
            sig = jax.nn.sigmoid(_tree_sum(accs))                    # (H, W)

            # Flatten back to the lane-dense output layout row by row.
            for r in range(H):
                o_ref[0, :, r * W:(r + 1) * W] = \
                    sig[r:r + 1, :].astype(o_ref.dtype)

    return kernel


def spatial_attention(x, conv_weight, *, block_c=None, ch_chunk=32,
                      vmem_in_budget_bytes=4 * 2 ** 20):
    """x: (N, C, H, W) float32 or bfloat16; conv_weight: (1, 2, 7, 7)."""
    N, C, H, W = x.shape
    assert conv_weight.shape == (1, 2, KSIZE, KSIZE)
    HW = H * W
    itemsize = jnp.dtype(x.dtype).itemsize

    # --- tile selection -----------------------------------------------------
    # Channel-tiled "arbitrary" grid axis bounds the resident block for any C.
    # block_c must divide C (no channel masking needed).
    if block_c is None:
        lane_row_bytes = _round_up(HW, 128) * itemsize
        cap = max(1, vmem_in_budget_bytes // lane_row_bytes)
        block_c = _largest_divisor_leq(C, cap)
    else:
        assert C % block_c == 0, "block_c must divide C"
    n_c_blocks = C // block_c
    ch_chunk = max(1, min(ch_chunk, block_c))

    HP = _round_up(H + 2 * PAD, 8)
    WP = _round_up(W + 2 * PAD, 128)

    # --- VMEM footprint, with (8,128)/(16,128) tile padding ------------------
    x_blk = _padded_tile_bytes(block_c, HW, x.dtype)
    o_blk = _padded_tile_bytes(1, HW, x.dtype)
    scratch_bytes = 2 * _padded_tile_bytes(1, HW, jnp.float32) + 2 * HP * WP * 4
    est_bytes = 2 * x_blk + 2 * o_blk + scratch_bytes + (2 << 20)  # + headroom

    compiler_kwargs = dict(dimension_semantics=("parallel", "arbitrary"))
    if est_bytes > 12 * 2 ** 20:
        # Only raise the scoped VMEM limit when actually needed; cap it
        # generation-aware (~75% of physical VMEM, fallback 64 MiB for v7x).
        phys = 64 * 2 ** 20
        try:
            phys = int(getattr(pltpu.get_tpu_info(), "vmem_capacity_bytes", phys))
        except Exception:
            pass
        compiler_kwargs["vmem_limit_bytes"] = int(
            min(max(2 * est_bytes, 16 * 2 ** 20), (phys * 3) // 4))

    w_flat = conv_weight.reshape(-1).astype(jnp.float32)     # (98,)
    x_flat = x.reshape(N, C, HW)                             # lane-dense view

    cost = pl.CostEstimate(
        flops=int(N * HW * (2 * C + 2 * 2 * KSIZE * KSIZE)),
        transcendentals=int(N * HW),
        bytes_accessed=int(N * C * HW * itemsize + N * HW * itemsize
                           + w_flat.size * 4),
    )

    kernel = _make_kernel(C, H, W, ch_chunk)

    out_flat = pl.pallas_call(
        kernel,
        out_shape=jax.ShapeDtypeStruct((N, 1, HW), x.dtype),
        grid=(N, n_c_blocks),
        in_specs=[
            pl.BlockSpec(memory_space=pltpu.MemorySpace.SMEM),        # weights
            pl.BlockSpec((1, block_c, HW), lambda n, c: (n, c, 0)),   # x
        ],
        out_specs=pl.BlockSpec((1, 1, HW), lambda n, c: (n, 0, 0)),
        scratch_shapes=[
            pltpu.VMEM((1, HW), jnp.float32),       # running channel-sum
            pltpu.VMEM((1, HW), jnp.float32),       # running channel-max
            pltpu.VMEM((2, HP, WP), jnp.float32),   # zero-halo conv planes
        ],
        compiler_params=pltpu.CompilerParams(**compiler_kwargs),
        cost_estimate=cost,
    )(w_flat, x_flat)

    return out_flat.reshape(N, 1, H, W)


def make_delta_weight():
    """Matches initialize_conv2d_as_delta_noBias(conv1, 1): all zeros, then
    weight[0, 0, 3, 3] = 1.0."""
    w = jnp.zeros((1, 2, KSIZE, KSIZE), jnp.float32)
    return w.at[0, 0, PAD, PAD].set(1.0)


def _reference(x, conv_weight):
    """Pure-JAX reference (cross-correlation = PyTorch conv2d semantics)."""
    avg = jnp.mean(x, axis=1, keepdims=True)
    mx = jnp.max(x, axis=1, keepdims=True)
    cat = jnp.concatenate([avg, mx], axis=1)
    y = jax.lax.conv_general_dilated(
        cat, conv_weight, window_strides=(1, 1),
        padding=((PAD, PAD), (PAD, PAD)),
        dimension_numbers=("NCHW", "OIHW", "NCHW"),
        precision=jax.lax.Precision.HIGHEST)
    return jax.nn.sigmoid(y)


if __name__ == "__main__":
    key = jax.random.PRNGKey(0)
    k1, k2, k3, k4 = jax.random.split(key, 4)
    N, C, H, W = 2, 4, 16, 16
    x = jax.random.normal(k1, (N, C, H, W), dtype=jnp.float32)

    # 1) Module's actual init (delta weight): conv reduces to the channel
    #    mean, so out == sigmoid(mean(x, dim=1)).
    out = jax.block_until_ready(spatial_attention(x, make_delta_weight()))
    expected = jax.nn.sigmoid(jnp.mean(x, axis=1, keepdims=True))
    assert out.shape == (N, 1, H, W)
    assert jnp.allclose(out, expected, atol=1e-5, rtol=1e-5)

    # 2) Random weight: validates kh/kw orientation and channel order against
    #    PyTorch-style cross-correlation semantics.
    w_rand = jax.random.normal(k2, (1, 2, KSIZE, KSIZE), dtype=jnp.float32)
    out_r = jax.block_until_ready(spatial_attention(x, w_rand))
    ref_r = _reference(x, w_rand)
    assert jnp.allclose(out_r, ref_r, atol=5e-5, rtol=5e-5), float(
        jnp.max(jnp.abs(out_r - ref_r)))

    # 3) Multi C-step accumulation path + odd (non-aligned) H, W.
    N2, C2, H2, W2 = 2, 8, 9, 7
    x2 = jax.random.normal(k3, (N2, C2, H2, W2), dtype=jnp.float32)
    w2 = jax.random.normal(k4, (1, 2, KSIZE, KSIZE), dtype=jnp.float32)
    out2 = jax.block_until_ready(spatial_attention(x2, w2, block_c=2))
    ref2 = _reference(x2, w2)
    assert out2.shape == (N2, 1, H2, W2)
    assert jnp.allclose(out2, ref2, atol=5e-5, rtol=5e-5), float(
        jnp.max(jnp.abs(out2 - ref2)))

    print("KERNEL_OK")
</pallas_src>

<mosaic_0001>
module attributes {stable_mosaic.version = 11 : i64} {
  func.func @kernel(%arg0: i32, %arg1: i32, %arg2: memref<98xf32, #tpu.memory_space<smem>>, %arg3: memref<1x4x256xf32, #tpu.memory_space<vmem>>, %arg4: memref<1x1x256xf32, #tpu.memory_space<vmem>>, %arg5: memref<1x256xf32, #tpu.memory_space<vmem>>, %arg6: memref<1x256xf32, #tpu.memory_space<vmem>>, %arg7: memref<2x24x128xf32, #tpu.memory_space<vmem>>) attributes {dimension_semantics = [#tpu.dimension_semantics<parallel>, #tpu.dimension_semantics<arbitrary>], iteration_bounds = array<i64: 2, 1>, scalar_prefetch = 0 : i64, scratch_operands = 3 : i64, tpu.core_type = #tpu.core_type<tc>, window_params = [{transform_indices = @transform_0, window_bounds = array<i64: 98>}, {transform_indices = @transform_1, window_bounds = array<i64: 1, 4, 256>}, {transform_indices = @transform_2, window_bounds = array<i64: 1, 1, 256>}]} {
    %c0_i32 = arith.constant 0 : i32
    %0 = arith.cmpi eq, %arg1, %c0_i32 : i32
    %1 = arith.extui %0 : i1 to i32
    %c0_i32_0 = arith.constant 0 : i32
    %2 = arith.cmpi ne, %1, %c0_i32_0 : i32
    scf.if %2 {
      %cst_14 = arith.constant 0.000000e+00 : f32
      %18 = vector.broadcast %cst_14 : f32 to vector<1x256xf32>
      %c0_15 = arith.constant 0 : index
      %c0_16 = arith.constant 0 : index
      %19 = vector.load %arg5[%c0_15, %c0_16] : memref<1x256xf32, #tpu.memory_space<vmem>>, vector<1x256xf32>
      tpu.vector_store %arg5[%c0_15, %c0_16], %18 {strides = array<i32>} : memref<1x256xf32, #tpu.memory_space<vmem>>, vector<1x256xf32>,
      %cst_17 = arith.constant 0xFF800000 : f32
      %20 = vector.broadcast %cst_17 : f32 to vector<1x256xf32>
      %c0_18 = arith.constant 0 : index
      %c0_19 = arith.constant 0 : index
      %21 = vector.load %arg6[%c0_18, %c0_19] : memref<1x256xf32, #tpu.memory_space<vmem>>, vector<1x256xf32>
      tpu.vector_store %arg6[%c0_18, %c0_19], %20 {strides = array<i32>} : memref<1x256xf32, #tpu.memory_space<vmem>>, vector<1x256xf32>,
    } else {
    }
    %c0 = arith.constant 0 : index
    %c0_1 = arith.constant 0 : index
    %3 = vector.load %arg5[%c0, %c0_1] : memref<1x256xf32, #tpu.memory_space<vmem>>, vector<1x256xf32>
    %c0_2 = arith.constant 0 : index
    %c0_3 = arith.constant 0 : index
    %4 = vector.load %arg6[%c0_2, %c0_3] : memref<1x256xf32, #tpu.memory_space<vmem>>, vector<1x256xf32>
    %c0_4 = arith.constant 0 : index
    %c0_5 = arith.constant 0 : index
    %c0_6 = arith.constant 0 : index
    %5 = vector.load %arg3[%c0_4, %c0_5, %c0_6] : memref<1x4x256xf32, #tpu.memory_space<vmem>>, vector<1x4x256xf32>
    %6 = vector.shape_cast %5 : vector<1x4x256xf32> to vector<4x256xf32>
    %cst = arith.constant dense<0.000000e+00> : vector<256xf32>
    %7 = vector.multi_reduction <add>, %6, %cst [0] : vector<4x256xf32> to vector<256xf32>
    %8 = vector.shape_cast %7 : vector<256xf32> to vector<1x256xf32>
    %9 = arith.addf %3, %8 : vector<1x256xf32>
    %cst_7 = arith.constant dense<0xFF800000> : vector<256xf32>
    %10 = vector.multi_reduction <maximumf>, %6, %cst_7 [0] : vector<4x256xf32> to vector<256xf32>
    %11 = vector.shape_cast %10 : vector<256xf32> to vector<1x256xf32>
    %12 = arith.maximumf %4, %11 : vector<1x256xf32>
    %c0_8 = arith.constant 0 : index
    %c0_9 = arith.constant 0 : index
    %13 = vector.load %arg5[%c0_8, %c0_9] : memref<1x256xf32, #tpu.memory_space<vmem>>, vector<1x256xf32>
    tpu.vector_store %arg5[%c0_8, %c0_9], %9 {strides = array<i32>} : memref<1x256xf32, #tpu.memory_space<vmem>>, vector<1x256xf32>,
    %c0_10 = arith.constant 0 : index
    %c0_11 = arith.constant 0 : index
    %14 = vector.load %arg6[%c0_10, %c0_11] : memref<1x256xf32, #tpu.memory_space<vmem>>, vector<1x256xf32>
    tpu.vector_store %arg6[%c0_10, %c0_11], %12 {strides = array<i32>} : memref<1x256xf32, #tpu.memory_space<vmem>>, vector<1x256xf32>,
    %c0_i32_12 = arith.constant 0 : i32
    %15 = arith.cmpi eq, %arg1, %c0_i32_12 : i32
    %16 = arith.extui %15 : i1 to i32
    %c0_i32_13 = arith.constant 0 : i32
    %17 = arith.cmpi ne, %16, %c0_i32_13 : i32
    scf.if %17 {
      %cst_14 = arith.constant 0.000000e+00 : f32
      %18 = vector.broadcast %cst_14 : f32 to vector<3x22xf32>
      %c0_15 = arith.constant 0 : index
      %c0_16 = arith.constant 0 : index
      %c0_17 = arith.constant 0 : index
      %19 = vector.load %arg7[%c0_15, %c0_16, %c0_17] : memref<2x24x128xf32, #tpu.memory_space<vmem>>, vector<1x3x22xf32>
      %20 = vector.shape_cast %19 : vector<1x3x22xf32> to vector<3x22xf32>
      %21 = vector.shape_cast %18 : vector<3x22xf32> to vector<1x3x22xf32>
      tpu.vector_store %arg7[%c0_15, %c0_16, %c0_17], %21 {strides = array<i32>} : memref<2x24x128xf32, #tpu.memory_space<vmem>>, vector<1x3x22xf32>,
      %cst_18 = arith.constant 0.000000e+00 : f32
      %22 = vector.broadcast %cst_18 : f32 to vector<3x22xf32>
      %c0_19 = arith.constant 0 : index
      %c19 = arith.constant 19 : index
      %c0_20 = arith.constant 0 : index
      %23 = vector.load %arg7[%c0_19, %c19, %c0_20] : memref<2x24x128xf32, #tpu.memory_space<vmem>>, vector<1x3x22xf32>
      %24 = vector.shape_cast %23 : vector<1x3x22xf32> to vector<3x22xf32>
      %25 = vector.shape_cast %22 : vector<3x22xf32> to vector<1x3x22xf32>
      tpu.vector_store %arg7[%c0_19, %c19, %c0_20], %25 {strides = array<i32>} : memref<2x24x128xf32, #tpu.memory_space<vmem>>, vector<1x3x22xf32>,
      %cst_21 = arith.constant 0.000000e+00 : f32
      %26 = vector.broadcast %cst_21 : f32 to vector<16x3xf32>
      %c0_22 = arith.constant 0 : index
      %c3 = arith.constant 3 : index
      %c0_23 = arith.constant 0 : index
      %27 = vector.load %arg7[%c0_22, %c3, %c0_23] : memref<2x24x128xf32, #tpu.memory_space<vmem>>, vector<1x16x3xf32>
      %28 = vector.shape_cast %27 : vector<1x16x3xf32> to vector<16x3xf32>
      %29 = vector.shape_cast %26 : vector<16x3xf32> to vector<1x16x3xf32>
      tpu.vector_store %arg7[%c0_22, %c3, %c0_23], %29 {strides = array<i32>} : memref<2x24x128xf32, #tpu.memory_space<vmem>>, vector<1x16x3xf32>,
      %cst_24 = arith.constant 0.000000e+00 : f32
      %30 = vector.broadcast %cst_24 : f32 to vector<16x3xf32>
      %c0_25 = arith.constant 0 : index
      %c3_26 = arith.constant 3 : index
      %c19_27 = arith.constant 19 : index
      %31 = vector.load %arg7[%c0_25, %c3_26, %c19_27] : memref<2x24x128xf32, #tpu.memory_space<vmem>>, vector<1x16x3xf32>
      %32 = vector.shape_cast %31 : vector<1x16x3xf32> to vector<16x3xf32>
      %33 = vector.shape_cast %30 : vector<16x3xf32> to vector<1x16x3xf32>
      tpu.vector_store %arg7[%c0_25, %c3_26, %c19_27], %33 {strides = array<i32>} : memref<2x24x128xf32, #tpu.memory_space<vmem>>, vector<1x16x3xf32>,
      %cst_28 = arith.constant 0.000000e+00 : f32
      %34 = vector.broadcast %cst_28 : f32 to vector<3x22xf32>
      %c1 = arith.constant 1 : index
      %c0_29 = arith.constant 0 : index
      %c0_30 = arith.constant 0 : index
      %35 = vector.load %arg7[%c1, %c0_29, %c0_30] : memref<2x24x128xf32, #tpu.memory_space<vmem>>, vector<1x3x22xf32>
      %36 = vector.shape_cast %35 : vector<1x3x22xf32> to vector<3x22xf32>
      %37 = vector.shape_cast %34 : vector<3x22xf32> to vector<1x3x22xf32>
      tpu.vector_store %arg7[%c1, %c0_29, %c0_30], %37 {strides = array<i32>} : memref<2x24x128xf32, #tpu.memory_space<vmem>>, vector<1x3x22xf32>,
      %cst_31 = arith.constant 0.000000e+00 : f32
      %38 = vector.broadcast %cst_31 : f32 to vector<3x22xf32>
      %c1_32 = arith.constant 1 : index
      %c19_33 = arith.constant 19 : index
      %c0_34 = arith.constant 0 : index
      %39 = vector.load %arg7[%c1_32, %c19_33, %c0_34] : memref<2x24x128xf32, #tpu.memory_space<vmem>>, vector<1x3x22xf32>
      %40 = vector.shape_cast %39 : vector<1x3x22xf32> to vector<3x22xf32>
      %41 = vector.shape_cast %38 : vector<3x22xf32> to vector<1x3x22xf32>
      tpu.vector_store %arg7[%c1_32, %c19_33, %c0_34], %41 {strides = array<i32>} : memref<2x24x128xf32, #tpu.memory_space<vmem>>, vector<1x3x22xf32>,
      %cst_35 = arith.constant 0.000000e+00 : f32
      %42 = vector.broadcast %cst_35 : f32 to vector<16x3xf32>
      %c1_36 = arith.constant 1 : index
      %c3_37 = arith.constant 3 : index
      %c0_38 = arith.constant 0 : index
      %43 = vector.load %arg7[%c1_36, %c3_37, %c0_38] : memref<2x24x128xf32, #tpu.memory_space<vmem>>, vector<1x16x3xf32>
      %44 = vector.shape_cast %43 : vector<1x16x3xf32> to vector<16x3xf32>
      %45 = vector.shape_cast %42 : vector<16x3xf32> to vector<1x16x3xf32>
      tpu.vector_store %arg7[%c1_36, %c3_37, %c0_38], %45 {strides = array<i32>} : memref<2x24x128xf32, #tpu.memory_space<vmem>>, vector<1x16x3xf32>,
      %cst_39 = arith.constant 0.000000e+00 : f32
      %46 = vector.broadcast %cst_39 : f32 to vector<16x3xf32>
      %c1_40 = arith.constant 1 : index
      %c3_41 = arith.constant 3 : index
      %c19_42 = arith.constant 19 : index
      %47 = vector.load %arg7[%c1_40, %c3_41, %c19_42] : memref<2x24x128xf32, #tpu.memory_space<vmem>>, vector<1x16x3xf32>
      %48 = vector.shape_cast %47 : vector<1x16x3xf32> to vector<16x3xf32>
      %49 = vector.shape_cast %46 : vector<16x3xf32> to vector<1x16x3xf32>
      tpu.vector_store %arg7[%c1_40, %c3_41, %c19_42], %49 {strides = array<i32>} : memref<2x24x128xf32, #tpu.memory_space<vmem>>, vector<1x16x3xf32>,
      %c0_43 = arith.constant 0 : index
      %c0_44 = arith.constant 0 : index
      %50 = vector.load %arg5[%c0_43, %c0_44] : memref<1x256xf32, #tpu.memory_space<vmem>>, vector<1x256xf32>
      %cst_45 = arith.constant 2.500000e-01 : f32
      %51 = vector.broadcast %cst_45 : f32 to vector<1x256xf32>
      %52 = arith.mulf %50, %51 : vector<1x256xf32>
      %c0_46 = arith.constant 0 : index
      %c0_47 = arith.constant 0 : index
      %53 = vector.load %arg6[%c0_46, %c0_47] : memref<1x256xf32, #tpu.memory_space<vmem>>, vector<1x256xf32>
      %54 = vector.extract_strided_slice %52 {offsets = [0, 0], sizes = [1, 16], strides = [1, 1]} : vector<1x256xf32> to vector<1x16xf32>
      %c0_48 = arith.constant 0 : index
      %c3_49 = arith.constant 3 : index
      %c3_50 = arith.constant 3 : index
      %55 = vector.load %arg7[%c0_48, %c3_49, %c3_50] : memref<2x24x128xf32, #tpu.memory_space<vmem>>, vector<1x1x16xf32>
      %56 = vector.shape_cast %55 : vector<1x1x16xf32> to vector<1x16xf32>
      %57 = vector.shape_cast %54 : vector<1x16xf32> to vector<1x1x16xf32>
      tpu.vector_store %arg7[%c0_48, %c3_49, %c3_50], %57 {strides = array<i32>} : memref<2x24x128xf32, #tpu.memory_space<vmem>>, vector<1x1x16xf32>,
      %58 = vector.extract_strided_slice %53 {offsets = [0, 0], sizes = [1, 16], strides = [1, 1]} : vector<1x256xf32> to vector<1x16xf32>
      %c1_51 = arith.constant 1 : index
      %c3_52 = arith.constant 3 : index
      %c3_53 = arith.constant 3 : index
      %59 = vector.load %arg7[%c1_51, %c3_52, %c3_53] : memref<2x24x128xf32, #tpu.memory_space<vmem>>, vector<1x1x16xf32>
      %60 = vector.shape_cast %59 : vector<1x1x16xf32> to vector<1x16xf32>
      %61 = vector.shape_cast %58 : vector<1x16xf32> to vector<1x1x16xf32>
      tpu.vector_store %arg7[%c1_51, %c3_52, %c3_53], %61 {strides = array<i32>} : memref<2x24x128xf32, #tpu.memory_space<vmem>>, vector<1x1x16xf32>,
      %62 = vector.extract_strided_slice %52 {offsets = [0, 16], sizes = [1, 16], strides = [1, 1]} : vector<1x256xf32> to vector<1x16xf32>
      %c0_54 = arith.constant 0 : index
      %c4 = arith.constant 4 : index
      %c3_55 = arith.constant 3 : index
      %63 = vector.load %arg7[%c0_54, %c4, %c3_55] : memref<2x24x128xf32, #tpu.memory_space<vmem>>, vector<1x1x16xf32>
      %64 = vector.shape_cast %63 : vector<1x1x16xf32> to vector<1x16xf32>
      %65 = vector.shape_cast %62 : vector<1x16xf32> to vector<1x1x16xf32>
      tpu.vector_store %arg7[%c0_54, %c4, %c3_55], %65 {strides = array<i32>} : memref<2x24x128xf32, #tpu.memory_space<vmem>>, vector<1x1x16xf32>,
      %66 = vector.extract_strided_slice %53 {offsets = [0, 16], sizes = [1, 16], strides = [1, 1]} : vector<1x256xf32> to vector<1x16xf32>
      %c1_56 = arith.constant 1 : index
      %c4_57 = arith.constant 4 : index
      %c3_58 = arith.constant 3 : index
      %67 = vector.load %arg7[%c1_56, %c4_57, %c3_58] : memref<2x24x128xf32, #tpu.memory_space<vmem>>, vector<1x1x16xf32>
      %68 = vector.shape_cast %67 : vector<1x1x16xf32> to vector<1x16xf32>
      %69 = vector.shape_cast %66 : vector<1x16xf32> to vector<1x1x16xf32>
      tpu.vector_store %arg7[%c1_56, %c4_57, %c3_58], %69 {strides = array<i32>} : memref<2x24x128xf32, #tpu.memory_space<vmem>>, vector<1x1x16xf32>,
      %70 = vector.extract_strided_slice %52 {offsets = [0, 32], sizes = [1, 16], strides = [1, 1]} : vector<1x256xf32> to vector<1x16xf32>
      %c0_59 = arith.constant 0 : index
      %c5 = arith.constant 5 : index
      %c3_60 = arith.constant 3 : index
      %71 = vector.load %arg7[%c0_59, %c5, %c3_60] : memref<2x24x128xf32, #tpu.memory_space<vmem>>, vector<1x1x16xf32>
      %72 = vector.shape_cast %71 : vector<1x1x16xf32> to vector<1x16xf32>
      %73 = vector.shape_cast %70 : vector<1x16xf32> to vector<1x1x16xf32>
      tpu.vector_store %arg7[%c0_59, %c5, %c3_60], %73 {strides = array<i32>} : memref<2x24x128xf32, #tpu.memory_space<vmem>>, vector<1x1x16xf32>,
      %74 = vector.extract_strided_slice %53 {offsets = [0, 32], sizes = [1, 16], strides = [1, 1]} : vector<1x256xf32> to vector<1x16xf32>
      %c1_61 = arith.constant 1 : index
      %c5_62 = arith.constant 5 : index
      %c3_63 = arith.constant 3 : index
      %75 = vector.load %arg7[%c1_61, %c5_62, %c3_63] : memref<2x24x128xf32, #tpu.memory_space<vmem>>, vector<1x1x16xf32>
      %76 = vector.shape_cast %75 : vector<1x1x16xf32> to vector<1x16xf32>
      %77 = vector.shape_cast %74 : vector<1x16xf32> to vector<1x1x16xf32>
      tpu.vector_store %arg7[%c1_61, %c5_62, %c3_63], %77 {strides = array<i32>} : memref<2x24x128xf32, #tpu.memory_space<vmem>>, vector<1x1x16xf32>,
      %78 = vector.extract_strided_slice %52 {offsets = [0, 48], sizes = [1, 16], strides = [1, 1]} : vector<1x256xf32> to vector<1x16xf32>
      %c0_64 = arith.constant 0 : index
      %c6 = arith.constant 6 : index
      %c3_65 = arith.constant 3 : index
      %79 = vector.load %arg7[%c0_64, %c6, %c3_65] : memref<2x24x128xf32, #tpu.memory_space<vmem>>, vector<1x1x16xf32>
      %80 = vector.shape_cast %79 : vector<1x1x16xf32> to vector<1x16xf32>
      %81 = vector.shape_cast %78 : vector<1x16xf32> to vector<1x1x16xf32>
      tpu.vector_store %arg7[%c0_64, %c6, %c3_65], %81 {strides = array<i32>} : memref<2x24x128xf32, #tpu.memory_space<vmem>>, vector<1x1x16xf32>,
      %82 = vector.extract_strided_slice %53 {offsets = [0, 48], sizes = [1, 16], strides = [1, 1]} : vector<1x256xf32> to vector<1x16xf32>
      %c1_66 = arith.constant 1 : index
      %c6_67 = arith.constant 6 : index
      %c3_68 = arith.constant 3 : index
      %83 = vector.load %arg7[%c1_66, %c6_67, %c3_68] : memref<2x24x128xf32, #tpu.memory_space<vmem>>, vector<1x1x16xf32>
      %84 = vector.shape_cast %83 : vector<1x1x16xf32> to vector<1x16xf32>
      %85 = vector.shape_cast %82 : vector<1x16xf32> to vector<1x1x16xf32>
      tpu.vector_store %arg7[%c1_66, %c6_67, %c3_68], %85 {strides = array<i32>} : memref<2x24x128xf32, #tpu.memory_space<vmem>>, vector<1x1x16xf32>,
      %86 = vector.extract_strided_slice %52 {offsets = [0, 64], sizes = [1, 16], strides = [1, 1]} : vector<1x256xf32> to vector<1x16xf32>
      %c0_69 = arith.constant 0 : index
      %c7 = arith.constant 7 : index
      %c3_70 = arith.constant 3 : index
      %87 = vector.load %arg7[%c0_69, %c7, %c3_70] : memref<2x24x128xf32, #tpu.memory_space<vmem>>, vector<1x1x16xf32>
      %88 = vector.shape_cast %87 : vector<1x1x16xf32> to vector<1x16xf32>
      %89 = vector.shape_cast %86 : vector<1x16xf32> to vector<1x1x16xf32>
      tpu.vector_store %arg7[%c0_69, %c7, %c3_70], %89 {strides = array<i32>} : memref<2x24x128xf32, #tpu.memory_space<vmem>>, vector<1x1x16xf32>,
      %90 = vector.extract_strided_slice %53 {offsets = [0, 64], sizes = [1, 16], strides = [1, 1]} : vector<1x256xf32> to vector<1x16xf32>
      %c1_71 = arith.constant 1 : index
      %c7_72 = arith.constant 7 : index
      %c3_73 = arith.constant 3 : index
      %91 = vector.load %arg7[%c1_71, %c7_72, %c3_73] : memref<2x24x128xf32, #tpu.memory_space<vmem>>, vector<1x1x16xf32>
      %92 = vector.shape_cast %91 : vector<1x1x16xf32> to vector<1x16xf32>
      %93 = vector.shape_cast %90 : vector<1x16xf32> to vector<1x1x16xf32>
      tpu.vector_store %arg7[%c1_71, %c7_72, %c3_73], %93 {strides = array<i32>} : memref<2x24x128xf32, #tpu.memory_space<vmem>>, vector<1x1x16xf32>,
      %94 = vector.extract_strided_slice %52 {offsets = [0, 80], sizes = [1, 16], strides = [1, 1]} : vector<1x256xf32> to vector<1x16xf32>
      %c0_74 = arith.constant 0 : index
      %c8 = arith.constant 8 : index
      %c3_75 = arith.constant 3 : index
      %95 = vector.load %arg7[%c0_74, %c8, %c3_75] : memref<2x24x128xf32, #tpu.memory_space<vmem>>, vector<1x1x16xf32>
      %96 = vector.shape_cast %95 : vector<1x1x16xf32> to vector<1x16xf32>
      %97 = vector.shape_cast %94 : vector<1x16xf32> to vector<1x1x16xf32>
      tpu.vector_store %arg7[%c0_74, %c8, %c3_75], %97 {strides = array<i32>} : memref<2x24x128xf32, #tpu.memory_space<vmem>>, vector<1x1x16xf32>,
      %98 = vector.extract_strided_slice %53 {offsets = [0, 80], sizes = [1, 16], strides = [1, 1]} : vector<1x256xf32> to vector<1x16xf32>
      %c1_76 = arith.constant 1 : index
      %c8_77 = arith.constant 8 : index
      %c3_78 = arith.constant 3 : index
      %99 = vector.load %arg7[%c1_76, %c8_77, %c3_78] : memref<2x24x128xf32, #tpu.memory_space<vmem>>, vector<1x1x16xf32>
      %100 = vector.shape_cast %99 : vector<1x1x16xf32> to vector<1x16xf32>
      %101 = vector.shape_cast %98 : vector<1x16xf32> to vector<1x1x16xf32>
      tpu.vector_store %arg7[%c1_76, %c8_77, %c3_78], %101 {strides = array<i32>} : memref<2x24x128xf32, #tpu.memory_space<vmem>>, vector<1x1x16xf32>,
      %102 = vector.extract_strided_slice %52 {offsets = [0, 96], sizes = [1, 16], strides = [1, 1]} : vector<1x256xf32> to vector<1x16xf32>
      %c0_79 = arith.constant 0 : index
      %c9 = arith.constant 9 : index
      %c3_80 = arith.constant 3 : index
      %103 = vector.load %arg7[%c0_79, %c9, %c3_80] : memref<2x24x128xf32, #tpu.memory_space<vmem>>, vector<1x1x16xf32>
      %104 = vector.shape_cast %103 : vector<1x1x16xf32> to vector<1x16xf32>
      %105 = vector.shape_cast %102 : vector<1x16xf32> to vector<1x1x16xf32>
      tpu.vector_store %arg7[%c0_79, %c9, %c3_80], %105 {strides = array<i32>} : memref<2x24x128xf32, #tpu.memory_space<vmem>>, vector<1x1x16xf32>,
      %106 = vector.extract_strided_slice %53 {offsets = [0, 96], sizes = [1, 16], strides = [1, 1]} : vector<1x256xf32> to vector<1x16xf32>
      %c1_81 = arith.constant 1 : index
      %c9_82 = arith.constant 9 : index
      %c3_83 = arith.constant 3 : index
      %107 = vector.load %arg7[%c1_81, %c9_82, %c3_83] : memref<2x24x128xf32, #tpu.memory_space<vmem>>, vector<1x1x16xf32>
      %108 = vector.shape_cast %107 : vector<1x1x16xf32> to vector<1x16xf32>
      %109 = vector.shape_cast %106 : vector<1x16xf32> to vector<1x1x16xf32>
      tpu.vector_store %arg7[%c1_81, %c9_82, %c3_83], %109 {strides = array<i32>} : memref<2x24x128xf32, #tpu.memory_space<vmem>>, vector<1x1x16xf32>,
      %110 = vector.extract_strided_slice %52 {offsets = [0, 112], sizes = [1, 16], strides = [1, 1]} : vector<1x256xf32> to vector<1x16xf32>
      %c0_84 = arith.constant 0 : index
      %c10 = arith.constant 10 : index
      %c3_85 = arith.constant 3 : index
      %111 = vector.load %arg7[%c0_84, %c10, %c3_85] : memref<2x24x128xf32, #tpu.memory_space<vmem>>, vector<1x1x16xf32>
      %112 = vector.shape_cast %111 : vector<1x1x16xf32> to vector<1x16xf32>
      %113 = vector.shape_cast %110 : vector<1x16xf32> to vector<1x1x16xf32>
      tpu.vector_store %arg7[%c0_84, %c10, %c3_85], %113 {strides = array<i32>} : memref<2x24x128xf32, #tpu.memory_space<vmem>>, vector<1x1x16xf32>,
      %114 = vector.extract_strided_slice %53 {offsets = [0, 112], sizes = [1, 16], strides = [1, 1]} : vector<1x256xf32> to vector<1x16xf32>
      %c1_86 = arith.constant 1 : index
      %c10_87 = arith.constant 10 : index
      %c3_88 = arith.constant 3 : index
      %115 = vector.load %arg7[%c1_86, %c10_87, %c3_88] : memref<2x24x128xf32, #tpu.memory_space<vmem>>, vector<1x1x16xf32>
      %116 = vector.shape_cast %115 : vector<1x1x16xf32> to vector<1x16xf32>
      %117 = vector.shape_cast %114 : vector<1x16xf32> to vector<1x1x16xf32>
      tpu.vector_store %arg7[%c1_86, %c10_87, %c3_88], %117 {strides = array<i32>} : memref<2x24x128xf32, #tpu.memory_space<vmem>>, vector<1x1x16xf32>,
      %118 = vector.extract_strided_slice %52 {offsets = [0, 128], sizes = [1, 16], strides = [1, 1]} : vector<1x256xf32> to vector<1x16xf32>
      %c0_89 = arith.constant 0 : index
      %c11 = arith.constant 11 : index
      %c3_90 = arith.constant 3 : index
      %119 = vector.load %arg7[%c0_89, %c11, %c3_90] : memref<2x24x128xf32, #tpu.memory_space<vmem>>, vector<1x1x16xf32>
      %120 = vector.shape_cast %119 : vector<1x1x16xf32> to vector<1x16xf32>
      %121 = vector.shape_cast %118 : vector<1x16xf32> to vector<1x1x16xf32>
      tpu.vector_store %arg7[%c0_89, %c11, %c3_90], %121 {strides = array<i32>} : memref<2x24x128xf32, #tpu.memory_space<vmem>>, vector<1x1x16xf32>,
      %122 = vector.extract_strided_slice %53 {offsets = [0, 128], sizes = [1, 16], strides = [1, 1]} : vector<1x256xf32> to vector<1x16xf32>
      %c1_91 = arith.constant 1 : index
      %c11_92 = arith.constant 11 : index
      %c3_93 = arith.constant 3 : index
      %123 = vector.load %arg7[%c1_91, %c11_92, %c3_93] : memref<2x24x128xf32, #tpu.memory_space<vmem>>, vector<1x1x16xf32>
      %124 = vector.shape_cast %123 : vector<1x1x16xf32> to vector<1x16xf32>
      %125 = vector.shape_cast %122 : vector<1x16xf32> to vector<1x1x16xf32>
      tpu.vector_store %arg7[%c1_91, %c11_92, %c3_93], %125 {strides = array<i32>} : memref<2x24x128xf32, #tpu.memory_space<vmem>>, vector<1x1x16xf32>,
      %126 = vector.extract_strided_slice %52 {offsets = [0, 144], sizes = [1, 16], strides = [1, 1]} : vector<1x256xf32> to vector<1x16xf32>
      %c0_94 = arith.constant 0 : index
      %c12 = arith.constant 12 : index
      %c3_95 = arith.constant 3 : index
      %127 = vector.load %arg7[%c0_94, %c12, %c3_95] : memref<2x24x128xf32, #tpu.memory_space<vmem>>, vector<1x1x16xf32>
      %128 = vector.shape_cast %127 : vector<1x1x16xf32> to vector<1x16xf32>
      %129 = vector.shape_cast %126 : vector<1x16xf32> to vector<1x1x16xf32>
      tpu.vector_store %arg7[%c0_94, %c12, %c3_95], %129 {strides = array<i32>} : memref<2x24x128xf32, #tpu.memory_space<vmem>>, vector<1x1x16xf32>,
      %130 = vector.extract_strided_slice %53 {offsets = [0, 144], sizes = [1, 16], strides = [1, 1]} : vector<1x256xf32> to vector<1x16xf32>
      %c1_96 = arith.constant 1 : index
      %c12_97 = arith.constant 12 : index
      %c3_98 = arith.constant 3 : index
      %131 = vector.load %arg7[%c1_96, %c12_97, %c3_98] : memref<2x24x128xf32, #tpu.memory_space<vmem>>, vector<1x1x16xf32>
      %132 = vector.shape_cast %131 : vector<1x1x16xf32> to vector<1x16xf32>
      %133 = vector.shape_cast %130 : vector<1x16xf32> to vector<1x1x16xf32>
      tpu.vector_store %arg7[%c1_96, %c12_97, %c3_98], %133 {strides = array<i32>} : memref<2x24x128xf32, #tpu.memory_space<vmem>>, vector<1x1x16xf32>,
      %134 = vector.extract_strided_slice %52 {offsets = [0, 160], sizes = [1, 16], strides = [1, 1]} : vector<1x256xf32> to vector<1x16xf32>
      %c0_99 = arith.constant 0 : index
      %c13 = arith.constant 13 : index
      %c3_100 = arith.constant 3 : index
      %135 = vector.load %arg7[%c0_99, %c13, %c3_100] : memref<2x24x128xf32, #tpu.memory_space<vmem>>, vector<1x1x16xf32>
      %136 = vector.shape_cast %135 : vector<1x1x16xf32> to vector<1x16xf32>
      %137 = vector.shape_cast %134 : vector<1x16xf32> to vector<1x1x16xf32>
      tpu.vector_store %arg7[%c0_99, %c13, %c3_100], %137 {strides = array<i32>} : memref<2x24x128xf32, #tpu.memory_space<vmem>>, vector<1x1x16xf32>,
      %138 = vector.extract_strided_slice %53 {offsets = [0, 160], sizes = [1, 16], strides = [1, 1]} : vector<1x256xf32> to vector<1x16xf32>
      %c1_101 = arith.constant 1 : index
      %c13_102 = arith.constant 13 : index
      %c3_103 = arith.constant 3 : index
      %139 = vector.load %arg7[%c1_101, %c13_102, %c3_103] : memref<2x24x128xf32, #tpu.memory_space<vmem>>, vector<1x1x16xf32>
      %140 = vector.shape_cast %139 : vector<1x1x16xf32> to vector<1x16xf32>
      %141 = vector.shape_cast %138 : vector<1x16xf32> to vector<1x1x16xf32>
      tpu.vector_store %arg7[%c1_101, %c13_102, %c3_103], %141 {strides = array<i32>} : memref<2x24x128xf32, #tpu.memory_space<vmem>>, vector<1x1x16xf32>,
      %142 = vector.extract_strided_slice %52 {offsets = [0, 176], sizes = [1, 16], strides = [1, 1]} : vector<1x256xf32> to vector<1x16xf32>
      %c0_104 = arith.constant 0 : index
      %c14 = arith.constant 14 : index
      %c3_105 = arith.constant 3 : index
      %143 = vector.load %arg7[%c0_104, %c14, %c3_105] : memref<2x24x128xf32, #tpu.memory_space<vmem>>, vector<1x1x16xf32>
      %144 = vector.shape_cast %143 : vector<1x1x16xf32> to vector<1x16xf32>
      %145 = vector.shape_cast %142 : vector<1x16xf32> to vector<1x1x16xf32>
      tpu.vector_store %arg7[%c0_104, %c14, %c3_105], %145 {strides = array<i32>} : memref<2x24x128xf32, #tpu.memory_space<vmem>>, vector<1x1x16xf32>,
      %146 = vector.extract_strided_slice %53 {offsets = [0, 176], sizes = [1, 16], strides = [1, 1]} : vector<1x256xf32> to vector<1x16xf32>
      %c1_106 = arith.constant 1 : index
      %c14_107 = arith.constant 14 : index
      %c3_108 = arith.constant 3 : index
      %147 = vector.load %arg7[%c1_106, %c14_107, %c3_108] : memref<2x24x128xf32, #tpu.memory_space<vmem>>, vector<1x1x16xf32>
      %148 = vector.shape_cast %147 : vector<1x1x16xf32> to vector<1x16xf32>
      %149 = vector.shape_cast %146 : vector<1x16xf32> to vector<1x1x16xf32>
      tpu.vector_store %arg7[%c1_106, %c14_107, %c3_108], %149 {strides = array<i32>} : memref<2x24x128xf32, #tpu.memory_space<vmem>>, vector<1x1x16xf32>,
      %150 = vector.extract_strided_slice %52 {offsets = [0, 192], sizes = [1, 16], strides = [1, 1]} : vector<1x256xf32> to vector<1x16xf32>
      %c0_109 = arith.constant 0 : index
      %c15 = arith.constant 15 : index
      %c3_110 = arith.constant 3 : index
      %151 = vector.load %arg7[%c0_109, %c15, %c3_110] : memref<2x24x128xf32, #tpu.memory_space<vmem>>, vector<1x1x16xf32>
      %152 = vector.shape_cast %151 : vector<1x1x16xf32> to vector<1x16xf32>
      %153 = vector.shape_cast %150 : vector<1x16xf32> to vector<1x1x16xf32>
      tpu.vector_store %arg7[%c0_109, %c15, %c3_110], %153 {strides = array<i32>} : memref<2x24x128xf32, #tpu.memory_space<vmem>>, vector<1x1x16xf32>,
      %154 = vector.extract_strided_slice %53 {offsets = [0, 192], sizes = [1, 16], strides = [1, 1]} : vector<1x256xf32> to vector<1x16xf32>
      %c1_111 = arith.constant 1 : index
      %c15_112 = arith.constant 15 : index
      %c3_113 = arith.constant 3 : index
      %155 = vector.load %arg7[%c1_111, %c15_112, %c3_113] : memref<2x24x128xf32, #tpu.memory_space<vmem>>, vector<1x1x16xf32>
      %156 = vector.shape_cast %155 : vector<1x1x16xf32> to vector<1x16xf32>
      %157 = vector.shape_cast %154 : vector<1x16xf32> to vector<1x1x16xf32>
      tpu.vector_store %arg7[%c1_111, %c15_112, %c3_113], %157 {strides = array<i32>} : memref<2x24x128xf32, #tpu.memory_space<vmem>>, vector<1x1x16xf32>,
      %158 = vector.extract_strided_slice %52 {offsets = [0, 208], sizes = [1, 16], strides = [1, 1]} : vector<1x256xf32> to vector<1x16xf32>
      %c0_114 = arith.constant 0 : index
      %c16 = arith.constant 16 : index
      %c3_115 = arith.constant 3 : index
      %159 = vector.load %arg7[%c0_114, %c16, %c3_115] : memref<2x24x128xf32, #tpu.memory_space<vmem>>, vector<1x1x16xf32>
      %160 = vector.shape_cast %159 : vector<1x1x16xf32> to vector<1x16xf32>
      %161 = vector.shape_cast %158 : vector<1x16xf32> to vector<1x1x16xf32>
      tpu.vector_store %arg7[%c0_114, %c16, %c3_115], %161 {strides = array<i32>} : memref<2x24x128xf32, #tpu.memory_space<vmem>>, vector<1x1x16xf32>,
      %162 = vector.extract_strided_slice %53 {offsets = [0, 208], sizes = [1, 16], strides = [1, 1]} : vector<1x256xf32> to vector<1x16xf32>
      %c1_116 = arith.constant 1 : index
      %c16_117 = arith.constant 16 : index
      %c3_118 = arith.constant 3 : index
      %163 = vector.load %arg7[%c1_116, %c16_117, %c3_118] : memref<2x24x128xf32, #tpu.memory_space<vmem>>, vector<1x1x16xf32>
      %164 = vector.shape_cast %163 : vector<1x1x16xf32> to vector<1x16xf32>
      %165 = vector.shape_cast %162 : vector<1x16xf32> to vector<1x1x16xf32>
      tpu.vector_store %arg7[%c1_116, %c16_117, %c3_118], %165 {strides = array<i32>} : memref<2x24x128xf32, #tpu.memory_space<vmem>>, vector<1x1x16xf32>,
      %166 = vector.extract_strided_slice %52 {offsets = [0, 224], sizes = [1, 16], strides = [1, 1]} : vector<1x256xf32> to vector<1x16xf32>
      %c0_119 = arith.constant 0 : index
      %c17 = arith.constant 17 : index
      %c3_120 = arith.constant 3 : index
      %167 = vector.load %arg7[%c0_119, %c17, %c3_120] : memref<2x24x128xf32, #tpu.memory_space<vmem>>, vector<1x1x16xf32>
      %168 = vector.shape_cast %167 : vector<1x1x16xf32> to vector<1x16xf32>
      %169 = vector.shape_cast %166 : vector<1x16xf32> to vector<1x1x16xf32>
      tpu.vector_store %arg7[%c0_119, %c17, %c3_120], %169 {strides = array<i32>} : memref<2x24x128xf32, #tpu.memory_space<vmem>>, vector<1x1x16xf32>,
      %170 = vector.extract_strided_slice %53 {offsets = [0, 224], sizes = [1, 16], strides = [1, 1]} : vector<1x256xf32> to vector<1x16xf32>
      %c1_121 = arith.constant 1 : index
      %c17_122 = arith.constant 17 : index
      %c3_123 = arith.constant 3 : index
      %171 = vector.load %arg7[%c1_121, %c17_122, %c3_123] : memref<2x24x128xf32, #tpu.memory_space<vmem>>, vector<1x1x16xf32>
      %172 = vector.shape_cast %171 : vector<1x1x16xf32> to vector<1x16xf32>
      %173 = vector.shape_cast %170 : vector<1x16xf32> to vector<1x1x16xf32>
      tpu.vector_store %arg7[%c1_121, %c17_122, %c3_123], %173 {strides = array<i32>} : memref<2x24x128xf32, #tpu.memory_space<vmem>>, vector<1x1x16xf32>,
      %174 = vector.extract_strided_slice %52 {offsets = [0, 240], sizes = [1, 16], strides = [1, 1]} : vector<1x256xf32> to vector<1x16xf32>
      %c0_124 = arith.constant 0 : index
      %c18 = arith.constant 18 : index
      %c3_125 = arith.constant 3 : index
      %175 = vector.load %arg7[%c0_124, %c18, %c3_125] : memref<2x24x128xf32, #tpu.memory_space<vmem>>, vector<1x1x16xf32>
      %176 = vector.shape_cast %175 : vector<1x1x16xf32> to vector<1x16xf32>
      %177 = vector.shape_cast %174 : vector<1x16xf32> to vector<1x1x16xf32>
      tpu.vector_store %arg7[%c0_124, %c18, %c3_125], %177 {strides = array<i32>} : memref<2x24x128xf32, #tpu.memory_space<vmem>>, vector<1x1x16xf32>,
      %178 = vector.extract_strided_slice %53 {offsets = [0, 240], sizes = [1, 16], strides = [1, 1]} : vector<1x256xf32> to vector<1x16xf32>
      %c1_126 = arith.constant 1 : index
      %c18_127 = arith.constant 18 : index
      %c3_128 = arith.constant 3 : index
      %179 = vector.load %arg7[%c1_126, %c18_127, %c3_128] : memref<2x24x128xf32, #tpu.memory_space<vmem>>, vector<1x1x16xf32>
      %180 = vector.shape_cast %179 : vector<1x1x16xf32> to vector<1x16xf32>
      %181 = vector.shape_cast %178 : vector<1x16xf32> to vector<1x1x16xf32>
      tpu.vector_store %arg7[%c1_126, %c18_127, %c3_128], %181 {strides = array<i32>} : memref<2x24x128xf32, #tpu.memory_space<vmem>>, vector<1x1x16xf32>,
      %c0_129 = arith.constant 0 : index
      %182 = memref.load %arg2[%c0_129] : memref<98xf32, #tpu.memory_space<smem>>
      %c1_130 = arith.constant 1 : index
      %183 = memref.load %arg2[%c1_130] : memref<98xf32, #tpu.memory_space<smem>>
      %c2 = arith.constant 2 : index
      %184 = memref.load %arg2[%c2] : memref<98xf32, #tpu.memory_space<smem>>
      %c3_131 = arith.constant 3 : index
      %185 = memref.load %arg2[%c3_131] : memref<98xf32, #tpu.memory_space<smem>>
      %c4_132 = arith.constant 4 : index
      %186 = memref.load %arg2[%c4_132] : memref<98xf32, #tpu.memory_space<smem>>
      %c5_133 = arith.constant 5 : index
      %187 = memref.load %arg2[%c5_133] : memref<98xf32, #tpu.memory_space<smem>>
      %c6_134 = arith.constant 6 : index
      %188 = memref.load %arg2[%c6_134] : memref<98xf32, #tpu.memory_space<smem>>
      %c7_135 = arith.constant 7 : index
      %189 = memref.load %arg2[%c7_135] : memref<98xf32, #tpu.memory_space<smem>>
      %c8_136 = arith.constant 8 : index
      %190 = memref.load %arg2[%c8_136] : memref<98xf32, #tpu.memory_space<smem>>
      %c9_137 = arith.constant 9 : index
      %191 = memref.load %arg2[%c9_137] : memref<98xf32, #tpu.memory_space<smem>>
      %c10_138 = arith.constant 10 : index
      %192 = memref.load %arg2[%c10_138] : memref<98xf32, #tpu.memory_space<smem>>
      %c11_139 = arith.constant 11 : index
      %193 = memref.load %arg2[%c11_139] : memref<98xf32, #tpu.memory_space<smem>>
      %c12_140 = arith.constant 12 : index
      %194 = memref.load %arg2[%c12_140] : memref<98xf32, #tpu.memory_space<smem>>
      %c13_141 = arith.constant 13 : index
      %195 = memref.load %arg2[%c13_141] : memref<98xf32, #tpu.memory_space<smem>>
      %c14_142 = arith.constant 14 : index
      %196 = memref.load %arg2[%c14_142] : memref<98xf32, #tpu.memory_space<smem>>
      %c15_143 = arith.constant 15 : index
      %197 = memref.load %arg2[%c15_143] : memref<98xf32, #tpu.memory_space<smem>>
      %c16_144 = arith.constant 16 : index
      %198 = memref.load %arg2[%c16_144] : memref<98xf32, #tpu.memory_space<smem>>
      %c17_145 = arith.constant 17 : index
      %199 = memref.load %arg2[%c17_145] : memref<98xf32, #tpu.memory_space<smem>>
      %c18_146 = arith.constant 18 : index
      %200 = memref.load %arg2[%c18_146] : memref<98xf32, #tpu.memory_space<smem>>
      %c19_147 = arith.constant 19 : index
      %201 = memref.load %arg2[%c19_147] : memref<98xf32, #tpu.memory_space<smem>>
      %c20 = arith.constant 20 : index
      %202 = memref.load %arg2[%c20] : memref<98xf32, #tpu.memory_space<smem>>
      %c21 = arith.constant 21 : index
      %203 = memref.load %arg2[%c21] : memref<98xf32, #tpu.memory_space<smem>>
      %c22 = arith.constant 22 : index
      %204 = memref.load %arg2[%c22] : memref<98xf32, #tpu.memory_space<smem>>
      %c23 = arith.constant 23 : index
      %205 = memref.load %arg2[%c23] : memref<98xf32, #tpu.memory_space<smem>>
      %c24 = arith.constant 24 : index
      %206 = memref.load %arg2[%c24] : memref<98xf32, #tpu.memory_space<smem>>
      %c25 = arith.constant 25 : index
      %207 = memref.load %arg2[%c25] : memref<98xf32, #tpu.memory_space<smem>>
      %c26 = arith.constant 26 : index
      %208 = memref.load %arg2[%c26] : memref<98xf32, #tpu.memory_space<smem>>
      %c27 = arith.constant 27 : index
      %209 = memref.load %arg2[%c27] : memref<98xf32, #tpu.memory_space<smem>>
      %c28 = arith.constant 28 : index
      %210 = memref.load %arg2[%c28] : memref<98xf32, #tpu.memory_space<smem>>
      %c29 = arith.constant 29 : index
      %211 = memref.load %arg2[%c29] : memref<98xf32, #tpu.memory_space<smem>>
      %c30 = arith.constant 30 : index
      %212 = memref.load %arg2[%c30] : memref<98xf32, #tpu.memory_space<smem>>
      %c31 = arith.constant 31 : index
      %213 = memref.load %arg2[%c31] : memref<98xf32, #tpu.memory_space<smem>>
      %c32 = arith.constant 32 : index
      %214 = memref.load %arg2[%c32] : memref<98xf32, #tpu.memory_space<smem>>
      %c33 = arith.constant 33 : index
      %215 = memref.load %arg2[%c33] : memref<98xf32, #tpu.memory_space<smem>>
      %c34 = arith.constant 34 : index
      %216 = memref.load %arg2[%c34] : memref<98xf32, #tpu.memory_space<smem>>
      %c35 = arith.constant 35 : index
      %217 = memref.load %arg2[%c35] : memref<98xf32, #tpu.memory_space<smem>>
      %c36 = arith.constant 36 : index
      %218 = memref.load %arg2[%c36] : memref<98xf32, #tpu.memory_space<smem>>
      %c37 = arith.constant 37 : index
      %219 = memref.load %arg2[%c37] : memref<98xf32, #tpu.memory_space<smem>>
      %c38 = arith.constant 38 : index
      %220 = memref.load %arg2[%c38] : memref<98xf32, #tpu.memory_space<smem>>
      %c39 = arith.constant 39 : index
      %221 = memref.load %arg2[%c39] : memref<98xf32, #tpu.memory_space<smem>>
      %c40 = arith.constant 40 : index
      %222 = memref.load %arg2[%c40] : memref<98xf32, #tpu.memory_space<smem>>
      %c41 = arith.constant 41 : index
      %223 = memref.load %arg2[%c41] : memref<98xf32, #tpu.memory_space<smem>>
      %c42 = arith.constant 42 : index
      %224 = memref.load %arg2[%c42] : memref<98xf32, #tpu.memory_space<smem>>
      %c43 = arith.constant 43 : index
      %225 = memref.load %arg2[%c43] : memref<98xf32, #tpu.memory_space<smem>>
      %c44 = arith.constant 44 : index
      %226 = memref.load %arg2[%c44] : memref<98xf32, #tpu.memory_space<smem>>
      %c45 = arith.constant 45 : index
      %227 = memref.load %arg2[%c45] : memref<98xf32, #tpu.memory_space<smem>>
      %c46 = arith.constant 46 : index
      %228 = memref.load %arg2[%c46] : memref<98xf32, #tpu.memory_space<smem>>
      %c47 = arith.constant 47 : index
      %229 = memref.load %arg2[%c47] : memref<98xf32, #tpu.memory_space<smem>>
      %c48 = arith.constant 48 : index
      %230 = memref.load %arg2[%c48] : memref<98xf32, #tpu.memory_space<smem>>
      %c49 = arith.constant 49 : index
      %231 = memref.load %arg2[%c49] : memref<98xf32, #tpu.memory_space<smem>>
      %c50 = arith.constant 50 : index
      %232 = memref.load %arg2[%c50] : memref<98xf32, #tpu.memory_space<smem>>
      %c51 = arith.constant 51 : index
      %233 = memref.load %arg2[%c51] : memref<98xf32, #tpu.memory_space<smem>>
      %c52 = arith.constant 52 : index
      %234 = memref.load %arg2[%c52] : memref<98xf32, #tpu.memory_space<smem>>
      %c53 = arith.constant 53 : index
      %235 = memref.load %arg2[%c53] : memref<98xf32, #tpu.memory_space<smem>>
      %c54 = arith.constant 54 : index
      %236 = memref.load %arg2[%c54] : memref<98xf32, #tpu.memory_space<smem>>
      %c55 = arith.constant 55 : index
      %237 = memref.load %arg2[%c55] : memref<98xf32, #tpu.memory_space<smem>>
      %c56 = arith.constant 56 : index
      %238 = memref.load %arg2[%c56] : memref<98xf32, #tpu.memory_space<smem>>
      %c57 = arith.constant 57 : index
      %239 = memref.load %arg2[%c57] : memref<98xf32, #tpu.memory_space<smem>>
      %c58 = arith.constant 58 : index
      %240 = memref.load %arg2[%c58] : memref<98xf32, #tpu.memory_space<smem>>
      %c59 = arith.constant 59 : index
      %241 = memref.load %arg2[%c59] : memref<98xf32, #tpu.memory_space<smem>>
      %c60 = arith.constant 60 : index
      %242 = memref.load %arg2[%c60] : memref<98xf32, #tpu.memory_space<smem>>
      %c61 = arith.constant 61 : index
      %243 = memref.load %arg2[%c61] : memref<98xf32, #tpu.memory_space<smem>>
      %c62 = arith.constant 62 : index
      %244 = memref.load %arg2[%c62] : memref<98xf32, #tpu.memory_space<smem>>
      %c63 = arith.constant 63 : index
      %245 = memref.load %arg2[%c63] : memref<98xf32, #tpu.memory_space<smem>>
      %c64 = arith.constant 64 : index
      %246 = memref.load %arg2[%c64] : memref<98xf32, #tpu.memory_space<smem>>
      %c65 = arith.constant 65 : index
      %247 = memref.load %arg2[%c65] : memref<98xf32, #tpu.memory_space<smem>>
      %c66 = arith.constant 66 : index
      %248 = memref.load %arg2[%c66] : memref<98xf32, #tpu.memory_space<smem>>
      %c67 = arith.constant 67 : index
      %249 = memref.load %arg2[%c67] : memref<98xf32, #tpu.memory_space<smem>>
      %c68 = arith.constant 68 : index
      %250 = memref.load %arg2[%c68] : memref<98xf32, #tpu.memory_space<smem>>
      %c69 = arith.constant 69 : index
      %251 = memref.load %arg2[%c69] : memref<98xf32, #tpu.memory_space<smem>>
      %c70 = arith.constant 70 : index
      %252 = memref.load %arg2[%c70] : memref<98xf32, #tpu.memory_space<smem>>
      %c71 = arith.constant 71 : index
      %253 = memref.load %arg2[%c71] : memref<98xf32, #tpu.memory_space<smem>>
      %c72 = arith.constant 72 : index
      %254 = memref.load %arg2[%c72] : memref<98xf32, #tpu.memory_space<smem>>
      %c73 = arith.constant 73 : index
      %255 = memref.load %arg2[%c73] : memref<98xf32, #tpu.memory_space<smem>>
      %c74 = arith.constant 74 : index
      %256 = memref.load %arg2[%c74] : memref<98xf32, #tpu.memory_space<smem>>
      %c75 = arith.constant 75 : index
      %257 = memref.load %arg2[%c75] : memref<98xf32, #tpu.memory_space<smem>>
      %c76 = arith.constant 76 : index
      %258 = memref.load %arg2[%c76] : memref<98xf32, #tpu.memory_space<smem>>
      %c77 = arith.constant 77 : index
      %259 = memref.load %arg2[%c77] : memref<98xf32, #tpu.memory_space<smem>>
      %c78 = arith.constant 78 : index
      %260 = memref.load %arg2[%c78] : memref<98xf32, #tpu.memory_space<smem>>
      %c79 = arith.constant 79 : index
      %261 = memref.load %arg2[%c79] : memref<98xf32, #tpu.memory_space<smem>>
      %c80 = arith.constant 80 : index
      %262 = memref.load %arg2[%c80] : memref<98xf32, #tpu.memory_space<smem>>
      %c81 = arith.constant 81 : index
      %263 = memref.load %arg2[%c81] : memref<98xf32, #tpu.memory_space<smem>>
      %c82 = arith.constant 82 : index
      %264 = memref.load %arg2[%c82] : memref<98xf32, #tpu.memory_space<smem>>
      %c83 = arith.constant 83 : index
      %265 = memref.load %arg2[%c83] : memref<98xf32, #tpu.memory_space<smem>>
      %c84 = arith.constant 84 : index
      %266 = memref.load %arg2[%c84] : memref<98xf32, #tpu.memory_space<smem>>
      %c85 = arith.constant 85 : index
      %267 = memref.load %arg2[%c85] : memref<98xf32, #tpu.memory_space<smem>>
      %c86 = arith.constant 86 : index
      %268 = memref.load %arg2[%c86] : memref<98xf32, #tpu.memory_space<smem>>
      %c87 = arith.constant 87 : index
      %269 = memref.load %arg2[%c87] : memref<98xf32, #tpu.memory_space<smem>>
      %c88 = arith.constant 88 : index
      %270 = memref.load %arg2[%c88] : memref<98xf32, #tpu.memory_space<smem>>
      %c89 = arith.constant 89 : index
      %271 = memref.load %arg2[%c89] : memref<98xf32, #tpu.memory_space<smem>>
      %c90 = arith.constant 90 : index
      %272 = memref.load %arg2[%c90] : memref<98xf32, #tpu.memory_space<smem>>
      %c91 = arith.constant 91 : index
      %273 = memref.load %arg2[%c91] : memref<98xf32, #tpu.memory_space<smem>>
      %c92 = arith.constant 92 : index
      %274 = memref.load %arg2[%c92] : memref<98xf32, #tpu.memory_space<smem>>
      %c93 = arith.constant 93 : index
      %275 = memref.load %arg2[%c93] : memref<98xf32, #tpu.memory_space<smem>>
      %c94 = arith.constant 94 : index
      %276 = memref.load %arg2[%c94] : memref<98xf32, #tpu.memory_space<smem>>
      %c95 = arith.constant 95 : index
      %277 = memref.load %arg2[%c95] : memref<98xf32, #tpu.memory_space<smem>>
      %c96 = arith.constant 96 : index
      %278 = memref.load %arg2[%c96] : memref<98xf32, #tpu.memory_space<smem>>
      %c97 = arith.constant 97 : index
      %279 = memref.load %arg2[%c97] : memref<98xf32, #tpu.memory_space<smem>>
      %cst_148 = arith.constant 0.000000e+00 : f32
      %280 = vector.broadcast %cst_148 : f32 to vector<16x16xf32>
      %cst_149 = arith.constant 0.000000e+00 : f32
      %281 = vector.broadcast %cst_149 : f32 to vector<16x16xf32>
      %cst_150 = arith.constant 0.000000e+00 : f32
      %282 = vector.broadcast %cst_150 : f32 to vector<16x16xf32>
      %cst_151 = arith.constant 0.000000e+00 : f32
      %283 = vector.broadcast %cst_151 : f32 to vector<16x16xf32>
      %cst_152 = arith.constant 0.000000e+00 : f32
      %284 = vector.broadcast %cst_152 : f32 to vector<16x16xf32>
      %cst_153 = arith.constant 0.000000e+00 : f32
      %285 = vector.broadcast %cst_153 : f32 to vector<16x16xf32>
      %cst_154 = arith.constant 0.000000e+00 : f32
      %286 = vector.broadcast %cst_154 : f32 to vector<16x16xf32>
      %c0_155 = arith.constant 0 : index
      %c0_156 = arith.constant 0 : index
      %c0_157 = arith.constant 0 : index
      %287 = vector.load %arg7[%c0_155, %c0_156, %c0_157] : memref<2x24x128xf32, #tpu.memory_space<vmem>>, vector<1x24x16xf32>
      %288 = vector.shape_cast %287 : vector<1x24x16xf32> to vector<24x16xf32>
      %289 = vector.extract_strided_slice %288 {offsets = [0, 0], sizes = [16, 16], strides = [1, 1]} : vector<24x16xf32> to vector<16x16xf32>
      %290 = vector.broadcast %182 : f32 to vector<16x16xf32>
      %291 = arith.mulf %290, %289 : vector<16x16xf32>
      %292 = arith.addf %280, %291 : vector<16x16xf32>
      %293 = vector.extract_strided_slice %288 {offsets = [1, 0], sizes = [16, 16], strides = [1, 1]} : vector<24x16xf32> to vector<16x16xf32>
      %294 = vector.broadcast %189 : f32 to vector<16x16xf32>
      %295 = arith.mulf %294, %293 : vector<16x16xf32>
      %296 = arith.addf %281, %295 : vector<16x16xf32>
      %297 = vector.extract_strided_slice %288 {offsets = [2, 0], sizes = [16, 16], strides = [1, 1]} : vector<24x16xf32> to vector<16x16xf32>
      %298 = vector.broadcast %196 : f32 to vector<16x16xf32>
      %299 = arith.mulf %298, %297 : vector<16x16xf32>
      %300 = arith.addf %282, %299 : vector<16x16xf32>
      %301 = vector.extract_strided_slice %288 {offsets = [3, 0], sizes = [16, 16], strides = [1, 1]} : vector<24x16xf32> to vector<16x16xf32>
      %302 = vector.broadcast %203 : f32 to vector<16x16xf32>
      %303 = arith.mulf %302, %301 : vector<16x16xf32>
      %304 = arith.addf %283, %303 : vector<16x16xf32>
      %305 = vector.extract_strided_slice %288 {offsets = [4, 0], sizes = [16, 16], strides = [1, 1]} : vector<24x16xf32> to vector<16x16xf32>
      %306 = vector.broadcast %210 : f32 to vector<16x16xf32>
      %307 = arith.mulf %306, %305 : vector<16x16xf32>
      %308 = arith.addf %284, %307 : vector<16x16xf32>
      %309 = vector.extract_strided_slice %288 {offsets = [5, 0], sizes = [16, 16], strides = [1, 1]} : vector<24x16xf32> to vector<16x16xf32>
      %310 = vector.broadcast %217 : f32 to vector<16x16xf32>
      %311 = arith.mulf %310, %309 : vector<16x16xf32>
      %312 = arith.addf %285, %311 : vector<16x16xf32>
      %313 = vector.extract_strided_slice %288 {offsets = [6, 0], sizes = [16, 16], strides = [1, 1]} : vector<24x16xf32> to vector<16x16xf32>
      %314 = vector.broadcast %224 : f32 to vector<16x16xf32>
      %315 = arith.mulf %314, %313 : vector<16x16xf32>
      %316 = arith.addf %286, %315 : vector<16x16xf32>
      %c0_158 = arith.constant 0 : index
      %c0_159 = arith.constant 0 : index
      %c1_160 = arith.constant 1 : index
      %317 = vector.load %arg7[%c0_158, %c0_159, %c1_160] : memref<2x24x128xf32, #tpu.memory_space<vmem>>, vector<1x24x16xf32>
      %318 = vector.shape_cast %317 : vector<1x24x16xf32> to vector<24x16xf32>
      %319 = vector.extract_strided_slice %318 {offsets = [0, 0], sizes = [16, 16], strides = [1, 1]} : vector<24x16xf32> to vector<16x16xf32>
      %320 = vector.broadcast %183 : f32 to vector<16x16xf32>
      %321 = arith.mulf %320, %319 : vector<16x16xf32>
      %322 = arith.addf %292, %321 : vector<16x16xf32>
      %323 = vector.extract_strided_slice %318 {offsets = [1, 0], sizes = [16, 16], strides = [1, 1]} : vector<24x16xf32> to vector<16x16xf32>
      %324 = vector.broadcast %190 : f32 to vector<16x16xf32>
      %325 = arith.mulf %324, %323 : vector<16x16xf32>
      %326 = arith.addf %296, %325 : vector<16x16xf32>
      %327 = vector.extract_strided_slice %318 {offsets = [2, 0], sizes = [16, 16], strides = [1, 1]} : vector<24x16xf32> to vector<16x16xf32>
      %328 = vector.broadcast %197 : f32 to vector<16x16xf32>
      %329 = arith.mulf %328, %327 : vector<16x16xf32>
      %330 = arith.addf %300, %329 : vector<16x16xf32>
      %331 = vector.extract_strided_slice %318 {offsets = [3, 0], sizes = [16, 16], strides = [1, 1]} : vector<24x16xf32> to vector<16x16xf32>
      %332 = vector.broadcast %204 : f32 to vector<16x16xf32>
      %333 = arith.mulf %332, %331 : vector<16x16xf32>
      %334 = arith.addf %304, %333 : vector<16x16xf32>
      %335 = vector.extract_strided_slice %318 {offsets = [4, 0], sizes = [16, 16], strides = [1, 1]} : vector<24x16xf32> to vector<16x16xf32>
      %336 = vector.broadcast %211 : f32 to vector<16x16xf32>
      %337 = arith.mulf %336, %335 : vector<16x16xf32>
      %338 = arith.addf %308, %337 : vector<16x16xf32>
      %339 = vector.extract_strided_slice %318 {offsets = [5, 0], sizes = [16, 16], strides = [1, 1]} : vector<24x16xf32> to vector<16x16xf32>
      %340 = vector.broadcast %218 : f32 to vector<16x16xf32>
      %341 = arith.mulf %340, %339 : vector<16x16xf32>
      %342 = arith.addf %312, %341 : vector<16x16xf32>
      %343 = vector.extract_strided_slice %318 {offsets = [6, 0], sizes = [16, 16], strides = [1, 1]} : vector<24x16xf32> to vector<16x16xf32>
      %344 = vector.broadcast %225 : f32 to vector<16x16xf32>
      %345 = arith.mulf %344, %343 : vector<16x16xf32>
      %346 = arith.addf %316, %345 : vector<16x16xf32>
      %c0_161 = arith.constant 0 : index
      %c0_162 = arith.constant 0 : index
      %c2_163 = arith.constant 2 : index
      %347 = vector.load %arg7[%c0_161, %c0_162, %c2_163] : memref<2x24x128xf32, #tpu.memory_space<vmem>>, vector<1x24x16xf32>
      %348 = vector.shape_cast %347 : vector<1x24x16xf32> to vector<24x16xf32>
      %349 = vector.extract_strided_slice %348 {offsets = [0, 0], sizes = [16, 16], strides = [1, 1]} : vector<24x16xf32> to vector<16x16xf32>
      %350 = vector.broadcast %184 : f32 to vector<16x16xf32>
      %351 = arith.mulf %350, %349 : vector<16x16xf32>
      %352 = arith.addf %322, %351 : vector<16x16xf32>
      %353 = vector.extract_strided_slice %348 {offsets = [1, 0], sizes = [16, 16], strides = [1, 1]} : vector<24x16xf32> to vector<16x16xf32>
      %354 = vector.broadcast %191 : f32 to vector<16x16xf32>
      %355 = arith.mulf %354, %353 : vector<16x16xf32>
      %356 = arith.addf %326, %355 : vector<16x16xf32>
      %357 = vector.extract_strided_slice %348 {offsets = [2, 0], sizes = [16, 16], strides = [1, 1]} : vector<24x16xf32> to vector<16x16xf32>
      %358 = vector.broadcast %198 : f32 to vector<16x16xf32>
      %359 = arith.mulf %358, %357 : vector<16x16xf32>
      %360 = arith.addf %330, %359 : vector<16x16xf32>
      %361 = vector.extract_strided_slice %348 {offsets = [3, 0], sizes = [16, 16], strides = [1, 1]} : vector<24x16xf32> to vector<16x16xf32>
      %362 = vector.broadcast %205 : f32 to vector<16x16xf32>
      %363 = arith.mulf %362, %361 : vector<16x16xf32>
      %364 = arith.addf %334, %363 : vector<16x16xf32>
      %365 = vector.extract_strided_slice %348 {offsets = [4, 0], sizes = [16, 16], strides = [1, 1]} : vector<24x16xf32> to vector<16x16xf32>
      %366 = vector.broadcast %212 : f32 to vector<16x16xf32>
      %367 = arith.mulf %366, %365 : vector<16x16xf32>
      %368 = arith.addf %338, %367 : vector<16x16xf32>
      %369 = vector.extract_strided_slice %348 {offsets = [5, 0], sizes = [16, 16], strides = [1, 1]} : vector<24x16xf32> to vector<16x16xf32>
      %370 = vector.broadcast %219 : f32 to vector<16x16xf32>
      %371 = arith.mulf %370, %369 : vector<16x16xf32>
      %372 = arith.addf %342, %371 : vector<16x16xf32>
      %373 = vector.extract_strided_slice %348 {offsets = [6, 0], sizes = [16, 16], strides = [1, 1]} : vector<24x16xf32> to vector<16x16xf32>
      %374 = vector.broadcast %226 : f32 to vector<16x16xf32>
      %375 = arith.mulf %374, %373 : vector<16x16xf32>
      %376 = arith.addf %346, %375 : vector<16x16xf32>
      %c0_164 = arith.constant 0 : index
      %c0_165 = arith.constant 0 : index
      %c3_166 = arith.constant 3 : index
      %377 = vector.load %arg7[%c0_164, %c0_165, %c3_166] : memref<2x24x128xf32, #tpu.memory_space<vmem>>, vector<1x24x16xf32>
      %378 = vector.shape_cast %377 : vector<1x24x16xf32> to vector<24x16xf32>
      %379 = vector.extract_strided_slice %378 {offsets = [0, 0], sizes = [16, 16], strides = [1, 1]} : vector<24x16xf32> to vector<16x16xf32>
      %380 = vector.broadcast %185 : f32 to vector<16x16xf32>
      %381 = arith.mulf %380, %379 : vector<16x16xf32>
      %382 = arith.addf %352, %381 : vector<16x16xf32>
      %383 = vector.extract_strided_slice %378 {offsets = [1, 0], sizes = [16, 16], strides = [1, 1]} : vector<24x16xf32> to vector<16x16xf32>
      %384 = vector.broadcast %192 : f32 to vector<16x16xf32>
      %385 = arith.mulf %384, %383 : vector<16x16xf32>
      %386 = arith.addf %356, %385 : vector<16x16xf32>
      %387 = vector.extract_strided_slice %378 {offsets = [2, 0], sizes = [16, 16], strides = [1, 1]} : vector<24x16xf32> to vector<16x16xf32>
      %388 = vector.broadcast %199 : f32 to vector<16x16xf32>
      %389 = arith.mulf %388, %387 : vector<16x16xf32>
      %390 = arith.addf %360, %389 : vector<16x16xf32>
      %391 = vector.extract_strided_slice %378 {offsets = [3, 0], sizes = [16, 16], strides = [1, 1]} : vector<24x16xf32> to vector<16x16xf32>
      %392 = vector.broadcast %206 : f32 to vector<16x16xf32>
      %393 = arith.mulf %392, %391 : vector<16x16xf32>
      %394 = arith.addf %364, %393 : vector<16x16xf32>
      %395 = vector.extract_strided_slice %378 {offsets = [4, 0], sizes = [16, 16], strides = [1, 1]} : vector<24x16xf32> to vector<16x16xf32>
      %396 = vector.broadcast %213 : f32 to vector<16x16xf32>
      %397 = arith.mulf %396, %395 : vector<16x16xf32>
      %398 = arith.addf %368, %397 : vector<16x16xf32>
      %399 = vector.extract_strided_slice %378 {offsets = [5, 0], sizes = [16, 16], strides = [1, 1]} : vector<24x16xf32> to vector<16x16xf32>
      %400 = vector.broadcast %220 : f32 to vector<16x16xf32>
      %401 = arith.mulf %400, %399 : vector<16x16xf32>
      %402 = arith.addf %372, %401 : vector<16x16xf32>
      %403 = vector.extract_strided_slice %378 {offsets = [6, 0], sizes = [16, 16], strides = [1, 1]} : vector<24x16xf32> to vector<16x16xf32>
      %404 = vector.broadcast %227 : f32 to vector<16x16xf32>
      %405 = arith.mulf %404, %403 : vector<16x16xf32>
      %406 = arith.addf %376, %405 : vector<16x16xf32>
      %c0_167 = arith.constant 0 : index
      %c0_168 = arith.constant 0 : index
      %c4_169 = arith.constant 4 : index
      %407 = vector.load %arg7[%c0_167, %c0_168, %c4_169] : memref<2x24x128xf32, #tpu.memory_space<vmem>>, vector<1x24x16xf32>
      %408 = vector.shape_cast %407 : vector<1x24x16xf32> to vector<24x16xf32>
      %409 = vector.extract_strided_slice %408 {offsets = [0, 0], sizes = [16, 16], strides = [1, 1]} : vector<24x16xf32> to vector<16x16xf32>
      %410 = vector.broadcast %186 : f32 to vector<16x16xf32>
      %411 = arith.mulf %410, %409 : vector<16x16xf32>
      %412 = arith.addf %382, %411 : vector<16x16xf32>
      %413 = vector.extract_strided_slice %408 {offsets = [1, 0], sizes = [16, 16], strides = [1, 1]} : vector<24x16xf32> to vector<16x16xf32>
      %414 = vector.broadcast %193 : f32 to vector<16x16xf32>
      %415 = arith.mulf %414, %413 : vector<16x16xf32>
      %416 = arith.addf %386, %415 : vector<16x16xf32>
      %417 = vector.extract_strided_slice %408 {offsets = [2, 0], sizes = [16, 16], strides = [1, 1]} : vector<24x16xf32> to vector<16x16xf32>
      %418 = vector.broadcast %200 : f32 to vector<16x16xf32>
      %419 = arith.mulf %418, %417 : vector<16x16xf32>
      %420 = arith.addf %390, %419 : vector<16x16xf32>
      %421 = vector.extract_strided_slice %408 {offsets = [3, 0], sizes = [16, 16], strides = [1, 1]} : vector<24x16xf32> to vector<16x16xf32>
      %422 = vector.broadcast %207 : f32 to vector<16x16xf32>
      %423 = arith.mulf %422, %421 : vector<16x16xf32>
      %424 = arith.addf %394, %423 : vector<16x16xf32>
      %425 = vector.extract_strided_slice %408 {offsets = [4, 0], sizes = [16, 16], strides = [1, 1]} : vector<24x16xf32> to vector<16x16xf32>
      %426 = vector.broadcast %214 : f32 to vector<16x16xf32>
      %427 = arith.mulf %426, %425 : vector<16x16xf32>
      %428 = arith.addf %398, %427 : vector<16x16xf32>
      %429 = vector.extract_strided_slice %408 {offsets = [5, 0], sizes = [16, 16], strides = [1, 1]} : vector<24x16xf32> to vector<16x16xf32>
      %430 = vector.broadcast %221 : f32 to vector<16x16xf32>
      %431 = arith.mulf %430, %429 : vector<16x16xf32>
      %432 = arith.addf %402, %431 : vector<16x16xf32>
      %433 = vector.extract_strided_slice %408 {offsets = [6, 0], sizes = [16, 16], strides = [1, 1]} : vector<24x16xf32> to vector<16x16xf32>
      %434 = vector.broadcast %228 : f32 to vector<16x16xf32>
      %435 = arith.mulf %434, %433 : vector<16x16xf32>
      %436 = arith.addf %406, %435 : vector<16x16xf32>
      %c0_170 = arith.constant 0 : index
      %c0_171 = arith.constant 0 : index
      %c5_172 = arith.constant 5 : index
      %437 = vector.load %arg7[%c0_170, %c0_171, %c5_172] : memref<2x24x128xf32, #tpu.memory_space<vmem>>, vector<1x24x16xf32>
      %438 = vector.shape_cast %437 : vector<1x24x16xf32> to vector<24x16xf32>
      %439 = vector.extract_strided_slice %438 {offsets = [0, 0], sizes = [16, 16], strides = [1, 1]} : vector<24x16xf32> to vector<16x16xf32>
      %440 = vector.broadcast %187 : f32 to vector<16x16xf32>
      %441 = arith.mulf %440, %439 : vector<16x16xf32>
      %442 = arith.addf %412, %441 : vector<16x16xf32>
      %443 = vector.extract_strided_slice %438 {offsets = [1, 0], sizes = [16, 16], strides = [1, 1]} : vector<24x16xf32> to vector<16x16xf32>
      %444 = vector.broadcast %194 : f32 to vector<16x16xf32>
      %445 = arith.mulf %444, %443 : vector<16x16xf32>
      %446 = arith.addf %416, %445 : vector<16x16xf32>
      %447 = vector.extract_strided_slice %438 {offsets = [2, 0], sizes = [16, 16], strides = [1, 1]} : vector<24x16xf32> to vector<16x16xf32>
      %448 = vector.broadcast %201 : f32 to vector<16x16xf32>
      %449 = arith.mulf %448, %447 : vector<16x16xf32>
      %450 = arith.addf %420, %449 : vector<16x16xf32>
      %451 = vector.extract_strided_slice %438 {offsets = [3, 0], sizes = [16, 16], strides = [1, 1]} : vector<24x16xf32> to vector<16x16xf32>
      %452 = vector.broadcast %208 : f32 to vector<16x16xf32>
      %453 = arith.mulf %452, %451 : vector<16x16xf32>
      %454 = arith.addf %424, %453 : vector<16x16xf32>
      %455 = vector.extract_strided_slice %438 {offsets = [4, 0], sizes = [16, 16], strides = [1, 1]} : vector<24x16xf32> to vector<16x16xf32>
      %456 = vector.broadcast %215 : f32 to vector<16x16xf32>
      %457 = arith.mulf %456, %455 : vector<16x16xf32>
      %458 = arith.addf %428, %457 : vector<16x16xf32>
      %459 = vector.extract_strided_slice %438 {offsets = [5, 0], sizes = [16, 16], strides = [1, 1]} : vector<24x16xf32> to vector<16x16xf32>
      %460 = vector.broadcast %222 : f32 to vector<16x16xf32>
      %461 = arith.mulf %460, %459 : vector<16x16xf32>
      %462 = arith.addf %432, %461 : vector<16x16xf32>
      %463 = vector.extract_strided_slice %438 {offsets = [6, 0], sizes = [16, 16], strides = [1, 1]} : vector<24x16xf32> to vector<16x16xf32>
      %464 = vector.broadcast %229 : f32 to vector<16x16xf32>
      %465 = arith.mulf %464, %463 : vector<16x16xf32>
      %466 = arith.addf %436, %465 : vector<16x16xf32>
      %c0_173 = arith.constant 0 : index
      %c0_174 = arith.constant 0 : index
      %c6_175 = arith.constant 6 : index
      %467 = vector.load %arg7[%c0_173, %c0_174, %c6_175] : memref<2x24x128xf32, #tpu.memory_space<vmem>>, vector<1x24x16xf32>
      %468 = vector.shape_cast %467 : vector<1x24x16xf32> to vector<24x16xf32>
      %469 = vector.extract_strided_slice %468 {offsets = [0, 0], sizes = [16, 16], strides = [1, 1]} : vector<24x16xf32> to vector<16x16xf32>
      %470 = vector.broadcast %188 : f32 to vector<16x16xf32>
      %471 = arith.mulf %470, %469 : vector<16x16xf32>
      %472 = arith.addf %442, %471 : vector<16x16xf32>
      %473 = vector.extract_strided_slice %468 {offsets = [1, 0], sizes = [16, 16], strides = [1, 1]} : vector<24x16xf32> to vector<16x16xf32>
      %474 = vector.broadcast %195 : f32 to vector<16x16xf32>
      %475 = arith.mulf %474, %473 : vector<16x16xf32>
      %476 = arith.addf %446, %475 : vector<16x16xf32>
      %477 = vector.extract_strided_slice %468 {offsets = [2, 0], sizes = [16, 16], strides = [1, 1]} : vector<24x16xf32> to vector<16x16xf32>
      %478 = vector.broadcast %202 : f32 to vector<16x16xf32>
      %479 = arith.mulf %478, %477 : vector<16x16xf32>
      %480 = arith.addf %450, %479 : vector<16x16xf32>
      %481 = vector.extract_strided_slice %468 {offsets = [3, 0], sizes = [16, 16], strides = [1, 1]} : vector<24x16xf32> to vector<16x16xf32>
      %482 = vector.broadcast %209 : f32 to vector<16x16xf32>
      %483 = arith.mulf %482, %481 : vector<16x16xf32>
      %484 = arith.addf %454, %483 : vector<16x16xf32>
      %485 = vector.extract_strided_slice %468 {offsets = [4, 0], sizes = [16, 16], strides = [1, 1]} : vector<24x16xf32> to vector<16x16xf32>
      %486 = vector.broadcast %216 : f32 to vector<16x16xf32>
      %487 = arith.mulf %486, %485 : vector<16x16xf32>
      %488 = arith.addf %458, %487 : vector<16x16xf32>
      %489 = vector.extract_strided_slice %468 {offsets = [5, 0], sizes = [16, 16], strides = [1, 1]} : vector<24x16xf32> to vector<16x16xf32>
      %490 = vector.broadcast %223 : f32 to vector<16x16xf32>
      %491 = arith.mulf %490, %489 : vector<16x16xf32>
      %492 = arith.addf %462, %491 : vector<16x16xf32>
      %493 = vector.extract_strided_slice %468 {offsets = [6, 0], sizes = [16, 16], strides = [1, 1]} : vector<24x16xf32> to vector<16x16xf32>
      %494 = vector.broadcast %230 : f32 to vector<16x16xf32>
      %495 = arith.mulf %494, %493 : vector<16x16xf32>
      %496 = arith.addf %466, %495 : vector<16x16xf32>
      %c1_176 = arith.constant 1 : index
      %c0_177 = arith.constant 0 : index
      %c0_178 = arith.constant 0 : index
      %497 = vector.load %arg7[%c1_176, %c0_177, %c0_178] : memref<2x24x128xf32, #tpu.memory_space<vmem>>, vector<1x24x16xf32>
      %498 = vector.shape_cast %497 : vector<1x24x16xf32> to vector<24x16xf32>
      %499 = vector.extract_strided_slice %498 {offsets = [0, 0], sizes = [16, 16], strides = [1, 1]} : vector<24x16xf32> to vector<16x16xf32>
      %500 = vector.broadcast %231 : f32 to vector<16x16xf32>
      %501 = arith.mulf %500, %499 : vector<16x16xf32>
      %502 = arith.addf %472, %501 : vector<16x16xf32>
      %503 = vector.extract_strided_slice %498 {offsets = [1, 0], sizes = [16, 16], strides = [1, 1]} : vector<24x16xf32> to vector<16x16xf32>
      %504 = vector.broadcast %238 : f32 to vector<16x16xf32>
      %505 = arith.mulf %504, %503 : vector<16x16xf32>
      %506 = arith.addf %476, %505 : vector<16x16xf32>
      %507 = vector.extract_strided_slice %498 {offsets = [2, 0], sizes = [16, 16], strides = [1, 1]} : vector<24x16xf32> to vector<16x16xf32>
      %508 = vector.broadcast %245 : f32 to vector<16x16xf32>
      %509 = arith.mulf %508, %507 : vector<16x16xf32>
      %510 = arith.addf %480, %509 : vector<16x16xf32>
      %511 = vector.extract_strided_slice %498 {offsets = [3, 0], sizes = [16, 16], strides = [1, 1]} : vector<24x16xf32> to vector<16x16xf32>
      %512 = vector.broadcast %252 : f32 to vector<16x16xf32>
      %513 = arith.mulf %512, %511 : vector<16x16xf32>
      %514 = arith.addf %484, %513 : vector<16x16xf32>
      %515 = vector.extract_strided_slice %498 {offsets = [4, 0], sizes = [16, 16], strides = [1, 1]} : vector<24x16xf32> to vector<16x16xf32>
      %516 = vector.broadcast %259 : f32 to vector<16x16xf32>
      %517 = arith.mulf %516, %515 : vector<16x16xf32>
      %518 = arith.addf %488, %517 : vector<16x16xf32>
      %519 = vector.extract_strided_slice %498 {offsets = [5, 0], sizes = [16, 16], strides = [1, 1]} : vector<24x16xf32> to vector<16x16xf32>
      %520 = vector.broadcast %266 : f32 to vector<16x16xf32>
      %521 = arith.mulf %520, %519 : vector<16x16xf32>
      %522 = arith.addf %492, %521 : vector<16x16xf32>
      %523 = vector.extract_strided_slice %498 {offsets = [6, 0], sizes = [16, 16], strides = [1, 1]} : vector<24x16xf32> to vector<16x16xf32>
      %524 = vector.broadcast %273 : f32 to vector<16x16xf32>
      %525 = arith.mulf %524, %523 : vector<16x16xf32>
      %526 = arith.addf %496, %525 : vector<16x16xf32>
      %c1_179 = arith.constant 1 : index
      %c0_180 = arith.constant 0 : index
      %c1_181 = arith.constant 1 : index
      %527 = vector.load %arg7[%c1_179, %c0_180, %c1_181] : memref<2x24x128xf32, #tpu.memory_space<vmem>>, vector<1x24x16xf32>
      %528 = vector.shape_cast %527 : vector<1x24x16xf32> to vector<24x16xf32>
      %529 = vector.extract_strided_slice %528 {offsets = [0, 0], sizes = [16, 16], strides = [1, 1]} : vector<24x16xf32> to vector<16x16xf32>
      %530 = vector.broadcast %232 : f32 to vector<16x16xf32>
      %531 = arith.mulf %530, %529 : vector<16x16xf32>
      %532 = arith.addf %502, %531 : vector<16x16xf32>
      %533 = vector.extract_strided_slice %528 {offsets = [1, 0], sizes = [16, 16], strides = [1, 1]} : vector<24x16xf32> to vector<16x16xf32>
      %534 = vector.broadcast %239 : f32 to vector<16x16xf32>
      %535 = arith.mulf %534, %533 : vector<16x16xf32>
      %536 = arith.addf %506, %535 : vector<16x16xf32>
      %537 = vector.extract_strided_slice %528 {offsets = [2, 0], sizes = [16, 16], strides = [1, 1]} : vector<24x16xf32> to vector<16x16xf32>
      %538 = vector.broadcast %246 : f32 to vector<16x16xf32>
      %539 = arith.mulf %538, %537 : vector<16x16xf32>
      %540 = arith.addf %510, %539 : vector<16x16xf32>
      %541 = vector.extract_strided_slice %528 {offsets = [3, 0], sizes = [16, 16], strides = [1, 1]} : vector<24x16xf32> to vector<16x16xf32>
      %542 = vector.broadcast %253 : f32 to vector<16x16xf32>
      %543 = arith.mulf %542, %541 : vector<16x16xf32>
      %544 = arith.addf %514, %543 : vector<16x16xf32>
      %545 = vector.extract_strided_slice %528 {offsets = [4, 0], sizes = [16, 16], strides = [1, 1]} : vector<24x16xf32> to vector<16x16xf32>
      %546 = vector.broadcast %260 : f32 to vector<16x16xf32>
      %547 = arith.mulf %546, %545 : vector<16x16xf32>
      %548 = arith.addf %518, %547 : vector<16x16xf32>
      %549 = vector.extract_strided_slice %528 {offsets = [5, 0], sizes = [16, 16], strides = [1, 1]} : vector<24x16xf32> to vector<16x16xf32>
      %550 = vector.broadcast %267 : f32 to vector<16x16xf32>
      %551 = arith.mulf %550, %549 : vector<16x16xf32>
      %552 = arith.addf %522, %551 : vector<16x16xf32>
      %553 = vector.extract_strided_slice %528 {offsets = [6, 0], sizes = [16, 16], strides = [1, 1]} : vector<24x16xf32> to vector<16x16xf32>
      %554 = vector.broadcast %274 : f32 to vector<16x16xf32>
      %555 = arith.mulf %554, %553 : vector<16x16xf32>
      %556 = arith.addf %526, %555 : vector<16x16xf32>
      %c1_182 = arith.constant 1 : index
      %c0_183 = arith.constant 0 : index
      %c2_184 = arith.constant 2 : index
      %557 = vector.load %arg7[%c1_182, %c0_183, %c2_184] : memref<2x24x128xf32, #tpu.memory_space<vmem>>, vector<1x24x16xf32>
      %558 = vector.shape_cast %557 : vector<1x24x16xf32> to vector<24x16xf32>
      %559 = vector.extract_strided_slice %558 {offsets = [0, 0], sizes = [16, 16], strides = [1, 1]} : vector<24x16xf32> to vector<16x16xf32>
      %560 = vector.broadcast %233 : f32 to vector<16x16xf32>
      %561 = arith.mulf %560, %559 : vector<16x16xf32>
      %562 = arith.addf %532, %561 : vector<16x16xf32>
      %563 = vector.extract_strided_slice %558 {offsets = [1, 0], sizes = [16, 16], strides = [1, 1]} : vector<24x16xf32> to vector<16x16xf32>
      %564 = vector.broadcast %240 : f32 to vector<16x16xf32>
      %565 = arith.mulf %564, %563 : vector<16x16xf32>
      %566 = arith.addf %536, %565 : vector<16x16xf32>
      %567 = vector.extract_strided_slice %558 {offsets = [2, 0], sizes = [16, 16], strides = [1, 1]} : vector<24x16xf32> to vector<16x16xf32>
      %568 = vector.broadcast %247 : f32 to vector<16x16xf32>
      %569 = arith.mulf %568, %567 : vector<16x16xf32>
      %570 = arith.addf %540, %569 : vector<16x16xf32>
      %571 = vector.extract_strided_slice %558 {offsets = [3, 0], sizes = [16, 16], strides = [1, 1]} : vector<24x16xf32> to vector<16x16xf32>
      %572 = vector.broadcast %254 : f32 to vector<16x16xf32>
      %573 = arith.mulf %572, %571 : vector<16x16xf32>
      %574 = arith.addf %544, %573 : vector<16x16xf32>
      %575 = vector.extract_strided_slice %558 {offsets = [4, 0], sizes = [16, 16], strides = [1, 1]} : vector<24x16xf32> to vector<16x16xf32>
      %576 = vector.broadcast %261 : f32 to vector<16x16xf32>
      %577 = arith.mulf %576, %575 : vector<16x16xf32>
      %578 = arith.addf %548, %577 : vector<16x16xf32>
      %579 = vector.extract_strided_slice %558 {offsets = [5, 0], sizes = [16, 16], strides = [1, 1]} : vector<24x16xf32> to vector<16x16xf32>
      %580 = vector.broadcast %268 : f32 to vector<16x16xf32>
      %581 = arith.mulf %580, %579 : vector<16x16xf32>
      %582 = arith.addf %552, %581 : vector<16x16xf32>
      %583 = vector.extract_strided_slice %558 {offsets = [6, 0], sizes = [16, 16], strides = [1, 1]} : vector<24x16xf32> to vector<16x16xf32>
      %584 = vector.broadcast %275 : f32 to vector<16x16xf32>
      %585 = arith.mulf %584, %583 : vector<16x16xf32>
      %586 = arith.addf %556, %585 : vector<16x16xf32>
      %c1_185 = arith.constant 1 : index
      %c0_186 = arith.constant 0 : index
      %c3_187 = arith.constant 3 : index
      %587 = vector.load %arg7[%c1_185, %c0_186, %c3_187] : memref<2x24x128xf32, #tpu.memory_space<vmem>>, vector<1x24x16xf32>
      %588 = vector.shape_cast %587 : vector<1x24x16xf32> to vector<24x16xf32>
      %589 = vector.extract_strided_slice %588 {offsets = [0, 0], sizes = [16, 16], strides = [1, 1]} : vector<24x16xf32> to vector<16x16xf32>
      %590 = vector.broadcast %234 : f32 to vector<16x16xf32>
      %591 = arith.mulf %590, %589 : vector<16x16xf32>
      %592 = arith.addf %562, %591 : vector<16x16xf32>
      %593 = vector.extract_strided_slice %588 {offsets = [1, 0], sizes = [16, 16], strides = [1, 1]} : vector<24x16xf32> to vector<16x16xf32>
      %594 = vector.broadcast %241 : f32 to vector<16x16xf32>
      %595 = arith.mulf %594, %593 : vector<16x16xf32>
      %596 = arith.addf %566, %595 : vector<16x16xf32>
      %597 = vector.extract_strided_slice %588 {offsets = [2, 0], sizes = [16, 16], strides = [1, 1]} : vector<24x16xf32> to vector<16x16xf32>
      %598 = vector.broadcast %248 : f32 to vector<16x16xf32>
      %599 = arith.mulf %598, %597 : vector<16x16xf32>
      %600 = arith.addf %570, %599 : vector<16x16xf32>
      %601 = vector.extract_strided_slice %588 {offsets = [3, 0], sizes = [16, 16], strides = [1, 1]} : vector<24x16xf32> to vector<16x16xf32>
      %602 = vector.broadcast %255 : f32 to vector<16x16xf32>
      %603 = arith.mulf %602, %601 : vector<16x16xf32>
      %604 = arith.addf %574, %603 : vector<16x16xf32>
      %605 = vector.extract_strided_slice %588 {offsets = [4, 0], sizes = [16, 16], strides = [1, 1]} : vector<24x16xf32> to vector<16x16xf32>
      %606 = vector.broadcast %262 : f32 to vector<16x16xf32>
      %607 = arith.mulf %606, %605 : vector<16x16xf32>
      %608 = arith.addf %578, %607 : vector<16x16xf32>
      %609 = vector.extract_strided_slice %588 {offsets = [5, 0], sizes = [16, 16], strides = [1, 1]} : vector<24x16xf32> to vector<16x16xf32>
      %610 = vector.broadcast %269 : f32 to vector<16x16xf32>
      %611 = arith.mulf %610, %609 : vector<16x16xf32>
      %612 = arith.addf %582, %611 : vector<16x16xf32>
      %613 = vector.extract_strided_slice %588 {offsets = [6, 0], sizes = [16, 16], strides = [1, 1]} : vector<24x16xf32> to vector<16x16xf32>
      %614 = vector.broadcast %276 : f32 to vector<16x16xf32>
      %615 = arith.mulf %614, %613 : vector<16x16xf32>
      %616 = arith.addf %586, %615 : vector<16x16xf32>
      %c1_188 = arith.constant 1 : index
      %c0_189 = arith.constant 0 : index
      %c4_190 = arith.constant 4 : index
      %617 = vector.load %arg7[%c1_188, %c0_189, %c4_190] : memref<2x24x128xf32, #tpu.memory_space<vmem>>, vector<1x24x16xf32>
      %618 = vector.shape_cast %617 : vector<1x24x16xf32> to vector<24x16xf32>
      %619 = vector.extract_strided_slice %618 {offsets = [0, 0], sizes = [16, 16], strides = [1, 1]} : vector<24x16xf32> to vector<16x16xf32>
      %620 = vector.broadcast %235 : f32 to vector<16x16xf32>
      %621 = arith.mulf %620, %619 : vector<16x16xf32>
      %622 = arith.addf %592, %621 : vector<16x16xf32>
      %623 = vector.extract_strided_slice %618 {offsets = [1, 0], sizes = [16, 16], strides = [1, 1]} : vector<24x16xf32> to vector<16x16xf32>
      %624 = vector.broadcast %242 : f32 to vector<16x16xf32>
      %625 = arith.mulf %624, %623 : vector<16x16xf32>
      %626 = arith.addf %596, %625 : vector<16x16xf32>
      %627 = vector.extract_strided_slice %618 {offsets = [2, 0], sizes = [16, 16], strides = [1, 1]} : vector<24x16xf32> to vector<16x16xf32>
      %628 = vector.broadcast %249 : f32 to vector<16x16xf32>
      %629 = arith.mulf %628, %627 : vector<16x16xf32>
      %630 = arith.addf %600, %629 : vector<16x16xf32>
      %631 = vector.extract_strided_slice %618 {offsets = [3, 0], sizes = [16, 16], strides = [1, 1]} : vector<24x16xf32> to vector<16x16xf32>
      %632 = vector.broadcast %256 : f32 to vector<16x16xf32>
      %633 = arith.mulf %632, %631 : vector<16x16xf32>
      %634 = arith.addf %604, %633 : vector<16x16xf32>
      %635 = vector.extract_strided_slice %618 {offsets = [4, 0], sizes = [16, 16], strides = [1, 1]} : vector<24x16xf32> to vector<16x16xf32>
      %636 = vector.broadcast %263 : f32 to vector<16x16xf32>
      %637 = arith.mulf %636, %635 : vector<16x16xf32>
      %638 = arith.addf %608, %637 : vector<16x16xf32>
      %639 = vector.extract_strided_slice %618 {offsets = [5, 0], sizes = [16, 16], strides = [1, 1]} : vector<24x16xf32> to vector<16x16xf32>
      %640 = vector.broadcast %270 : f32 to vector<16x16xf32>
      %641 = arith.mulf %640, %639 : vector<16x16xf32>
      %642 = arith.addf %612, %641 : vector<16x16xf32>
      %643 = vector.extract_strided_slice %618 {offsets = [6, 0], sizes = [16, 16], strides = [1, 1]} : vector<24x16xf32> to vector<16x16xf32>
      %644 = vector.broadcast %277 : f32 to vector<16x16xf32>
      %645 = arith.mulf %644, %643 : vector<16x16xf32>
      %646 = arith.addf %616, %645 : vector<16x16xf32>
      %c1_191 = arith.constant 1 : index
      %c0_192 = arith.constant 0 : index
      %c5_193 = arith.constant 5 : index
      %647 = vector.load %arg7[%c1_191, %c0_192, %c5_193] : memref<2x24x128xf32, #tpu.memory_space<vmem>>, vector<1x24x16xf32>
      %648 = vector.shape_cast %647 : vector<1x24x16xf32> to vector<24x16xf32>
      %649 = vector.extract_strided_slice %648 {offsets = [0, 0], sizes = [16, 16], strides = [1, 1]} : vector<24x16xf32> to vector<16x16xf32>
      %650 = vector.broadcast %236 : f32 to vector<16x16xf32>
      %651 = arith.mulf %650, %649 : vector<16x16xf32>
      %652 = arith.addf %622, %651 : vector<16x16xf32>
      %653 = vector.extract_strided_slice %648 {offsets = [1, 0], sizes = [16, 16], strides = [1, 1]} : vector<24x16xf32> to vector<16x16xf32>
      %654 = vector.broadcast %243 : f32 to vector<16x16xf32>
      %655 = arith.mulf %654, %653 : vector<16x16xf32>
      %656 = arith.addf %626, %655 : vector<16x16xf32>
      %657 = vector.extract_strided_slice %648 {offsets = [2, 0], sizes = [16, 16], strides = [1, 1]} : vector<24x16xf32> to vector<16x16xf32>
      %658 = vector.broadcast %250 : f32 to vector<16x16xf32>
      %659 = arith.mulf %658, %657 : vector<16x16xf32>
      %660 = arith.addf %630, %659 : vector<16x16xf32>
      %661 = vector.extract_strided_slice %648 {offsets = [3, 0], sizes = [16, 16], strides = [1, 1]} : vector<24x16xf32> to vector<16x16xf32>
      %662 = vector.broadcast %257 : f32 to vector<16x16xf32>
      %663 = arith.mulf %662, %661 : vector<16x16xf32>
      %664 = arith.addf %634, %663 : vector<16x16xf32>
      %665 = vector.extract_strided_slice %648 {offsets = [4, 0], sizes = [16, 16], strides = [1, 1]} : vector<24x16xf32> to vector<16x16xf32>
      %666 = vector.broadcast %264 : f32 to vector<16x16xf32>
      %667 = arith.mulf %666, %665 : vector<16x16xf32>
      %668 = arith.addf %638, %667 : vector<16x16xf32>
      %669 = vector.extract_strided_slice %648 {offsets = [5, 0], sizes = [16, 16], strides = [1, 1]} : vector<24x16xf32> to vector<16x16xf32>
      %670 = vector.broadcast %271 : f32 to vector<16x16xf32>
      %671 = arith.mulf %670, %669 : vector<16x16xf32>
      %672 = arith.addf %642, %671 : vector<16x16xf32>
      %673 = vector.extract_strided_slice %648 {offsets = [6, 0], sizes = [16, 16], strides = [1, 1]} : vector<24x16xf32> to vector<16x16xf32>
      %674 = vector.broadcast %278 : f32 to vector<16x16xf32>
      %675 = arith.mulf %674, %673 : vector<16x16xf32>
      %676 = arith.addf %646, %675 : vector<16x16xf32>
      %c1_194 = arith.constant 1 : index
      %c0_195 = arith.constant 0 : index
      %c6_196 = arith.constant 6 : index
      %677 = vector.load %arg7[%c1_194, %c0_195, %c6_196] : memref<2x24x128xf32, #tpu.memory_space<vmem>>, vector<1x24x16xf32>
      %678 = vector.shape_cast %677 : vector<1x24x16xf32> to vector<24x16xf32>
      %679 = vector.extract_strided_slice %678 {offsets = [0, 0], sizes = [16, 16], strides = [1, 1]} : vector<24x16xf32> to vector<16x16xf32>
      %680 = vector.broadcast %237 : f32 to vector<16x16xf32>
      %681 = arith.mulf %680, %679 : vector<16x16xf32>
      %682 = arith.addf %652, %681 : vector<16x16xf32>
      %683 = vector.extract_strided_slice %678 {offsets = [1, 0], sizes = [16, 16], strides = [1, 1]} : vector<24x16xf32> to vector<16x16xf32>
      %684 = vector.broadcast %244 : f32 to vector<16x16xf32>
      %685 = arith.mulf %684, %683 : vector<16x16xf32>
      %686 = arith.addf %656, %685 : vector<16x16xf32>
      %687 = vector.extract_strided_slice %678 {offsets = [2, 0], sizes = [16, 16], strides = [1, 1]} : vector<24x16xf32> to vector<16x16xf32>
      %688 = vector.broadcast %251 : f32 to vector<16x16xf32>
      %689 = arith.mulf %688, %687 : vector<16x16xf32>
      %690 = arith.addf %660, %689 : vector<16x16xf32>
      %691 = vector.extract_strided_slice %678 {offsets = [3, 0], sizes = [16, 16], strides = [1, 1]} : vector<24x16xf32> to vector<16x16xf32>
      %692 = vector.broadcast %258 : f32 to vector<16x16xf32>
      %693 = arith.mulf %692, %691 : vector<16x16xf32>
      %694 = arith.addf %664, %693 : vector<16x16xf32>
      %695 = vector.extract_strided_slice %678 {offsets = [4, 0], sizes = [16, 16], strides = [1, 1]} : vector<24x16xf32> to vector<16x16xf32>
      %696 = vector.broadcast %265 : f32 to vector<16x16xf32>
      %697 = arith.mulf %696, %695 : vector<16x16xf32>
      %698 = arith.addf %668, %697 : vector<16x16xf32>
      %699 = vector.extract_strided_slice %678 {offsets = [5, 0], sizes = [16, 16], strides = [1, 1]} : vector<24x16xf32> to vector<16x16xf32>
      %700 = vector.broadcast %272 : f32 to vector<16x16xf32>
      %701 = arith.mulf %700, %699 : vector<16x16xf32>
      %702 = arith.addf %672, %701 : vector<16x16xf32>
      %703 = vector.extract_strided_slice %678 {offsets = [6, 0], sizes = [16, 16], strides = [1, 1]} : vector<24x16xf32> to vector<16x16xf32>
      %704 = vector.broadcast %279 : f32 to vector<16x16xf32>
      %705 = arith.mulf %704, %703 : vector<16x16xf32>
      %706 = arith.addf %676, %705 : vector<16x16xf32>
      %707 = arith.addf %682, %686 : vector<16x16xf32>
      %708 = arith.addf %690, %694 : vector<16x16xf32>
      %709 = arith.addf %698, %702 : vector<16x16xf32>
      %710 = arith.addf %707, %708 : vector<16x16xf32>
      %711 = arith.addf %709, %706 : vector<16x16xf32>
      %712 = arith.addf %710, %711 : vector<16x16xf32>
      %713 = arith.negf %712 : vector<16x16xf32>
      %714 = math.exp %713 : vector<16x16xf32>
      %cst_197 = arith.constant 1.000000e+00 : f32
      %715 = vector.broadcast %cst_197 : f32 to vector<16x16xf32>
      %716 = arith.addf %715, %714 : vector<16x16xf32>
      %717 = arith.divf %715, %716 : vector<16x16xf32>
      %718 = vector.extract_strided_slice %717 {offsets = [0, 0], sizes = [1, 16], strides = [1, 1]} : vector<16x16xf32> to vector<1x16xf32>
      %c0_198 = arith.constant 0 : index
      %c0_199 = arith.constant 0 : index
      %c0_200 = arith.constant 0 : index
      %719 = vector.load %arg4[%c0_198, %c0_199, %c0_200] : memref<1x1x256xf32, #tpu.memory_space<vmem>>, vector<1x1x16xf32>
      %720 = vector.shape_cast %719 : vector<1x1x16xf32> to vector<1x16xf32>
      %721 = vector.shape_cast %718 : vector<1x16xf32> to vector<1x1x16xf32>
      tpu.vector_store %arg4[%c0_198, %c0_199, %c0_200], %721 {strides = array<i32>} : memref<1x1x256xf32, #tpu.memory_space<vmem>>, vector<1x1x16xf32>,
      %722 = vector.extract_strided_slice %717 {offsets = [1, 0], sizes = [1, 16], strides = [1, 1]} : vector<16x16xf32> to vector<1x16xf32>
      %c0_201 = arith.constant 0 : index
      %c0_202 = arith.constant 0 : index
      %c16_203 = arith.constant 16 : index
      %723 = vector.load %arg4[%c0_201, %c0_202, %c16_203] : memref<1x1x256xf32, #tpu.memory_space<vmem>>, vector<1x1x16xf32>
      %724 = vector.shape_cast %723 : vector<1x1x16xf32> to vector<1x16xf32>
      %725 = vector.shape_cast %722 : vector<1x16xf32> to vector<1x1x16xf32>
      tpu.vector_store %arg4[%c0_201, %c0_202, %c16_203], %725 {strides = array<i32>} : memref<1x1x256xf32, #tpu.memory_space<vmem>>, vector<1x1x16xf32>,
      %726 = vector.extract_strided_slice %717 {offsets = [2, 0], sizes = [1, 16], strides = [1, 1]} : vector<16x16xf32> to vector<1x16xf32>
      %c0_204 = arith.constant 0 : index
      %c0_205 = arith.constant 0 : index
      %c32_206 = arith.constant 32 : index
      %727 = vector.load %arg4[%c0_204, %c0_205, %c32_206] : memref<1x1x256xf32, #tpu.memory_space<vmem>>, vector<1x1x16xf32>
      %728 = vector.shape_cast %727 : vector<1x1x16xf32> to vector<1x16xf32>
      %729 = vector.shape_cast %726 : vector<1x16xf32> to vector<1x1x16xf32>
      tpu.vector_store %arg4[%c0_204, %c0_205, %c32_206], %729 {strides = array<i32>} : memref<1x1x256xf32, #tpu.memory_space<vmem>>, vector<1x1x16xf32>,
      %730 = vector.extract_strided_slice %717 {offsets = [3, 0], sizes = [1, 16], strides = [1, 1]} : vector<16x16xf32> to vector<1x16xf32>
      %c0_207 = arith.constant 0 : index
      %c0_208 = arith.constant 0 : index
      %c48_209 = arith.constant 48 : index
      %731 = vector.load %arg4[%c0_207, %c0_208, %c48_209] : memref<1x1x256xf32, #tpu.memory_space<vmem>>, vector<1x1x16xf32>
      %732 = vector.shape_cast %731 : vector<1x1x16xf32> to vector<1x16xf32>
      %733 = vector.shape_cast %730 : vector<1x16xf32> to vector<1x1x16xf32>
      tpu.vector_store %arg4[%c0_207, %c0_208, %c48_209], %733 {strides = array<i32>} : memref<1x1x256xf32, #tpu.memory_space<vmem>>, vector<1x1x16xf32>,
      %734 = vector.extract_strided_slice %717 {offsets = [4, 0], sizes = [1, 16], strides = [1, 1]} : vector<16x16xf32> to vector<1x16xf32>
      %c0_210 = arith.constant 0 : index
      %c0_211 = arith.constant 0 : index
      %c64_212 = arith.constant 64 : index
      %735 = vector.load %arg4[%c0_210, %c0_211, %c64_212] : memref<1x1x256xf32, #tpu.memory_space<vmem>>, vector<1x1x16xf32>
      %736 = vector.shape_cast %735 : vector<1x1x16xf32> to vector<1x16xf32>
      %737 = vector.shape_cast %734 : vector<1x16xf32> to vector<1x1x16xf32>
      tpu.vector_store %arg4[%c0_210, %c0_211, %c64_212], %737 {strides = array<i32>} : memref<1x1x256xf32, #tpu.memory_space<vmem>>, vector<1x1x16xf32>,
      %738 = vector.extract_strided_slice %717 {offsets = [5, 0], sizes = [1, 16], strides = [1, 1]} : vector<16x16xf32> to vector<1x16xf32>
      %c0_213 = arith.constant 0 : index
      %c0_214 = arith.constant 0 : index
      %c80_215 = arith.constant 80 : index
      %739 = vector.load %arg4[%c0_213, %c0_214, %c80_215] : memref<1x1x256xf32, #tpu.memory_space<vmem>>, vector<1x1x16xf32>
      %740 = vector.shape_cast %739 : vector<1x1x16xf32> to vector<1x16xf32>
      %741 = vector.shape_cast %738 : vector<1x16xf32> to vector<1x1x16xf32>
      tpu.vector_store %arg4[%c0_213, %c0_214, %c80_215], %741 {strides = array<i32>} : memref<1x1x256xf32, #tpu.memory_space<vmem>>, vector<1x1x16xf32>,
      %742 = vector.extract_strided_slice %717 {offsets = [6, 0], sizes = [1, 16], strides = [1, 1]} : vector<16x16xf32> to vector<1x16xf32>
      %c0_216 = arith.constant 0 : index
      %c0_217 = arith.constant 0 : index
      %c96_218 = arith.constant 96 : index
      %743 = vector.load %arg4[%c0_216, %c0_217, %c96_218] : memref<1x1x256xf32, #tpu.memory_space<vmem>>, vector<1x1x16xf32>
      %744 = vector.shape_cast %743 : vector<1x1x16xf32> to vector<1x16xf32>
      %745 = vector.shape_cast %742 : vector<1x16xf32> to vector<1x1x16xf32>
      tpu.vector_store %arg4[%c0_216, %c0_217, %c96_218], %745 {strides = array<i32>} : memref<1x1x256xf32, #tpu.memory_space<vmem>>, vector<1x1x16xf32>,
      %746 = vector.extract_strided_slice %717 {offsets = [7, 0], sizes = [1, 16], strides = [1, 1]} : vector<16x16xf32> to vector<1x16xf32>
      %c0_219 = arith.constant 0 : index
      %c0_220 = arith.constant 0 : index
      %c112 = arith.constant 112 : index
      %747 = vector.load %arg4[%c0_219, %c0_220, %c112] : memref<1x1x256xf32, #tpu.memory_space<vmem>>, vector<1x1x16xf32>
      %748 = vector.shape_cast %747 : vector<1x1x16xf32> to vector<1x16xf32>
      %749 = vector.shape_cast %746 : vector<1x16xf32> to vector<1x1x16xf32>
      tpu.vector_store %arg4[%c0_219, %c0_220, %c112], %749 {strides = array<i32>} : memref<1x1x256xf32, #tpu.memory_space<vmem>>, vector<1x1x16xf32>,
      %750 = vector.extract_strided_slice %717 {offsets = [8, 0], sizes = [1, 16], strides = [1, 1]} : vector<16x16xf32> to vector<1x16xf32>
      %c0_221 = arith.constant 0 : index
      %c0_222 = arith.constant 0 : index
      %c128 = arith.constant 128 : index
      %751 = vector.load %arg4[%c0_221, %c0_222, %c128] : memref<1x1x256xf32, #tpu.memory_space<vmem>>, vector<1x1x16xf32>
      %752 = vector.shape_cast %751 : vector<1x1x16xf32> to vector<1x16xf32>
      %753 = vector.shape_cast %750 : vector<1x16xf32> to vector<1x1x16xf32>
      tpu.vector_store %arg4[%c0_221, %c0_222, %c128], %753 {strides = array<i32>} : memref<1x1x256xf32, #tpu.memory_space<vmem>>, vector<1x1x16xf32>,
      %754 = vector.extract_strided_slice %717 {offsets = [9, 0], sizes = [1, 16], strides = [1, 1]} : vector<16x16xf32> to vector<1x16xf32>
      %c0_223 = arith.constant 0 : index
      %c0_224 = arith.constant 0 : index
      %c144 = arith.constant 144 : index
      %755 = vector.load %arg4[%c0_223, %c0_224, %c144] : memref<1x1x256xf32, #tpu.memory_space<vmem>>, vector<1x1x16xf32>
      %756 = vector.shape_cast %755 : vector<1x1x16xf32> to vector<1x16xf32>
      %757 = vector.shape_cast %754 : vector<1x16xf32> to vector<1x1x16xf32>
      tpu.vector_store %arg4[%c0_223, %c0_224, %c144], %757 {strides = array<i32>} : memref<1x1x256xf32, #tpu.memory_space<vmem>>, vector<1x1x16xf32>,
      %758 = vector.extract_strided_slice %717 {offsets = [10, 0], sizes = [1, 16], strides = [1, 1]} : vector<16x16xf32> to vector<1x16xf32>
      %c0_225 = arith.constant 0 : index
      %c0_226 = arith.constant 0 : index
      %c160 = arith.constant 160 : index
      %759 = vector.load %arg4[%c0_225, %c0_226, %c160] : memref<1x1x256xf32, #tpu.memory_space<vmem>>, vector<1x1x16xf32>
      %760 = vector.shape_cast %759 : vector<1x1x16xf32> to vector<1x16xf32>
      %761 = vector.shape_cast %758 : vector<1x16xf32> to vector<1x1x16xf32>
      tpu.vector_store %arg4[%c0_225, %c0_226, %c160], %761 {strides = array<i32>} : memref<1x1x256xf32, #tpu.memory_space<vmem>>, vector<1x1x16xf32>,
      %762 = vector.extract_strided_slice %717 {offsets = [11, 0], sizes = [1, 16], strides = [1, 1]} : vector<16x16xf32> to vector<1x16xf32>
      %c0_227 = arith.constant 0 : index
      %c0_228 = arith.constant 0 : index
      %c176 = arith.constant 176 : index
      %763 = vector.load %arg4[%c0_227, %c0_228, %c176] : memref<1x1x256xf32, #tpu.memory_space<vmem>>, vector<1x1x16xf32>
      %764 = vector.shape_cast %763 : vector<1x1x16xf32> to vector<1x16xf32>
      %765 = vector.shape_cast %762 : vector<1x16xf32> to vector<1x1x16xf32>
      tpu.vector_store %arg4[%c0_227, %c0_228, %c176], %765 {strides = array<i32>} : memref<1x1x256xf32, #tpu.memory_space<vmem>>, vector<1x1x16xf32>,
      %766 = vector.extract_strided_slice %717 {offsets = [12, 0], sizes = [1, 16], strides = [1, 1]} : vector<16x16xf32> to vector<1x16xf32>
      %c0_229 = arith.constant 0 : index
      %c0_230 = arith.constant 0 : index
      %c192 = arith.constant 192 : index
      %767 = vector.load %arg4[%c0_229, %c0_230, %c192] : memref<1x1x256xf32, #tpu.memory_space<vmem>>, vector<1x1x16xf32>
      %768 = vector.shape_cast %767 : vector<1x1x16xf32> to vector<1x16xf32>
      %769 = vector.shape_cast %766 : vector<1x16xf32> to vector<1x1x16xf32>
      tpu.vector_store %arg4[%c0_229, %c0_230, %c192], %769 {strides = array<i32>} : memref<1x1x256xf32, #tpu.memory_space<vmem>>, vector<1x1x16xf32>,
      %770 = vector.extract_strided_slice %717 {offsets = [13, 0], sizes = [1, 16], strides = [1, 1]} : vector<16x16xf32> to vector<1x16xf32>
      %c0_231 = arith.constant 0 : index
      %c0_232 = arith.constant 0 : index
      %c208 = arith.constant 208 : index
      %771 = vector.load %arg4[%c0_231, %c0_232, %c208] : memref<1x1x256xf32, #tpu.memory_space<vmem>>, vector<1x1x16xf32>
      %772 = vector.shape_cast %771 : vector<1x1x16xf32> to vector<1x16xf32>
      %773 = vector.shape_cast %770 : vector<1x16xf32> to vector<1x1x16xf32>
      tpu.vector_store %arg4[%c0_231, %c0_232, %c208], %773 {strides = array<i32>} : memref<1x1x256xf32, #tpu.memory_space<vmem>>, vector<1x1x16xf32>,
      %774 = vector.extract_strided_slice %717 {offsets = [14, 0], sizes = [1, 16], strides = [1, 1]} : vector<16x16xf32> to vector<1x16xf32>
      %c0_233 = arith.constant 0 : index
      %c0_234 = arith.constant 0 : index
      %c224 = arith.constant 224 : index
      %775 = vector.load %arg4[%c0_233, %c0_234, %c224] : memref<1x1x256xf32, #tpu.memory_space<vmem>>, vector<1x1x16xf32>
      %776 = vector.shape_cast %775 : vector<1x1x16xf32> to vector<1x16xf32>
      %777 = vector.shape_cast %774 : vector<1x16xf32> to vector<1x1x16xf32>
      tpu.vector_store %arg4[%c0_233, %c0_234, %c224], %777 {strides = array<i32>} : memref<1x1x256xf32, #tpu.memory_space<vmem>>, vector<1x1x16xf32>,
      %778 = vector.extract_strided_slice %717 {offsets = [15, 0], sizes = [1, 16], strides = [1, 1]} : vector<16x16xf32> to vector<1x16xf32>
      %c0_235 = arith.constant 0 : index
      %c0_236 = arith.constant 0 : index
      %c240 = arith.constant 240 : index
      %779 = vector.load %arg4[%c0_235, %c0_236, %c240] : memref<1x1x256xf32, #tpu.memory_space<vmem>>, vector<1x1x16xf32>
      %780 = vector.shape_cast %779 : vector<1x1x16xf32> to vector<1x16xf32>
      %781 = vector.shape_cast %778 : vector<1x16xf32> to vector<1x1x16xf32>
      tpu.vector_store %arg4[%c0_235, %c0_236, %c240], %781 {strides = array<i32>} : memref<1x1x256xf32, #tpu.memory_space<vmem>>, vector<1x1x16xf32>,
    } else {
    }
    return
  }
  func.func @transform_0(%arg0: i32, %arg1: i32) -> i32 {
    %c0_i32 = arith.constant 0 : i32
    %c0_i32_0 = arith.constant 0 : i32
    return %c0_i32 : i32
  }
  func.func @transform_1(%arg0: i32, %arg1: i32) -> (i32, i32, i32) {
    %c0_i32 = arith.constant 0 : i32
    %c0_i32_0 = arith.constant 0 : i32
    return %arg0, %arg1, %c0_i32 : i32, i32, i32
  }
  func.func @transform_2(%arg0: i32, %arg1: i32) -> (i32, i32, i32) {
    %c0_i32 = arith.constant 0 : i32
    %c0_i32_0 = arith.constant 0 : i32
    %c0_i32_1 = arith.constant 0 : i32
    return %arg0, %c0_i32, %c0_i32_0 : i32, i32, i32
  }
}

</mosaic_0001>

<llo_original>
// kernel: tpu_custom_call.1
$region0: #{tpu_custom_call.1}
  #allocation0 [shape = 'u32[]', space=smem, size = 0x4, offset = 0x4, fixed_abs, tag = 'smem constant byte address 0x4 - core index']
  #allocation1 [shape = 'u32[144,128]{1,0:T(1,128)}', space=vmem, size = 0x12000, scoped, tag = 'internal scratch']
  #allocation2 [shape = 'f32[1,256]{1,0:T(1,128)}', space=vmem, size = 0x400, scoped, tag = 'scratch operand']
  #allocation3 [shape = 'f32[1,256]{1,0:T(1,128)}', space=vmem, size = 0x400, scoped, tag = 'scratch operand']
  #allocation4 [shape = 'f32[2,24,128]{2,1,0:T(8,128)}', space=vmem, size = 0x6000, scoped, tag = 'scratch operand']
  %s0 = inlined_call_operand.hbm [shape: f32[98], index: 0, kind: input, shape index: {}]
  %s1 = inlined_call_operand.hbm [shape: f32[2,4,256], index: 1, kind: input, shape index: {}]
  %s2 = inlined_call_operand.hbm [shape: f32[2,1,256], index: 2, kind: output, shape index: {}]
  %s3 = sld [smem:[#allocation0]]
  $region57: #{tpu_custom_call.1} parent=0
    _
  %s5 = ssub.s32 1, %s3
  %s6 = scalar_select 0, %s5, %s3
  $region1: #{tpu_custom_call.1} parent=0
    #allocation5 [shape = 'u8[512]{0}', space=smem, size = 0x200, scoped, tag = 'input window, operand 0, single buffered']
    #allocation6 [shape = 's32[2]{0}', space=sflag, size = 0x8, scoped, tag = 'scoped memory for tpu_custom_call.1']
    #allocation7 [shape = 's32[2]{0}', space=sflag, size = 0x8, scoped, tag = 'scoped memory for tpu_custom_call.1']
    #allocation8 [shape = 's32[2]{0}', space=sflag, size = 0x8, scoped, tag = 'scoped memory for tpu_custom_call.1']
    #allocation9 [shape = 'u8[8192]{0}', space=vmem, size = 0x2000, scoped, tag = 'input window, operand 1']
    #allocation10 [shape = 'u8[2048]{0}', space=vmem, size = 0x800, scoped, tag = 'output window, operand 0']
    %7 = vsyncpa [#allocation8], 0
    %8 = vsyncpa [#allocation6], 0
    %s9 = scalar_lea.sflag [#allocation6], 1
    %10 = vsyncpa %s9, 0
    %11 = vsyncpa [#allocation7], 0
    %s12 = scalar_lea.sflag [#allocation7], 1
    %13 = vsyncpa %s12, 0
    loop: start=0, step=1, limit=4
    $region2: #{tpu_custom_call.1} parent=1 // loop_pre_header
      _
    $region3: #{tpu_custom_call.1} parent=1 // loop_header
      %s15 = sphi 0, %s19
      %p16 = scmp.ge.s32.totalorder %s15, 4
      %s22 = sphi 0, %s34
      %s23 = sphi 0, %s30
      %s24 = sphi 0, %s22
      %s25 = sphi 0, %s23
      %s26 = sphi 0, %s24
      %s27 = sphi 0, %s25
      %s35 = sphi 0, %s35
      %s37 = sphi 0, %s35
      %s38 = sphi 0, %s37
      %s52 = sphi 0, %s38
      %s60 = sphi 0, %s62
      %s63 = sphi 0, %s60
      %s64 = sphi 0, %s63
      %s80 = sphi 0, %s64
      %s86 = sphi 0, %s88
      %s89 = sphi 0, %s86
      %s90 = sphi 0, %s89
      %s106 = sphi 0, %s90
    $region4: #{tpu_custom_call.1} parent=1 // loop_header_branch
      %18 = sbr.rel (%p16) target = $region8
    $region5: #{tpu_custom_call.1} parent=1 // loop_body
      %s20 = ssub.s32 %s15, 1
      %s21 = ssub.s32 %s15, 2
      %s28 = sadd.s32 1, %s23
      %p29 = scmp.ge.s32.totalorder %s28, 1
      %s30 = scalar_select %p29, 0, %s28
      %s31 = sadd.s32 1, %s22
      %s32 = scalar_select %p29, %s31, %s22
      %p33 = scmp.ge.s32.totalorder %s32, 2
      %s34 = scalar_select %p33, 0, %s32
      %s36 = sadd.s32 %s35, 1
      %p39 = scmp.eq.s32.totalorder %s15, 1
      %p40 = scmp.ne.s32.totalorder %s35, %s37
      %p41 = scmp.eq.s32.totalorder %s15, 0
      %p42 = por %p40, %p41
      %p43 = scmp.ne.s32.totalorder %s35, %s37
      %p44 = scmp.eq.s32.totalorder %s20, 1
      %p45 = por %p43, %p44
      %p46 = scmp.ne.s32.totalorder %s37, %s38
      %p47 = scmp.eq.s32.totalorder %s20, 0
      %p48 = por %p46, %p47
      %p49 = scmp.ne.s32.totalorder %s37, %s38
      %p50 = scmp.eq.s32.totalorder %s21, 1
      %p51 = por %p49, %p50
      %p53 = scmp.ne.s32.totalorder %s38, %s52
      %p54 = scmp.eq.s32.totalorder %s21, 0
      %p55 = por %p53, %p54
      %s56 = ssub.s32 %s22, %s34
      %s57 = ssub.s32 %s23, %s30
      %s58 = sor.u32 %s56, %s57
      %p59 = scmp.eq.s32.totalorder %s58, 0
      %s61 = sadd.s32 %s60, 1
      %s62 = scalar_select %p59, %s60, %s61
      %p65 = pneg %p59
      %p66 = scmp.eq.s32.totalorder %s15, 1
      %p67 = por %p65, %p66
      %p68 = scmp.ne.s32.totalorder %s60, %s63
      %p69 = scmp.eq.s32.totalorder %s15, 0
      %p70 = por %p68, %p69
      %p71 = scmp.ne.s32.totalorder %s60, %s63
      %p72 = scmp.eq.s32.totalorder %s20, 1
      %p73 = por %p71, %p72
      %p74 = scmp.ne.s32.totalorder %s63, %s64
      %p75 = scmp.eq.s32.totalorder %s20, 0
      %p76 = por %p74, %p75
      %p77 = scmp.ne.s32.totalorder %s63, %s64
      %p78 = scmp.eq.s32.totalorder %s21, 1
      %p79 = por %p77, %p78
      %p81 = scmp.ne.s32.totalorder %s64, %s80
      %p82 = scmp.eq.s32.totalorder %s21, 0
      %p83 = por %p81, %p82
      %s84 = ssub.s32 %s22, %s34
      %p85 = scmp.eq.s32.totalorder %s84, 0
      %s87 = sadd.s32 %s86, 1
      %s88 = scalar_select %p85, %s86, %s87
      %p91 = pneg %p85
      %p92 = scmp.eq.s32.totalorder %s15, 1
      %p93 = por %p91, %p92
      %p94 = scmp.ne.s32.totalorder %s86, %s89
      %p95 = scmp.eq.s32.totalorder %s15, 0
      %p96 = por %p94, %p95
      %p97 = scmp.ne.s32.totalorder %s86, %s89
      %p98 = scmp.eq.s32.totalorder %s20, 1
      %p99 = por %p97, %p98
      %p100 = scmp.ne.s32.totalorder %s89, %s90
      %p101 = scmp.eq.s32.totalorder %s20, 0
      %p102 = por %p100, %p101
      %p103 = scmp.ne.s32.totalorder %s89, %s90
      %p104 = scmp.eq.s32.totalorder %s21, 1
      %p105 = por %p103, %p104
      %p107 = scmp.ne.s32.totalorder %s90, %s106
      %p108 = scmp.eq.s32.totalorder %s21, 0
      %p109 = por %p107, %p108
      %p110 = scmp.le.s32.totalorder 1, %s15
      %p111 = scmp.lt.s32.totalorder %s15, 3
      %p112 = pnand %p110, %p111
      %p113 = pneg %p112
      // Predicated region
      $region9: #{tpu_custom_call.1} parent=5 // pred_check
        _
      $region10: #{tpu_custom_call.1} parent=5 // pred_check_branch
        %115 = sbr.rel (%p112) target = $region12
      $region11: #{tpu_custom_call.1} parent=5 // pred_region
        %s116 = ssub.s32 %s15, 1
        // Predicated region
        $region13: #{tpu_custom_call.1} parent=11 // pred_check
          %p117 = pneg %p48
        $region14: #{tpu_custom_call.1} parent=11 // pred_check_branch
          %119 = sbr.rel (%p117) target = $region16
        $region15: #{tpu_custom_call.1} parent=11 // pred_region
          %s121 = ssub.s32 16, 16
          %122 = vsyncadd [#allocation8], %s121
          %125 = dma.hbm_to_smem %s0, 16, [#allocation5], [#allocation8]
        $region16: #{tpu_custom_call.1} parent=11 // pred_fallthru
          _
      $region12: #{tpu_custom_call.1} parent=5 // pred_fallthru
        _
      %p126 = scmp.lt.s32.totalorder %s15, 2
      // Predicated region
      $region17: #{tpu_custom_call.1} parent=5 // pred_check
        %p127 = pneg %p126
      $region18: #{tpu_custom_call.1} parent=5 // pred_check_branch
        %129 = sbr.rel (%p127) target = $region20
      $region19: #{tpu_custom_call.1} parent=5 // pred_region
        // Predicated region
        $region21: #{tpu_custom_call.1} parent=19 // pred_check
          %p130 = pneg %p70
        $region22: #{tpu_custom_call.1} parent=19 // pred_check_branch
          %132 = sbr.rel (%p130) target = $region24
        $region23: #{tpu_custom_call.1} parent=19 // pred_region
          %s133 = sand.u32 %s60, 1
          %s134 = scalar_lea.sflag [#allocation6], %s133
          %s135 = sand.u32 %s60, 1
          %s136 = smul.addr %s135, 8
          %s137 = scalar_lea.vmem [#allocation9], %s136
          %s139 = ssub.s32 128, 128
          %140 = vsyncadd %s134, %s139
          %s141 = smul.addr %s23, 2
          %s142 = smul.addr %s22, 2
          %s143 = sadd.s32 %s141, %s142
          %s144 = smul.addr %s143, 64
          %s145 = scalar_lea.hbm %s1, %s144
          %s147 = sshll.u32 %s137, 4
          %s148 = int_to_ptr.vmem [resolvable:$true] %s147
          %150 = dma.hbm_to_vmem [thread:$0]  %s145, 128, %s148, %s134
        $region24: #{tpu_custom_call.1} parent=19 // pred_fallthru
          _
      $region20: #{tpu_custom_call.1} parent=5 // pred_fallthru
        _
      %p151 = scmp.le.s32.totalorder 1, %s15
      %p152 = scmp.lt.s32.totalorder %s15, 3
      %p153 = pnand %p151, %p152
      %p154 = pneg %p153
      // Predicated region
      $region25: #{tpu_custom_call.1} parent=5 // pred_check
        _
      $region26: #{tpu_custom_call.1} parent=5 // pred_check_branch
        %156 = sbr.rel (%p153) target = $region28
      $region27: #{tpu_custom_call.1} parent=5 // pred_region
        %s157 = ssub.s32 %s15, 1
        // Predicated region
        $region29: #{tpu_custom_call.1} parent=27 // pred_check
          %p158 = pneg %p48
        $region30: #{tpu_custom_call.1} parent=27 // pred_check_branch
          %160 = sbr.rel (%p158) target = $region32
        $region31: #{tpu_custom_call.1} parent=27 // pred_region
          %161 = dma.done [#allocation8], 16
        $region32: #{tpu_custom_call.1} parent=27 // pred_fallthru
          _
        %s162 = sand.u32 %s63, 1
        %s163 = scalar_lea.sflag [#allocation6], %s162
        %s164 = sand.u32 %s63, 1
        %s165 = smul.addr %s164, 8
        %s166 = scalar_lea.vmem [#allocation9], %s165
        // Predicated region
        $region33: #{tpu_custom_call.1} parent=27 // pred_check
          %p167 = pneg %p76
        $region34: #{tpu_custom_call.1} parent=27 // pred_check_branch
          %169 = sbr.rel (%p167) target = $region36
        $region35: #{tpu_custom_call.1} parent=27 // pred_region
          %170 = dma.done %s163, 128
        $region36: #{tpu_custom_call.1} parent=27 // pred_fallthru
          _
        %171 = sfence
        %p172 = pneg %p48
        %p173 = pneg %p45
        %s174 = sand.u32 %s63, 1
        %s175 = scalar_lea.sflag [#allocation6], %s174
        %s176 = sand.u32 %s63, 1
        %s177 = smul.addr %s176, 8
        %s178 = scalar_lea.vmem [#allocation9], %s177
        %p179 = pneg %p76
        %p180 = pneg %p73
        %p181 = pneg %p102
        %p182 = pneg %p99
        %s183 = sand.u32 %s89, 1
        %s184 = scalar_lea.sflag [#allocation7], %s183
        %s185 = sand.u32 %s89, 1
        %s186 = smul.addr %s185, 2
        %s187 = scalar_lea.vmem [#allocation10], %s186
        %p188 = scmp.eq.s32.totalorder %s25, 0
        // Predicated region
        $region37: #{tpu_custom_call.1} parent=27 // pred_check
          %p189 = pneg %p188
        $region38: #{tpu_custom_call.1} parent=27 // pred_check_branch
          %191 = sbr.rel (%p189) target = $region40
        $region39: #{tpu_custom_call.1} parent=27 // pred_region
          %v192 = vlaneseq
          %vm193 = vcmp.ge.s32.totalorder %v192, 0
          %vm194 = vcmp.lt.s32.totalorder %v192, 256
          %vm195 = vmand %vm193, %vm194
          %196 = vst.msk [vmem:[#allocation2] sm:$0x3] %vm195, 0.0
          %197 = vst.msk [vmem:[#allocation3] sm:$0x3] %vm195, -inf
        $region40: #{tpu_custom_call.1} parent=27 // pred_fallthru
          _
        %v198 = vld [vmem:[#allocation2] sm:$0x3]
        %v199 = vld [vmem:[#allocation3] sm:$0x3]
        %v200 = vld [vmem:[%s166] sm:$0xff]
        %v202 = vcombine.high %v200, %v200
        %vm204 = vcmask 1043456
        %v205 = vsel %vm204, %v200, 0.0
        %v206 = vrot.slane %v205, 4
        %v207 = vadd.f32 %v205, %v206
        %v208 = vrot.slane %v207, 2
        %v209 = vadd.f32 %v207, %v208
        %v210 = vrot.slane %v209, 1
        %v211 = vadd.f32 %v209, %v210
        %v212 = vsel %vm204, %v202, 0.0
        %v213 = vrot.slane %v212, 4
        %v214 = vadd.f32 %v212, %v213
        %v215 = vrot.slane %v214, 2
        %v216 = vadd.f32 %v214, %v215
        %v217 = vrot.slane %v216, 1
        %v218 = vadd.f32 %v216, %v217
        %v221 = vcombine.low %v211, %v218
        %v223 = vunpack.c.l.s4 1966171168
        %v224 = vunpack.c.0.s8 %v223
        %v225 = vlaneseq
        %v226 = vshrl.u32 %v225, 7
        %v227 = vsub.s32 %v224, %v226
        %v228 = vrot.slane %v221, %v227
        %v230 = vunpack.c.l.s4 1966171168
        %v231 = vunpack.c.0.s8 %v230
        %v232 = vlaneseq
        %v233 = vshrl.u32 %v232, 7
        %v234 = vsub.s32 %v231, %v233
        %v235 = vrot.slane %v228, %v234
        %v237 = vadd.f32 %v198, %v235
        %v238 = vsel %vm204, %v200, -inf
        %v239 = vrot.slane %v238, 4
        %v240 = vmax.f32 %v238, %v239
        %v241 = vrot.slane %v240, 2
        %v242 = vmax.f32 %v240, %v241
        %v243 = vrot.slane %v242, 1
        %v244 = vmax.f32 %v242, %v243
        %v245 = vsel %vm204, %v202, -inf
        %v246 = vrot.slane %v245, 4
        %v247 = vmax.f32 %v245, %v246
        %v248 = vrot.slane %v247, 2
        %v249 = vmax.f32 %v247, %v248
        %v250 = vrot.slane %v249, 1
        %v251 = vmax.f32 %v249, %v250
        %v254 = vcombine.low %v244, %v251
        %v256 = vunpack.c.l.s4 1966171168
        %v257 = vunpack.c.0.s8 %v256
        %v258 = vlaneseq
        %v259 = vshrl.u32 %v258, 7
        %v260 = vsub.s32 %v257, %v259
        %v261 = vrot.slane %v254, %v260
        %v263 = vunpack.c.l.s4 1966171168
        %v264 = vunpack.c.0.s8 %v263
        %v265 = vlaneseq
        %v266 = vshrl.u32 %v265, 7
        %v267 = vsub.s32 %v264, %v266
        %v268 = vrot.slane %v261, %v267
        %v270 = vmax.f32 %v199, %v268
        %v271 = vlaneseq
        %vm272 = vcmp.ge.s32.totalorder %v271, 0
        %vm273 = vcmp.lt.s32.totalorder %v271, 256
        %vm274 = vmand %vm272, %vm273
        %275 = vst.msk [vmem:[#allocation2] sm:$0x3] %vm274, %v237
        %276 = vst.msk [vmem:[#allocation3] sm:$0x3] %vm274, %v270
        // Predicated region
        $region41: #{tpu_custom_call.1} parent=27 // pred_check
          %p277 = pneg %p188
        $region42: #{tpu_custom_call.1} parent=27 // pred_check_branch
          %279 = sbr.rel (%p277) target = $region44
        $region43: #{tpu_custom_call.1} parent=27 // pred_region
          %vm280 = vcmask 174080
          %281 = vst.msk [vmem:[#allocation4] sm:$0x7] %vm280, 0.0
          %282 = vst.msk [vmem:[#allocation4 + $0x13] sm:$0x7] %vm280, 0.0
          %vm283 = vcmask 23552
          %284 = vst.msk [vmem:[#allocation4 + $0x3] sm:$0xff] %vm283, 0.0
          %285 = vst.msk [vmem:[#allocation4 + $0xb] sm:$0xff] %vm283, 0.0
          %vm286 = vcmask 179352
          %287 = vst.msk [vmem:[#allocation4 + $0x3] sm:$0xff] %vm286, 0.0
          %288 = vst.msk [vmem:[#allocation4 + $0xb] sm:$0xff] %vm286, 0.0
          %s289 = scalar_lea.vmem [#allocation4], 24
          %290 = vst.msk [vmem:[%s289] sm:$0x7] %vm280, 0.0
          %291 = vst.msk [vmem:[%s289 + $0x13] sm:$0x7] %vm280, 0.0
          %292 = vst.msk [vmem:[%s289 + $0x3] sm:$0xff] %vm283, 0.0
          %293 = vst.msk [vmem:[%s289 + $0xb] sm:$0xff] %vm283, 0.0
          %294 = vst.msk [vmem:[%s289 + $0x3] sm:$0xff] %vm286, 0.0
          %295 = vst.msk [vmem:[%s289 + $0xb] sm:$0xff] %vm286, 0.0
          %v296 = vld [vmem:[#allocation2] sm:$0x3]
          %v297 = vmul.f32 %v296, 0.25
          %v298 = vld [vmem:[#allocation3] sm:$0x3]
          %v300 = vlaneseq
          %v301 = vshrl.u32 %v300, 7
          %v302 = vsub.s32 0, %v301
          %v303 = vrot.slane %v297, %v302
          %304 = vrot.lane.b32.xlu0 %v303, 3
          %v305 = vpop.permute.xlu0 %304
          %vm307 = vcmask 147480
          %308 = vst.msk [vmem:[#allocation4 + $0x3] sm:$0x1] %vm307, %v305
          %v310 = vlaneseq
          %v311 = vshrl.u32 %v310, 7
          %v312 = vsub.s32 0, %v311
          %v313 = vrot.slane %v298, %v312
          %314 = vrot.lane.b32.xlu0 %v313, 3
          %v315 = vpop.permute.xlu0 %314
          %317 = vst.msk [vmem:[%s289 + $0x3] sm:$0x1] %vm307, %v315
          %318 = vrot.lane.b32.xlu0 %v303, 115
          %v319 = vpop.permute.xlu0 %318
          %321 = vst.msk [vmem:[#allocation4 + $0x4] sm:$0x1] %vm307, %v319
          %322 = vrot.lane.b32.xlu0 %v313, 115
          %v323 = vpop.permute.xlu0 %322
          %325 = vst.msk [vmem:[%s289 + $0x4] sm:$0x1] %vm307, %v323
          %326 = vrot.lane.b32.xlu0 %v303, 99
          %v327 = vpop.permute.xlu0 %326
          %329 = vst.msk [vmem:[#allocation4 + $0x5] sm:$0x1] %vm307, %v327
          %330 = vrot.lane.b32.xlu0 %v313, 99
          %v331 = vpop.permute.xlu0 %330
          %333 = vst.msk [vmem:[%s289 + $0x5] sm:$0x1] %vm307, %v331
          %334 = vrot.lane.b32.xlu0 %v303, 83
          %v335 = vpop.permute.xlu0 %334
          %337 = vst.msk [vmem:[#allocation4 + $0x6] sm:$0x1] %vm307, %v335
          %338 = vrot.lane.b32.xlu0 %v313, 83
          %v339 = vpop.permute.xlu0 %338
          %341 = vst.msk [vmem:[%s289 + $0x6] sm:$0x1] %vm307, %v339
          %342 = vrot.lane.b32.xlu0 %v303, 67
          %v343 = vpop.permute.xlu0 %342
          %345 = vst.msk [vmem:[#allocation4 + $0x7] sm:$0x1] %vm307, %v343
          %346 = vrot.lane.b32.xlu0 %v313, 67
          %v347 = vpop.permute.xlu0 %346
          %349 = vst.msk [vmem:[%s289 + $0x7] sm:$0x1] %vm307, %v347
          %350 = vrot.lane.b32.xlu0 %v303, 51
          %v351 = vpop.permute.xlu0 %350
          %353 = vst.msk [vmem:[#allocation4 + $0x8] sm:$0x1] %vm307, %v351
          %354 = vrot.lane.b32.xlu0 %v313, 51
          %v355 = vpop.permute.xlu0 %354
          %357 = vst.msk [vmem:[%s289 + $0x8] sm:$0x1] %vm307, %v355
          %358 = vrot.lane.b32.xlu0 %v303, 35
          %v359 = vpop.permute.xlu0 %358
          %361 = vst.msk [vmem:[#allocation4 + $0x9] sm:$0x1] %vm307, %v359
          %362 = vrot.lane.b32.xlu0 %v313, 35
          %v363 = vpop.permute.xlu0 %362
          %365 = vst.msk [vmem:[%s289 + $0x9] sm:$0x1] %vm307, %v363
          %366 = vrot.lane.b32.xlu0 %v303, 19
          %v367 = vpop.permute.xlu0 %366
          %369 = vst.msk [vmem:[#allocation4 + $0xa] sm:$0x1] %vm307, %v367
          %370 = vrot.lane.b32.xlu0 %v313, 19
          %v371 = vpop.permute.xlu0 %370
          %373 = vst.msk [vmem:[%s289 + $0xa] sm:$0x1] %vm307, %v371
          %v374 = vrot.slane %v297, 1
          %v375 = vlaneseq
          %v376 = vshrl.u32 %v375, 7
          %v377 = vsub.s32 0, %v376
          %v378 = vrot.slane %v374, %v377
          %379 = vrot.lane.b32.xlu0 %v378, 3
          %v380 = vpop.permute.xlu0 %379
          %382 = vst.msk [vmem:[#allocation4 + $0xb] sm:$0x1] %vm307, %v380
          %v383 = vrot.slane %v298, 1
          %v384 = vlaneseq
          %v385 = vshrl.u32 %v384, 7
          %v386 = vsub.s32 0, %v385
          %v387 = vrot.slane %v383, %v386
          %388 = vrot.lane.b32.xlu0 %v387, 3
          %v389 = vpop.permute.xlu0 %388
          %391 = vst.msk [vmem:[%s289 + $0xb] sm:$0x1] %vm307, %v389
          %392 = vrot.lane.b32.xlu0 %v297, 112
          %v393 = vpop.permute.xlu0 %392
          %v394 = vrot.slane %v393, 1
          %v395 = vlaneseq
          %v396 = vshrl.u32 %v395, 7
          %v397 = vsub.s32 0, %v396
          %v398 = vrot.slane %v394, %v397
          %399 = vrot.lane.b32.xlu0 %v398, 3
          %v400 = vpop.permute.xlu0 %399
          %402 = vst.msk [vmem:[#allocation4 + $0xc] sm:$0x1] %vm307, %v400
          %403 = vrot.lane.b32.xlu0 %v298, 112
          %v404 = vpop.permute.xlu0 %403
          %v405 = vrot.slane %v404, 1
          %v406 = vlaneseq
          %v407 = vshrl.u32 %v406, 7
          %v408 = vsub.s32 0, %v407
          %v409 = vrot.slane %v405, %v408
          %410 = vrot.lane.b32.xlu0 %v409, 3
          %v411 = vpop.permute.xlu0 %410
          %413 = vst.msk [vmem:[%s289 + $0xc] sm:$0x1] %vm307, %v411
          %414 = vrot.lane.b32.xlu0 %v297, 96
          %v415 = vpop.permute.xlu0 %414
          %v416 = vrot.slane %v415, 1
          %v417 = vlaneseq
          %v418 = vshrl.u32 %v417, 7
          %v419 = vsub.s32 0, %v418
          %v420 = vrot.slane %v416, %v419
          %421 = vrot.lane.b32.xlu0 %v420, 3
          %v422 = vpop.permute.xlu0 %421
          %424 = vst.msk [vmem:[#allocation4 + $0xd] sm:$0x1] %vm307, %v422
          %425 = vrot.lane.b32.xlu0 %v298, 96
          %v426 = vpop.permute.xlu0 %425
          %v427 = vrot.slane %v426, 1
          %v428 = vlaneseq
          %v429 = vshrl.u32 %v428, 7
          %v430 = vsub.s32 0, %v429
          %v431 = vrot.slane %v427, %v430
          %432 = vrot.lane.b32.xlu0 %v431, 3
          %v433 = vpop.permute.xlu0 %432
          %435 = vst.msk [vmem:[%s289 + $0xd] sm:$0x1] %vm307, %v433
          %436 = vrot.lane.b32.xlu0 %v297, 80
          %v437 = vpop.permute.xlu0 %436
          %v438 = vrot.slane %v437, 1
          %v439 = vlaneseq
          %v440 = vshrl.u32 %v439, 7
          %v441 = vsub.s32 0, %v440
          %v442 = vrot.slane %v438, %v441
          %443 = vrot.lane.b32.xlu0 %v442, 3
          %v444 = vpop.permute.xlu0 %443
          %446 = vst.msk [vmem:[#allocation4 + $0xe] sm:$0x1] %vm307, %v444
          %447 = vrot.lane.b32.xlu0 %v298, 80
          %v448 = vpop.permute.xlu0 %447
          %v449 = vrot.slane %v448, 1
          %v450 = vlaneseq
          %v451 = vshrl.u32 %v450, 7
          %v452 = vsub.s32 0, %v451
          %v453 = vrot.slane %v449, %v452
          %454 = vrot.lane.b32.xlu0 %v453, 3
          %v455 = vpop.permute.xlu0 %454
          %457 = vst.msk [vmem:[%s289 + $0xe] sm:$0x1] %vm307, %v455
          %458 = vrot.lane.b32.xlu0 %v297, 64
          %v459 = vpop.permute.xlu0 %458
          %v460 = vrot.slane %v459, 1
          %v461 = vlaneseq
          %v462 = vshrl.u32 %v461, 7
          %v463 = vsub.s32 0, %v462
          %v464 = vrot.slane %v460, %v463
          %465 = vrot.lane.b32.xlu0 %v464, 3
          %v466 = vpop.permute.xlu0 %465
          %468 = vst.msk [vmem:[#allocation4 + $0xf] sm:$0x1] %vm307, %v466
          %469 = vrot.lane.b32.xlu0 %v298, 64
          %v470 = vpop.permute.xlu0 %469
          %v471 = vrot.slane %v470, 1
          %v472 = vlaneseq
          %v473 = vshrl.u32 %v472, 7
          %v474 = vsub.s32 0, %v473
          %v475 = vrot.slane %v471, %v474
          %476 = vrot.lane.b32.xlu0 %v475, 3
          %v477 = vpop.permute.xlu0 %476
          %479 = vst.msk [vmem:[%s289 + $0xf] sm:$0x1] %vm307, %v477
          %480 = vrot.lane.b32.xlu0 %v297, 48
          %v481 = vpop.permute.xlu0 %480
          %v482 = vrot.slane %v481, 1
          %v483 = vlaneseq
          %v484 = vshrl.u32 %v483, 7
          %v485 = vsub.s32 0, %v484
          %v486 = vrot.slane %v482, %v485
          %487 = vrot.lane.b32.xlu0 %v486, 3
          %v488 = vpop.permute.xlu0 %487
          %490 = vst.msk [vmem:[#allocation4 + $0x10] sm:$0x1] %vm307, %v488
          %491 = vrot.lane.b32.xlu0 %v298, 48
          %v492 = vpop.permute.xlu0 %491
          %v493 = vrot.slane %v492, 1
          %v494 = vlaneseq
          %v495 = vshrl.u32 %v494, 7
          %v496 = vsub.s32 0, %v495
          %v497 = vrot.slane %v493, %v496
          %498 = vrot.lane.b32.xlu0 %v497, 3
          %v499 = vpop.permute.xlu0 %498
          %501 = vst.msk [vmem:[%s289 + $0x10] sm:$0x1] %vm307, %v499
          %502 = vrot.lane.b32.xlu0 %v297, 32
          %v503 = vpop.permute.xlu0 %502
          %v504 = vrot.slane %v503, 1
          %v505 = vlaneseq
          %v506 = vshrl.u32 %v505, 7
          %v507 = vsub.s32 0, %v506
          %v508 = vrot.slane %v504, %v507
          %509 = vrot.lane.b32.xlu0 %v508, 3
          %v510 = vpop.permute.xlu0 %509
          %512 = vst.msk [vmem:[#allocation4 + $0x11] sm:$0x1] %vm307, %v510
          %513 = vrot.lane.b32.xlu0 %v298, 32
          %v514 = vpop.permute.xlu0 %513
          %v515 = vrot.slane %v514, 1
          %v516 = vlaneseq
          %v517 = vshrl.u32 %v516, 7
          %v518 = vsub.s32 0, %v517
          %v519 = vrot.slane %v515, %v518
          %520 = vrot.lane.b32.xlu0 %v519, 3
          %v521 = vpop.permute.xlu0 %520
          %523 = vst.msk [vmem:[%s289 + $0x11] sm:$0x1] %vm307, %v521
          %524 = vrot.lane.b32.xlu0 %v297, 16
          %v525 = vpop.permute.xlu0 %524
          %v526 = vrot.slane %v525, 1
          %v527 = vlaneseq
          %v528 = vshrl.u32 %v527, 7
          %v529 = vsub.s32 0, %v528
          %v530 = vrot.slane %v526, %v529
          %531 = vrot.lane.b32.xlu0 %v530, 3
          %v532 = vpop.permute.xlu0 %531
          %534 = vst.msk [vmem:[#allocation4 + $0x12] sm:$0x1] %vm307, %v532
          %535 = vrot.lane.b32.xlu0 %v298, 16
          %v536 = vpop.permute.xlu0 %535
          %v537 = vrot.slane %v536, 1
          %v538 = vlaneseq
          %v539 = vshrl.u32 %v538, 7
          %v540 = vsub.s32 0, %v539
          %v541 = vrot.slane %v537, %v540
          %542 = vrot.lane.b32.xlu0 %v541, 3
          %v543 = vpop.permute.xlu0 %542
          %545 = vst.msk [vmem:[%s289 + $0x12] sm:$0x1] %vm307, %v543
          %s546 = sld [smem:[#allocation5]]
          %s547 = sld [smem:[#allocation5 + $0x1]]
          %s548 = sld [smem:[#allocation5 + $0x2]]
          %s549 = sld [smem:[#allocation5 + $0x3]]
          %s550 = sld [smem:[#allocation5 + $0x4]]
          %s551 = sld [smem:[#allocation5 + $0x5]]
          %s552 = sld [smem:[#allocation5 + $0x6]]
          %s553 = sld [smem:[#allocation5 + $0x7]]
          %s554 = sld [smem:[#allocation5 + $0x8]]
          %s555 = sld [smem:[#allocation5 + $0x9]]
          %s556 = sld [smem:[#allocation5 + $0xa]]
          %s557 = sld [smem:[#allocation5 + $0xb]]
          %s558 = sld [smem:[#allocation5 + $0xc]]
          %s559 = sld [smem:[#allocation5 + $0xd]]
          %s560 = sld [smem:[#allocation5 + $0xe]]
          %s561 = sld [smem:[#allocation5 + $0xf]]
          %s562 = sld [smem:[#allocation5 + $0x10]]
          %s563 = sld [smem:[#allocation5 + $0x11]]
          %s564 = sld [smem:[#allocation5 + $0x12]]
          %s565 = sld [smem:[#allocation5 + $0x13]]
          %s566 = sld [smem:[#allocation5 + $0x14]]
          %s567 = sld [smem:[#allocation5 + $0x15]]
          %s568 = sld [smem:[#allocation5 + $0x16]]
          %s569 = sld [smem:[#allocation5 + $0x17]]
          %s570 = sld [smem:[#allocation5 + $0x18]]
          %s571 = sld [smem:[#allocation5 + $0x19]]
          %s572 = sld [smem:[#allocation5 + $0x1a]]
          %s573 = sld [smem:[#allocation5 + $0x1b]]
          %s574 = sld [smem:[#allocation5 + $0x1c]]
          %s575 = sld [smem:[#allocation5 + $0x1d]]
          %s576 = sld [smem:[#allocation5 + $0x1e]]
          %s577 = sld [smem:[#allocation5 + $0x1f]]
          %s578 = sld [smem:[#allocation5 + $0x20]]
          %s579 = sld [smem:[#allocation5 + $0x21]]
          %s580 = sld [smem:[#allocation5 + $0x22]]
          %s581 = sld [smem:[#allocation5 + $0x23]]
          %s582 = sld [smem:[#allocation5 + $0x24]]
          %s583 = sld [smem:[#allocation5 + $0x25]]
          %s584 = sld [smem:[#allocation5 + $0x26]]
          %s585 = sld [smem:[#allocation5 + $0x27]]
          %s586 = sld [smem:[#allocation5 + $0x28]]
          %s587 = sld [smem:[#allocation5 + $0x29]]
          %s588 = sld [smem:[#allocation5 + $0x2a]]
          %s589 = sld [smem:[#allocation5 + $0x2b]]
          %s590 = sld [smem:[#allocation5 + $0x2c]]
          %s591 = sld [smem:[#allocation5 + $0x2d]]
          %s592 = sld [smem:[#allocation5 + $0x2e]]
          %s593 = sld [smem:[#allocation5 + $0x2f]]
          %s594 = sld [smem:[#allocation5 + $0x30]]
          %s595 = sld [smem:[#allocation5 + $0x31]]
          %s596 = sld [smem:[#allocation5 + $0x32]]
          %s597 = sld [smem:[#allocation5 + $0x33]]
          %s598 = sld [smem:[#allocation5 + $0x34]]
          %s599 = sld [smem:[#allocation5 + $0x35]]
          %s600 = sld [smem:[#allocation5 + $0x36]]
          %s601 = sld [smem:[#allocation5 + $0x37]]
          %s602 = sld [smem:[#allocation5 + $0x38]]
          %s603 = sld [smem:[#allocation5 + $0x39]]
          %s604 = sld [smem:[#allocation5 + $0x3a]]
          %s605 = sld [smem:[#allocation5 + $0x3b]]
          %s606 = sld [smem:[#allocation5 + $0x3c]]
          %s607 = sld [smem:[#allocation5 + $0x3d]]
          %s608 = sld [smem:[#allocation5 + $0x3e]]
          %s609 = sld [smem:[#allocation5 + $0x3f]]
          %s610 = sld [smem:[#allocation5 + $0x40]]
          %s611 = sld [smem:[#allocation5 + $0x41]]
          %s612 = sld [smem:[#allocation5 + $0x42]]
          %s613 = sld [smem:[#allocation5 + $0x43]]
          %s614 = sld [smem:[#allocation5 + $0x44]]
          %s615 = sld [smem:[#allocation5 + $0x45]]
          %s616 = sld [smem:[#allocation5 + $0x46]]
          %s617 = sld [smem:[#allocation5 + $0x47]]
          %s618 = sld [smem:[#allocation5 + $0x48]]
          %s619 = sld [smem:[#allocation5 + $0x49]]
          %s620 = sld [smem:[#allocation5 + $0x4a]]
          %s621 = sld [smem:[#allocation5 + $0x4b]]
          %s622 = sld [smem:[#allocation5 + $0x4c]]
          %s623 = sld [smem:[#allocation5 + $0x4d]]
          %s624 = sld [smem:[#allocation5 + $0x4e]]
          %s625 = sld [smem:[#allocation5 + $0x4f]]
          %s626 = sld [smem:[#allocation5 + $0x50]]
          %s627 = sld [smem:[#allocation5 + $0x51]]
          %s628 = sld [smem:[#allocation5 + $0x52]]
          %s629 = sld [smem:[#allocation5 + $0x53]]
          %s630 = sld [smem:[#allocation5 + $0x54]]
          %s631 = sld [smem:[#allocation5 + $0x55]]
          %s632 = sld [smem:[#allocation5 + $0x56]]
          %s633 = sld [smem:[#allocation5 + $0x57]]
          %s634 = sld [smem:[#allocation5 + $0x58]]
          %s635 = sld [smem:[#allocation5 + $0x59]]
          %s636 = sld [smem:[#allocation5 + $0x5a]]
          %s637 = sld [smem:[#allocation5 + $0x5b]]
          %s638 = sld [smem:[#allocation5 + $0x5c]]
          %s639 = sld [smem:[#allocation5 + $0x5d]]
          %s640 = sld [smem:[#allocation5 + $0x5e]]
          %s641 = sld [smem:[#allocation5 + $0x5f]]
          %s642 = sld [smem:[#allocation5 + $0x60]]
          %s643 = sld [smem:[#allocation5 + $0x61]]
          %v644 = vld [vmem:[#allocation4] sm:$0xff]
          %v645 = vld [vmem:[#allocation4 + $0x8] sm:$0xff]
          %v646 = vld [vmem:[#allocation4 + $0x10] sm:$0xff]
          %v647 = vstv %s546
          %v648 = vmul.f32 %v647, %v644
          %v649 = vmul.f32 %v647, %v645
          %v650 = vadd.f32 %v648, 0.0
          %v651 = vadd.f32 %v649, 0.0
          %v652 = vstv %s553
          %v653 = vmul.f32 %v652, %v644
          %v654 = vmul.f32 %v652, %v645
          %v655 = vmul.f32 %v652, %v646
          %v656 = vadd.f32 %v653, 0.0
          %v657 = vadd.f32 %v654, 0.0
          %v658 = vadd.f32 %v655, 0.0
          %v659 = vstv %s560
          %v660 = vmul.f32 %v659, %v644
          %v661 = vmul.f32 %v659, %v645
          %v662 = vmul.f32 %v659, %v646
          %v663 = vadd.f32 %v660, 0.0
          %v664 = vadd.f32 %v661, 0.0
          %v665 = vadd.f32 %v662, 0.0
          %v666 = vstv %s567
          %v667 = vmul.f32 %v666, %v644
          %v668 = vmul.f32 %v666, %v645
          %v669 = vmul.f32 %v666, %v646
          %v670 = vadd.f32 %v667, 0.0
          %v671 = vadd.f32 %v668, 0.0
          %v672 = vadd.f32 %v669, 0.0
          %v673 = vstv %s574
          %v674 = vmul.f32 %v673, %v644
          %v675 = vmul.f32 %v673, %v645
          %v676 = vmul.f32 %v673, %v646
          %v677 = vadd.f32 %v674, 0.0
          %v678 = vadd.f32 %v675, 0.0
          %v679 = vadd.f32 %v676, 0.0
          %v680 = vstv %s581
          %v681 = vmul.f32 %v680, %v644
          %v682 = vmul.f32 %v680, %v645
          %v683 = vmul.f32 %v680, %v646
          %v684 = vadd.f32 %v681, 0.0
          %v685 = vadd.f32 %v682, 0.0
          %v686 = vadd.f32 %v683, 0.0
          %v687 = vstv %s588
          %v688 = vmul.f32 %v687, %v644
          %v689 = vmul.f32 %v687, %v645
          %v690 = vmul.f32 %v687, %v646
          %v691 = vadd.f32 %v688, 0.0
          %v692 = vadd.f32 %v689, 0.0
          %v693 = vadd.f32 %v690, 0.0
          %v694 = vstv %s547
          %v695 = vmul.f32 %v694, %v644
          %v696 = vmul.f32 %v694, %v645
          %699 = vrot.lane.b32.xlu0 %v695, 127
          %v700 = vpop.permute.xlu0 %699
          %701 = vrot.lane.b32.xlu0 %v696, 127
          %v702 = vpop.permute.xlu0 %701
          %v705 = vadd.f32 %v650, %v700
          %v706 = vadd.f32 %v651, %v702
          %v707 = vstv %s554
          %v708 = vmul.f32 %v707, %v644
          %v709 = vmul.f32 %v707, %v645
          %v710 = vmul.f32 %v707, %v646
          %714 = vrot.lane.b32.xlu0 %v708, 127
          %v715 = vpop.permute.xlu0 %714
          %716 = vrot.lane.b32.xlu0 %v709, 127
          %v717 = vpop.permute.xlu0 %716
          %718 = vrot.lane.b32.xlu0 %v710, 127
          %v719 = vpop.permute.xlu0 %718
          %v723 = vadd.f32 %v656, %v715
          %v724 = vadd.f32 %v657, %v717
          %v725 = vadd.f32 %v658, %v719
          %v726 = vstv %s561
          %v727 = vmul.f32 %v726, %v644
          %v728 = vmul.f32 %v726, %v645
          %v729 = vmul.f32 %v726, %v646
          %733 = vrot.lane.b32.xlu0 %v727, 127
          %v734 = vpop.permute.xlu0 %733
          %735 = vrot.lane.b32.xlu0 %v728, 127
          %v736 = vpop.permute.xlu0 %735
          %737 = vrot.lane.b32.xlu0 %v729, 127
          %v738 = vpop.permute.xlu0 %737
          %v742 = vadd.f32 %v663, %v734
          %v743 = vadd.f32 %v664, %v736
          %v744 = vadd.f32 %v665, %v738
          %v745 = vstv %s568
          %v746 = vmul.f32 %v745, %v644
          %v747 = vmul.f32 %v745, %v645
          %v748 = vmul.f32 %v745, %v646
          %752 = vrot.lane.b32.xlu0 %v746, 127
          %v753 = vpop.permute.xlu0 %752
          %754 = vrot.lane.b32.xlu0 %v747, 127
          %v755 = vpop.permute.xlu0 %754
          %756 = vrot.lane.b32.xlu0 %v748, 127
          %v757 = vpop.permute.xlu0 %756
          %v761 = vadd.f32 %v670, %v753
          %v762 = vadd.f32 %v671, %v755
          %v763 = vadd.f32 %v672, %v757
          %v764 = vstv %s575
          %v765 = vmul.f32 %v764, %v644
          %v766 = vmul.f32 %v764, %v645
          %v767 = vmul.f32 %v764, %v646
          %771 = vrot.lane.b32.xlu0 %v765, 127
          %v772 = vpop.permute.xlu0 %771
          %773 = vrot.lane.b32.xlu0 %v766, 127
          %v774 = vpop.permute.xlu0 %773
          %775 = vrot.lane.b32.xlu0 %v767, 127
          %v776 = vpop.permute.xlu0 %775
          %v780 = vadd.f32 %v677, %v772
          %v781 = vadd.f32 %v678, %v774
          %v782 = vadd.f32 %v679, %v776
          %v783 = vstv %s582
          %v784 = vmul.f32 %v783, %v644
          %v785 = vmul.f32 %v783, %v645
          %v786 = vmul.f32 %v783, %v646
          %790 = vrot.lane.b32.xlu0 %v784, 127
          %v791 = vpop.permute.xlu0 %790
          %792 = vrot.lane.b32.xlu0 %v785, 127
          %v793 = vpop.permute.xlu0 %792
          %794 = vrot.lane.b32.xlu0 %v786, 127
          %v795 = vpop.permute.xlu0 %794
          %v799 = vadd.f32 %v684, %v791
          %v800 = vadd.f32 %v685, %v793
          %v801 = vadd.f32 %v686, %v795
          %v802 = vstv %s589
          %v803 = vmul.f32 %v802, %v644
          %v804 = vmul.f32 %v802, %v645
          %v805 = vmul.f32 %v802, %v646
          %809 = vrot.lane.b32.xlu0 %v803, 127
          %v810 = vpop.permute.xlu0 %809
          %811 = vrot.lane.b32.xlu0 %v804, 127
          %v812 = vpop.permute.xlu0 %811
          %813 = vrot.lane.b32.xlu0 %v805, 127
          %v814 = vpop.permute.xlu0 %813
          %v818 = vadd.f32 %v691, %v810
          %v819 = vadd.f32 %v692, %v812
          %v820 = vadd.f32 %v693, %v814
          %v821 = vstv %s548
          %v822 = vmul.f32 %v821, %v644
          %v823 = vmul.f32 %v821, %v645
          %826 = vrot.lane.b32.xlu0 %v822, 126
          %v827 = vpop.permute.xlu0 %826
          %828 = vrot.lane.b32.xlu0 %v823, 126
          %v829 = vpop.permute.xlu0 %828
          %v832 = vadd.f32 %v705, %v827
          %v833 = vadd.f32 %v706, %v829
          %v834 = vstv %s555
          %v835 = vmul.f32 %v834, %v644
          %v836 = vmul.f32 %v834, %v645
          %v837 = vmul.f32 %v834, %v646
          %841 = vrot.lane.b32.xlu0 %v835, 126
          %v842 = vpop.permute.xlu0 %841
          %843 = vrot.lane.b32.xlu0 %v836, 126
          %v844 = vpop.permute.xlu0 %843
          %845 = vrot.lane.b32.xlu0 %v837, 126
          %v846 = vpop.permute.xlu0 %845
          %v850 = vadd.f32 %v723, %v842
          %v851 = vadd.f32 %v724, %v844
          %v852 = vadd.f32 %v725, %v846
          %v853 = vstv %s562
          %v854 = vmul.f32 %v853, %v644
          %v855 = vmul.f32 %v853, %v645
          %v856 = vmul.f32 %v853, %v646
          %860 = vrot.lane.b32.xlu0 %v854, 126
          %v861 = vpop.permute.xlu0 %860
          %862 = vrot.lane.b32.xlu0 %v855, 126
          %v863 = vpop.permute.xlu0 %862
          %864 = vrot.lane.b32.xlu0 %v856, 126
          %v865 = vpop.permute.xlu0 %864
          %v869 = vadd.f32 %v742, %v861
          %v870 = vadd.f32 %v743, %v863
          %v871 = vadd.f32 %v744, %v865
          %v872 = vstv %s569
          %v873 = vmul.f32 %v872, %v644
          %v874 = vmul.f32 %v872, %v645
          %v875 = vmul.f32 %v872, %v646
          %879 = vrot.lane.b32.xlu0 %v873, 126
          %v880 = vpop.permute.xlu0 %879
          %881 = vrot.lane.b32.xlu0 %v874, 126
          %v882 = vpop.permute.xlu0 %881
          %883 = vrot.lane.b32.xlu0 %v875, 126
          %v884 = vpop.permute.xlu0 %883
          %v888 = vadd.f32 %v761, %v880
          %v889 = vadd.f32 %v762, %v882
          %v890 = vadd.f32 %v763, %v884
          %v891 = vstv %s576
          %v892 = vmul.f32 %v891, %v644
          %v893 = vmul.f32 %v891, %v645
          %v894 = vmul.f32 %v891, %v646
          %898 = vrot.lane.b32.xlu0 %v892, 126
          %v899 = vpop.permute.xlu0 %898
          %900 = vrot.lane.b32.xlu0 %v893, 126
          %v901 = vpop.permute.xlu0 %900
          %902 = vrot.lane.b32.xlu0 %v894, 126
          %v903 = vpop.permute.xlu0 %902
          %v907 = vadd.f32 %v780, %v899
          %v908 = vadd.f32 %v781, %v901
          %v909 = vadd.f32 %v782, %v903
          %v910 = vstv %s583
          %v911 = vmul.f32 %v910, %v644
          %v912 = vmul.f32 %v910, %v645
          %v913 = vmul.f32 %v910, %v646
          %917 = vrot.lane.b32.xlu0 %v911, 126
          %v918 = vpop.permute.xlu0 %917
          %919 = vrot.lane.b32.xlu0 %v912, 126
          %v920 = vpop.permute.xlu0 %919
          %921 = vrot.lane.b32.xlu0 %v913, 126
          %v922 = vpop.permute.xlu0 %921
          %v926 = vadd.f32 %v799, %v918
          %v927 = vadd.f32 %v800, %v920
          %v928 = vadd.f32 %v801, %v922
          %v929 = vstv %s590
          %v930 = vmul.f32 %v929, %v644
          %v931 = vmul.f32 %v929, %v645
          %v932 = vmul.f32 %v929, %v646
          %936 = vrot.lane.b32.xlu0 %v930, 126
          %v937 = vpop.permute.xlu0 %936
          %938 = vrot.lane.b32.xlu0 %v931, 126
          %v939 = vpop.permute.xlu0 %938
          %940 = vrot.lane.b32.xlu0 %v932, 126
          %v941 = vpop.permute.xlu0 %940
          %v945 = vadd.f32 %v818, %v937
          %v946 = vadd.f32 %v819, %v939
          %v947 = vadd.f32 %v820, %v941
          %v948 = vstv %s549
          %v949 = vmul.f32 %v948, %v644
          %v950 = vmul.f32 %v948, %v645
          %953 = vrot.lane.b32.xlu0 %v949, 125
          %v954 = vpop.permute.xlu0 %953
          %955 = vrot.lane.b32.xlu0 %v950, 125
          %v956 = vpop.permute.xlu0 %955
          %v959 = vadd.f32 %v832, %v954
          %v960 = vadd.f32 %v833, %v956
          %v961 = vstv %s556
          %v962 = vmul.f32 %v961, %v644
          %v963 = vmul.f32 %v961, %v645
          %v964 = vmul.f32 %v961, %v646
          %968 = vrot.lane.b32.xlu0 %v962, 125
          %v969 = vpop.permute.xlu0 %968
          %970 = vrot.lane.b32.xlu0 %v963, 125
          %v971 = vpop.permute.xlu0 %970
          %972 = vrot.lane.b32.xlu0 %v964, 125
          %v973 = vpop.permute.xlu0 %972
          %v977 = vadd.f32 %v850, %v969
          %v978 = vadd.f32 %v851, %v971
          %v979 = vadd.f32 %v852, %v973
          %v980 = vstv %s563
          %v981 = vmul.f32 %v980, %v644
          %v982 = vmul.f32 %v980, %v645
          %v983 = vmul.f32 %v980, %v646
          %987 = vrot.lane.b32.xlu0 %v981, 125
          %v988 = vpop.permute.xlu0 %987
          %989 = vrot.lane.b32.xlu0 %v982, 125
          %v990 = vpop.permute.xlu0 %989
          %991 = vrot.lane.b32.xlu0 %v983, 125
          %v992 = vpop.permute.xlu0 %991
          %v996 = vadd.f32 %v869, %v988
          %v997 = vadd.f32 %v870, %v990
          %v998 = vadd.f32 %v871, %v992
          %v999 = vstv %s570
          %v1000 = vmul.f32 %v999, %v644
          %v1001 = vmul.f32 %v999, %v645
          %v1002 = vmul.f32 %v999, %v646
          %1006 = vrot.lane.b32.xlu0 %v1000, 125
          %v1007 = vpop.permute.xlu0 %1006
          %1008 = vrot.lane.b32.xlu0 %v1001, 125
          %v1009 = vpop.permute.xlu0 %1008
          %1010 = vrot.lane.b32.xlu0 %v1002, 125
          %v1011 = vpop.permute.xlu0 %1010
          %v1015 = vadd.f32 %v888, %v1007
          %v1016 = vadd.f32 %v889, %v1009
          %v1017 = vadd.f32 %v890, %v1011
          %v1018 = vstv %s577
          %v1019 = vmul.f32 %v1018, %v644
          %v1020 = vmul.f32 %v1018, %v645
          %v1021 = vmul.f32 %v1018, %v646
          %1025 = vrot.lane.b32.xlu0 %v1019, 125
          %v1026 = vpop.permute.xlu0 %1025
          %1027 = vrot.lane.b32.xlu0 %v1020, 125
          %v1028 = vpop.permute.xlu0 %1027
          %1029 = vrot.lane.b32.xlu0 %v1021, 125
          %v1030 = vpop.permute.xlu0 %1029
          %v1034 = vadd.f32 %v907, %v1026
          %v1035 = vadd.f32 %v908, %v1028
          %v1036 = vadd.f32 %v909, %v1030
          %v1037 = vstv %s584
          %v1038 = vmul.f32 %v1037, %v644
          %v1039 = vmul.f32 %v1037, %v645
          %v1040 = vmul.f32 %v1037, %v646
          %1044 = vrot.lane.b32.xlu0 %v1038, 125
          %v1045 = vpop.permute.xlu0 %1044
          %1046 = vrot.lane.b32.xlu0 %v1039, 125
          %v1047 = vpop.permute.xlu0 %1046
          %1048 = vrot.lane.b32.xlu0 %v1040, 125
          %v1049 = vpop.permute.xlu0 %1048
          %v1053 = vadd.f32 %v926, %v1045
          %v1054 = vadd.f32 %v927, %v1047
          %v1055 = vadd.f32 %v928, %v1049
          %v1056 = vstv %s591
          %v1057 = vmul.f32 %v1056, %v644
          %v1058 = vmul.f32 %v1056, %v645
          %v1059 = vmul.f32 %v1056, %v646
          %1063 = vrot.lane.b32.xlu0 %v1057, 125
          %v1064 = vpop.permute.xlu0 %1063
          %1065 = vrot.lane.b32.xlu0 %v1058, 125
          %v1066 = vpop.permute.xlu0 %1065
          %1067 = vrot.lane.b32.xlu0 %v1059, 125
          %v1068 = vpop.permute.xlu0 %1067
          %v1072 = vadd.f32 %v945, %v1064
          %v1073 = vadd.f32 %v946, %v1066
          %v1074 = vadd.f32 %v947, %v1068
          %v1075 = vstv %s550
          %v1076 = vmul.f32 %v1075, %v644
          %v1077 = vmul.f32 %v1075, %v645
          %1080 = vrot.lane.b32.xlu0 %v1076, 124
          %v1081 = vpop.permute.xlu0 %1080
          %1082 = vrot.lane.b32.xlu0 %v1077, 124
          %v1083 = vpop.permute.xlu0 %1082
          %v1086 = vadd.f32 %v959, %v1081
          %v1087 = vadd.f32 %v960, %v1083
          %v1088 = vstv %s557
          %v1089 = vmul.f32 %v1088, %v644
          %v1090 = vmul.f32 %v1088, %v645
          %v1091 = vmul.f32 %v1088, %v646
          %1095 = vrot.lane.b32.xlu0 %v1089, 124
          %v1096 = vpop.permute.xlu0 %1095
          %1097 = vrot.lane.b32.xlu0 %v1090, 124
          %v1098 = vpop.permute.xlu0 %1097
          %1099 = vrot.lane.b32.xlu0 %v1091, 124
          %v1100 = vpop.permute.xlu0 %1099
          %v1104 = vadd.f32 %v977, %v1096
          %v1105 = vadd.f32 %v978, %v1098
          %v1106 = vadd.f32 %v979, %v1100
          %v1107 = vstv %s564
          %v1108 = vmul.f32 %v1107, %v644
          %v1109 = vmul.f32 %v1107, %v645
          %v1110 = vmul.f32 %v1107, %v646
          %1114 = vrot.lane.b32.xlu0 %v1108, 124
          %v1115 = vpop.permute.xlu0 %1114
          %1116 = vrot.lane.b32.xlu0 %v1109, 124
          %v1117 = vpop.permute.xlu0 %1116
          %1118 = vrot.lane.b32.xlu0 %v1110, 124
          %v1119 = vpop.permute.xlu0 %1118
          %v1123 = vadd.f32 %v996, %v1115
          %v1124 = vadd.f32 %v997, %v1117
          %v1125 = vadd.f32 %v998, %v1119
          %v1126 = vstv %s571
          %v1127 = vmul.f32 %v1126, %v644
          %v1128 = vmul.f32 %v1126, %v645
          %v1129 = vmul.f32 %v1126, %v646
          %1133 = vrot.lane.b32.xlu0 %v1127, 124
          %v1134 = vpop.permute.xlu0 %1133
          %1135 = vrot.lane.b32.xlu0 %v1128, 124
          %v1136 = vpop.permute.xlu0 %1135
          %1137 = vrot.lane.b32.xlu0 %v1129, 124
          %v1138 = vpop.permute.xlu0 %1137
          %v1142 = vadd.f32 %v1015, %v1134
          %v1143 = vadd.f32 %v1016, %v1136
          %v1144 = vadd.f32 %v1017, %v1138
          %v1145 = vstv %s578
          %v1146 = vmul.f32 %v1145, %v644
          %v1147 = vmul.f32 %v1145, %v645
          %v1148 = vmul.f32 %v1145, %v646
          %1152 = vrot.lane.b32.xlu0 %v1146, 124
          %v1153 = vpop.permute.xlu0 %1152
          %1154 = vrot.lane.b32.xlu0 %v1147, 124
          %v1155 = vpop.permute.xlu0 %1154
          %1156 = vrot.lane.b32.xlu0 %v1148, 124
          %v1157 = vpop.permute.xlu0 %1156
          %v1161 = vadd.f32 %v1034, %v1153
          %v1162 = vadd.f32 %v1035, %v1155
          %v1163 = vadd.f32 %v1036, %v1157
          %v1164 = vstv %s585
          %v1165 = vmul.f32 %v1164, %v644
          %v1166 = vmul.f32 %v1164, %v645
          %v1167 = vmul.f32 %v1164, %v646
          %1171 = vrot.lane.b32.xlu0 %v1165, 124
          %v1172 = vpop.permute.xlu0 %1171
          %1173 = vrot.lane.b32.xlu0 %v1166, 124
          %v1174 = vpop.permute.xlu0 %1173
          %1175 = vrot.lane.b32.xlu0 %v1167, 124
          %v1176 = vpop.permute.xlu0 %1175
          %v1180 = vadd.f32 %v1053, %v1172
          %v1181 = vadd.f32 %v1054, %v1174
          %v1182 = vadd.f32 %v1055, %v1176
          %v1183 = vstv %s592
          %v1184 = vmul.f32 %v1183, %v644
          %v1185 = vmul.f32 %v1183, %v645
          %v1186 = vmul.f32 %v1183, %v646
          %1190 = vrot.lane.b32.xlu0 %v1184, 124
          %v1191 = vpop.permute.xlu0 %1190
          %1192 = vrot.lane.b32.xlu0 %v1185, 124
          %v1193 = vpop.permute.xlu0 %1192
          %1194 = vrot.lane.b32.xlu0 %v1186, 124
          %v1195 = vpop.permute.xlu0 %1194
          %v1199 = vadd.f32 %v1072, %v1191
          %v1200 = vadd.f32 %v1073, %v1193
          %v1201 = vadd.f32 %v1074, %v1195
          %v1202 = vstv %s551
          %v1203 = vmul.f32 %v1202, %v644
          %v1204 = vmul.f32 %v1202, %v645
          %1207 = vrot.lane.b32.xlu0 %v1203, 123
          %v1208 = vpop.permute.xlu0 %1207
          %1209 = vrot.lane.b32.xlu0 %v1204, 123
          %v1210 = vpop.permute.xlu0 %1209
          %v1213 = vadd.f32 %v1086, %v1208
          %v1214 = vadd.f32 %v1087, %v1210
          %v1215 = vstv %s558
          %v1216 = vmul.f32 %v1215, %v644
          %v1217 = vmul.f32 %v1215, %v645
          %v1218 = vmul.f32 %v1215, %v646
          %1222 = vrot.lane.b32.xlu0 %v1216, 123
          %v1223 = vpop.permute.xlu0 %1222
          %1224 = vrot.lane.b32.xlu0 %v1217, 123
          %v1225 = vpop.permute.xlu0 %1224
          %1226 = vrot.lane.b32.xlu0 %v1218, 123
          %v1227 = vpop.permute.xlu0 %1226
          %v1231 = vadd.f32 %v1104, %v1223
          %v1232 = vadd.f32 %v1105, %v1225
          %v1233 = vadd.f32 %v1106, %v1227
          %v1234 = vstv %s565
          %v1235 = vmul.f32 %v1234, %v644
          %v1236 = vmul.f32 %v1234, %v645
          %v1237 = vmul.f32 %v1234, %v646
          %1241 = vrot.lane.b32.xlu0 %v1235, 123
          %v1242 = vpop.permute.xlu0 %1241
          %1243 = vrot.lane.b32.xlu0 %v1236, 123
          %v1244 = vpop.permute.xlu0 %1243
          %1245 = vrot.lane.b32.xlu0 %v1237, 123
          %v1246 = vpop.permute.xlu0 %1245
          %v1250 = vadd.f32 %v1123, %v1242
          %v1251 = vadd.f32 %v1124, %v1244
          %v1252 = vadd.f32 %v1125, %v1246
          %v1253 = vstv %s572
          %v1254 = vmul.f32 %v1253, %v644
          %v1255 = vmul.f32 %v1253, %v645
          %v1256 = vmul.f32 %v1253, %v646
          %1260 = vrot.lane.b32.xlu0 %v1254, 123
          %v1261 = vpop.permute.xlu0 %1260
          %1262 = vrot.lane.b32.xlu0 %v1255, 123
          %v1263 = vpop.permute.xlu0 %1262
          %1264 = vrot.lane.b32.xlu0 %v1256, 123
          %v1265 = vpop.permute.xlu0 %1264
          %v1269 = vadd.f32 %v1142, %v1261
          %v1270 = vadd.f32 %v1143, %v1263
          %v1271 = vadd.f32 %v1144, %v1265
          %v1272 = vstv %s579
          %v1273 = vmul.f32 %v1272, %v644
          %v1274 = vmul.f32 %v1272, %v645
          %v1275 = vmul.f32 %v1272, %v646
          %1279 = vrot.lane.b32.xlu0 %v1273, 123
          %v1280 = vpop.permute.xlu0 %1279
          %1281 = vrot.lane.b32.xlu0 %v1274, 123
          %v1282 = vpop.permute.xlu0 %1281
          %1283 = vrot.lane.b32.xlu0 %v1275, 123
          %v1284 = vpop.permute.xlu0 %1283
          %v1288 = vadd.f32 %v1161, %v1280
          %v1289 = vadd.f32 %v1162, %v1282
          %v1290 = vadd.f32 %v1163, %v1284
          %v1291 = vstv %s586
          %v1292 = vmul.f32 %v1291, %v644
          %v1293 = vmul.f32 %v1291, %v645
          %v1294 = vmul.f32 %v1291, %v646
          %1298 = vrot.lane.b32.xlu0 %v1292, 123
          %v1299 = vpop.permute.xlu0 %1298
          %1300 = vrot.lane.b32.xlu0 %v1293, 123
          %v1301 = vpop.permute.xlu0 %1300
          %1302 = vrot.lane.b32.xlu0 %v1294, 123
          %v1303 = vpop.permute.xlu0 %1302
          %v1307 = vadd.f32 %v1180, %v1299
          %v1308 = vadd.f32 %v1181, %v1301
          %v1309 = vadd.f32 %v1182, %v1303
          %v1310 = vstv %s593
          %v1311 = vmul.f32 %v1310, %v644
          %v1312 = vmul.f32 %v1310, %v645
          %v1313 = vmul.f32 %v1310, %v646
          %1317 = vrot.lane.b32.xlu0 %v1311, 123
          %v1318 = vpop.permute.xlu0 %1317
          %1319 = vrot.lane.b32.xlu0 %v1312, 123
          %v1320 = vpop.permute.xlu0 %1319
          %1321 = vrot.lane.b32.xlu0 %v1313, 123
          %v1322 = vpop.permute.xlu0 %1321
          %v1326 = vadd.f32 %v1199, %v1318
          %v1327 = vadd.f32 %v1200, %v1320
          %v1328 = vadd.f32 %v1201, %v1322
          %v1329 = vstv %s552
          %v1330 = vmul.f32 %v1329, %v644
          %v1331 = vmul.f32 %v1329, %v645
          %1334 = vrot.lane.b32.xlu0 %v1330, 122
          %v1335 = vpop.permute.xlu0 %1334
          %1336 = vrot.lane.b32.xlu0 %v1331, 122
          %v1337 = vpop.permute.xlu0 %1336
          %v1340 = vadd.f32 %v1213, %v1335
          %v1341 = vadd.f32 %v1214, %v1337
          %v1342 = vstv %s559
          %v1343 = vmul.f32 %v1342, %v644
          %v1344 = vmul.f32 %v1342, %v645
          %v1345 = vmul.f32 %v1342, %v646
          %1349 = vrot.lane.b32.xlu0 %v1343, 122
          %v1350 = vpop.permute.xlu0 %1349
          %1351 = vrot.lane.b32.xlu0 %v1344, 122
          %v1352 = vpop.permute.xlu0 %1351
          %1353 = vrot.lane.b32.xlu0 %v1345, 122
          %v1354 = vpop.permute.xlu0 %1353
          %v1358 = vadd.f32 %v1231, %v1350
          %v1359 = vadd.f32 %v1232, %v1352
          %v1360 = vadd.f32 %v1233, %v1354
          %v1361 = vstv %s566
          %v1362 = vmul.f32 %v1361, %v644
          %v1363 = vmul.f32 %v1361, %v645
          %v1364 = vmul.f32 %v1361, %v646
          %1368 = vrot.lane.b32.xlu0 %v1362, 122
          %v1369 = vpop.permute.xlu0 %1368
          %1370 = vrot.lane.b32.xlu0 %v1363, 122
          %v1371 = vpop.permute.xlu0 %1370
          %1372 = vrot.lane.b32.xlu0 %v1364, 122
          %v1373 = vpop.permute.xlu0 %1372
          %v1377 = vadd.f32 %v1250, %v1369
          %v1378 = vadd.f32 %v1251, %v1371
          %v1379 = vadd.f32 %v1252, %v1373
          %v1380 = vstv %s573
          %v1381 = vmul.f32 %v1380, %v644
          %v1382 = vmul.f32 %v1380, %v645
          %v1383 = vmul.f32 %v1380, %v646
          %1387 = vrot.lane.b32.xlu0 %v1381, 122
          %v1388 = vpop.permute.xlu0 %1387
          %1389 = vrot.lane.b32.xlu0 %v1382, 122
          %v1390 = vpop.permute.xlu0 %1389
          %1391 = vrot.lane.b32.xlu0 %v1383, 122
          %v1392 = vpop.permute.xlu0 %1391
          %v1396 = vadd.f32 %v1269, %v1388
          %v1397 = vadd.f32 %v1270, %v1390
          %v1398 = vadd.f32 %v1271, %v1392
          %v1399 = vstv %s580
          %v1400 = vmul.f32 %v1399, %v644
          %v1401 = vmul.f32 %v1399, %v645
          %v1402 = vmul.f32 %v1399, %v646
          %1406 = vrot.lane.b32.xlu0 %v1400, 122
          %v1407 = vpop.permute.xlu0 %1406
          %1408 = vrot.lane.b32.xlu0 %v1401, 122
          %v1409 = vpop.permute.xlu0 %1408
          %1410 = vrot.lane.b32.xlu0 %v1402, 122
          %v1411 = vpop.permute.xlu0 %1410
          %v1415 = vadd.f32 %v1288, %v1407
          %v1416 = vadd.f32 %v1289, %v1409
          %v1417 = vadd.f32 %v1290, %v1411
          %v1418 = vstv %s587
          %v1419 = vmul.f32 %v1418, %v644
          %v1420 = vmul.f32 %v1418, %v645
          %v1421 = vmul.f32 %v1418, %v646
          %1425 = vrot.lane.b32.xlu0 %v1419, 122
          %v1426 = vpop.permute.xlu0 %1425
          %1427 = vrot.lane.b32.xlu0 %v1420, 122
          %v1428 = vpop.permute.xlu0 %1427
          %1429 = vrot.lane.b32.xlu0 %v1421, 122
          %v1430 = vpop.permute.xlu0 %1429
          %v1434 = vadd.f32 %v1307, %v1426
          %v1435 = vadd.f32 %v1308, %v1428
          %v1436 = vadd.f32 %v1309, %v1430
          %v1437 = vstv %s594
          %v1438 = vmul.f32 %v1437, %v644
          %v1439 = vmul.f32 %v1437, %v645
          %v1440 = vmul.f32 %v1437, %v646
          %1444 = vrot.lane.b32.xlu0 %v1438, 122
          %v1445 = vpop.permute.xlu0 %1444
          %1446 = vrot.lane.b32.xlu0 %v1439, 122
          %v1447 = vpop.permute.xlu0 %1446
          %1448 = vrot.lane.b32.xlu0 %v1440, 122
          %v1449 = vpop.permute.xlu0 %1448
          %v1453 = vadd.f32 %v1326, %v1445
          %v1454 = vadd.f32 %v1327, %v1447
          %v1455 = vadd.f32 %v1328, %v1449
          %v1456 = vld [vmem:[%s289] sm:$0xff]
          %v1457 = vld [vmem:[%s289 + $0x8] sm:$0xff]
          %v1458 = vld [vmem:[%s289 + $0x10] sm:$0xff]
          %v1459 = vstv %s595
          %v1460 = vmul.f32 %v1459, %v1456
          %v1461 = vmul.f32 %v1459, %v1457
          %v1462 = vadd.f32 %v1340, %v1460
          %v1463 = vadd.f32 %v1341, %v1461
          %v1464 = vstv %s602
          %v1465 = vmul.f32 %v1464, %v1456
          %v1466 = vmul.f32 %v1464, %v1457
          %v1467 = vmul.f32 %v1464, %v1458
          %v1468 = vadd.f32 %v1358, %v1465
          %v1469 = vadd.f32 %v1359, %v1466
          %v1470 = vadd.f32 %v1360, %v1467
          %v1471 = vstv %s609
          %v1472 = vmul.f32 %v1471, %v1456
          %v1473 = vmul.f32 %v1471, %v1457
          %v1474 = vmul.f32 %v1471, %v1458
          %v1475 = vadd.f32 %v1377, %v1472
          %v1476 = vadd.f32 %v1378, %v1473
          %v1477 = vadd.f32 %v1379, %v1474
          %v1478 = vstv %s616
          %v1479 = vmul.f32 %v1478, %v1456
          %v1480 = vmul.f32 %v1478, %v1457
          %v1481 = vmul.f32 %v1478, %v1458
          %v1482 = vadd.f32 %v1396, %v1479
          %v1483 = vadd.f32 %v1397, %v1480
          %v1484 = vadd.f32 %v1398, %v1481
          %v1485 = vstv %s623
          %v1486 = vmul.f32 %v1485, %v1456
          %v1487 = vmul.f32 %v1485, %v1457
          %v1488 = vmul.f32 %v1485, %v1458
          %v1489 = vadd.f32 %v1415, %v1486
          %v1490 = vadd.f32 %v1416, %v1487
          %v1491 = vadd.f32 %v1417, %v1488
          %v1492 = vstv %s630
          %v1493 = vmul.f32 %v1492, %v1456
          %v1494 = vmul.f32 %v1492, %v1457
          %v1495 = vmul.f32 %v1492, %v1458
          %v1496 = vadd.f32 %v1434, %v1493
          %v1497 = vadd.f32 %v1435, %v1494
          %v1498 = vadd.f32 %v1436, %v1495
          %v1499 = vstv %s637
          %v1500 = vmul.f32 %v1499, %v1456
          %v1501 = vmul.f32 %v1499, %v1457
          %v1502 = vmul.f32 %v1499, %v1458
          %v1503 = vadd.f32 %v1453, %v1500
          %v1504 = vadd.f32 %v1454, %v1501
          %v1505 = vadd.f32 %v1455, %v1502
          %v1506 = vstv %s596
          %v1507 = vmul.f32 %v1506, %v1456
          %v1508 = vmul.f32 %v1506, %v1457
          %1511 = vrot.lane.b32.xlu0 %v1507, 127
          %v1512 = vpop.permute.xlu0 %1511
          %1513 = vrot.lane.b32.xlu0 %v1508, 127
          %v1514 = vpop.permute.xlu0 %1513
          %v1517 = vadd.f32 %v1462, %v1512
          %v1518 = vadd.f32 %v1463, %v1514
          %v1519 = vstv %s603
          %v1520 = vmul.f32 %v1519, %v1456
          %v1521 = vmul.f32 %v1519, %v1457
          %v1522 = vmul.f32 %v1519, %v1458
          %1526 = vrot.lane.b32.xlu0 %v1520, 127
          %v1527 = vpop.permute.xlu0 %1526
          %1528 = vrot.lane.b32.xlu0 %v1521, 127
          %v1529 = vpop.permute.xlu0 %1528
          %1530 = vrot.lane.b32.xlu0 %v1522, 127
          %v1531 = vpop.permute.xlu0 %1530
          %v1535 = vadd.f32 %v1468, %v1527
          %v1536 = vadd.f32 %v1469, %v1529
          %v1537 = vadd.f32 %v1470, %v1531
          %v1538 = vstv %s610
          %v1539 = vmul.f32 %v1538, %v1456
          %v1540 = vmul.f32 %v1538, %v1457
          %v1541 = vmul.f32 %v1538, %v1458
          %1545 = vrot.lane.b32.xlu0 %v1539, 127
          %v1546 = vpop.permute.xlu0 %1545
          %1547 = vrot.lane.b32.xlu0 %v1540, 127
          %v1548 = vpop.permute.xlu0 %1547
          %1549 = vrot.lane.b32.xlu0 %v1541, 127
          %v1550 = vpop.permute.xlu0 %1549
          %v1554 = vadd.f32 %v1475, %v1546
          %v1555 = vadd.f32 %v1476, %v1548
          %v1556 = vadd.f32 %v1477, %v1550
          %v1557 = vstv %s617
          %v1558 = vmul.f32 %v1557, %v1456
          %v1559 = vmul.f32 %v1557, %v1457
          %v1560 = vmul.f32 %v1557, %v1458
          %1564 = vrot.lane.b32.xlu0 %v1558, 127
          %v1565 = vpop.permute.xlu0 %1564
          %1566 = vrot.lane.b32.xlu0 %v1559, 127
          %v1567 = vpop.permute.xlu0 %1566
          %1568 = vrot.lane.b32.xlu0 %v1560, 127
          %v1569 = vpop.permute.xlu0 %1568
          %v1573 = vadd.f32 %v1482, %v1565
          %v1574 = vadd.f32 %v1483, %v1567
          %v1575 = vadd.f32 %v1484, %v1569
          %v1576 = vstv %s624
          %v1577 = vmul.f32 %v1576, %v1456
          %v1578 = vmul.f32 %v1576, %v1457
          %v1579 = vmul.f32 %v1576, %v1458
          %1583 = vrot.lane.b32.xlu0 %v1577, 127
          %v1584 = vpop.permute.xlu0 %1583
          %1585 = vrot.lane.b32.xlu0 %v1578, 127
          %v1586 = vpop.permute.xlu0 %1585
          %1587 = vrot.lane.b32.xlu0 %v1579, 127
          %v1588 = vpop.permute.xlu0 %1587
          %v1592 = vadd.f32 %v1489, %v1584
          %v1593 = vadd.f32 %v1490, %v1586
          %v1594 = vadd.f32 %v1491, %v1588
          %v1595 = vstv %s631
          %v1596 = vmul.f32 %v1595, %v1456
          %v1597 = vmul.f32 %v1595, %v1457
          %v1598 = vmul.f32 %v1595, %v1458
          %1602 = vrot.lane.b32.xlu0 %v1596, 127
          %v1603 = vpop.permute.xlu0 %1602
          %1604 = vrot.lane.b32.xlu0 %v1597, 127
          %v1605 = vpop.permute.xlu0 %1604
          %1606 = vrot.lane.b32.xlu0 %v1598, 127
          %v1607 = vpop.permute.xlu0 %1606
          %v1611 = vadd.f32 %v1496, %v1603
          %v1612 = vadd.f32 %v1497, %v1605
          %v1613 = vadd.f32 %v1498, %v1607
          %v1614 = vstv %s638
          %v1615 = vmul.f32 %v1614, %v1456
          %v1616 = vmul.f32 %v1614, %v1457
          %v1617 = vmul.f32 %v1614, %v1458
          %1621 = vrot.lane.b32.xlu0 %v1615, 127
          %v1622 = vpop.permute.xlu0 %1621
          %1623 = vrot.lane.b32.xlu0 %v1616, 127
          %v1624 = vpop.permute.xlu0 %1623
          %1625 = vrot.lane.b32.xlu0 %v1617, 127
          %v1626 = vpop.permute.xlu0 %1625
          %v1630 = vadd.f32 %v1503, %v1622
          %v1631 = vadd.f32 %v1504, %v1624
          %v1632 = vadd.f32 %v1505, %v1626
          %v1633 = vstv %s597
          %v1634 = vmul.f32 %v1633, %v1456
          %v1635 = vmul.f32 %v1633, %v1457
          %1638 = vrot.lane.b32.xlu0 %v1634, 126
          %v1639 = vpop.permute.xlu0 %1638
          %1640 = vrot.lane.b32.xlu0 %v1635, 126
          %v1641 = vpop.permute.xlu0 %1640
          %v1644 = vadd.f32 %v1517, %v1639
          %v1645 = vadd.f32 %v1518, %v1641
          %v1646 = vstv %s604
          %v1647 = vmul.f32 %v1646, %v1456
          %v1648 = vmul.f32 %v1646, %v1457
          %v1649 = vmul.f32 %v1646, %v1458
          %1653 = vrot.lane.b32.xlu0 %v1647, 126
          %v1654 = vpop.permute.xlu0 %1653
          %1655 = vrot.lane.b32.xlu0 %v1648, 126
          %v1656 = vpop.permute.xlu0 %1655
          %1657 = vrot.lane.b32.xlu0 %v1649, 126
          %v1658 = vpop.permute.xlu0 %1657
          %v1662 = vadd.f32 %v1535, %v1654
          %v1663 = vadd.f32 %v1536, %v1656
          %v1664 = vadd.f32 %v1537, %v1658
          %v1665 = vstv %s611
          %v1666 = vmul.f32 %v1665, %v1456
          %v1667 = vmul.f32 %v1665, %v1457
          %v1668 = vmul.f32 %v1665, %v1458
          %1672 = vrot.lane.b32.xlu0 %v1666, 126
          %v1673 = vpop.permute.xlu0 %1672
          %1674 = vrot.lane.b32.xlu0 %v1667, 126
          %v1675 = vpop.permute.xlu0 %1674
          %1676 = vrot.lane.b32.xlu0 %v1668, 126
          %v1677 = vpop.permute.xlu0 %1676
          %v1681 = vadd.f32 %v1554, %v1673
          %v1682 = vadd.f32 %v1555, %v1675
          %v1683 = vadd.f32 %v1556, %v1677
          %v1684 = vstv %s618
          %v1685 = vmul.f32 %v1684, %v1456
          %v1686 = vmul.f32 %v1684, %v1457
          %v1687 = vmul.f32 %v1684, %v1458
          %1691 = vrot.lane.b32.xlu0 %v1685, 126
          %v1692 = vpop.permute.xlu0 %1691
          %1693 = vrot.lane.b32.xlu0 %v1686, 126
          %v1694 = vpop.permute.xlu0 %1693
          %1695 = vrot.lane.b32.xlu0 %v1687, 126
          %v1696 = vpop.permute.xlu0 %1695
          %v1700 = vadd.f32 %v1573, %v1692
          %v1701 = vadd.f32 %v1574, %v1694
          %v1702 = vadd.f32 %v1575, %v1696
          %v1703 = vstv %s625
          %v1704 = vmul.f32 %v1703, %v1456
          %v1705 = vmul.f32 %v1703, %v1457
          %v1706 = vmul.f32 %v1703, %v1458
          %1710 = vrot.lane.b32.xlu0 %v1704, 126
          %v1711 = vpop.permute.xlu0 %1710
          %1712 = vrot.lane.b32.xlu0 %v1705, 126
          %v1713 = vpop.permute.xlu0 %1712
          %1714 = vrot.lane.b32.xlu0 %v1706, 126
          %v1715 = vpop.permute.xlu0 %1714
          %v1719 = vadd.f32 %v1592, %v1711
          %v1720 = vadd.f32 %v1593, %v1713
          %v1721 = vadd.f32 %v1594, %v1715
          %v1722 = vstv %s632
          %v1723 = vmul.f32 %v1722, %v1456
          %v1724 = vmul.f32 %v1722, %v1457
          %v1725 = vmul.f32 %v1722, %v1458
          %1729 = vrot.lane.b32.xlu0 %v1723, 126
          %v1730 = vpop.permute.xlu0 %1729
          %1731 = vrot.lane.b32.xlu0 %v1724, 126
          %v1732 = vpop.permute.xlu0 %1731
          %1733 = vrot.lane.b32.xlu0 %v1725, 126
          %v1734 = vpop.permute.xlu0 %1733
          %v1738 = vadd.f32 %v1611, %v1730
          %v1739 = vadd.f32 %v1612, %v1732
          %v1740 = vadd.f32 %v1613, %v1734
          %v1741 = vstv %s639
          %v1742 = vmul.f32 %v1741, %v1456
          %v1743 = vmul.f32 %v1741, %v1457
          %v1744 = vmul.f32 %v1741, %v1458
          %1748 = vrot.lane.b32.xlu0 %v1742, 126
          %v1749 = vpop.permute.xlu0 %1748
          %1750 = vrot.lane.b32.xlu0 %v1743, 126
          %v1751 = vpop.permute.xlu0 %1750
          %1752 = vrot.lane.b32.xlu0 %v1744, 126
          %v1753 = vpop.permute.xlu0 %1752
          %v1757 = vadd.f32 %v1630, %v1749
          %v1758 = vadd.f32 %v1631, %v1751
          %v1759 = vadd.f32 %v1632, %v1753
          %v1760 = vstv %s598
          %v1761 = vmul.f32 %v1760, %v1456
          %v1762 = vmul.f32 %v1760, %v1457
          %1765 = vrot.lane.b32.xlu0 %v1761, 125
          %v1766 = vpop.permute.xlu0 %1765
          %1767 = vrot.lane.b32.xlu0 %v1762, 125
          %v1768 = vpop.permute.xlu0 %1767
          %v1771 = vadd.f32 %v1644, %v1766
          %v1772 = vadd.f32 %v1645, %v1768
          %v1773 = vstv %s605
          %v1774 = vmul.f32 %v1773, %v1456
          %v1775 = vmul.f32 %v1773, %v1457
          %v1776 = vmul.f32 %v1773, %v1458
          %1780 = vrot.lane.b32.xlu0 %v1774, 125
          %v1781 = vpop.permute.xlu0 %1780
          %1782 = vrot.lane.b32.xlu0 %v1775, 125
          %v1783 = vpop.permute.xlu0 %1782
          %1784 = vrot.lane.b32.xlu0 %v1776, 125
          %v1785 = vpop.permute.xlu0 %1784
          %v1789 = vadd.f32 %v1662, %v1781
          %v1790 = vadd.f32 %v1663, %v1783
          %v1791 = vadd.f32 %v1664, %v1785
          %v1792 = vstv %s612
          %v1793 = vmul.f32 %v1792, %v1456
          %v1794 = vmul.f32 %v1792, %v1457
          %v1795 = vmul.f32 %v1792, %v1458
          %1799 = vrot.lane.b32.xlu0 %v1793, 125
          %v1800 = vpop.permute.xlu0 %1799
          %1801 = vrot.lane.b32.xlu0 %v1794, 125
          %v1802 = vpop.permute.xlu0 %1801
          %1803 = vrot.lane.b32.xlu0 %v1795, 125
          %v1804 = vpop.permute.xlu0 %1803
          %v1808 = vadd.f32 %v1681, %v1800
          %v1809 = vadd.f32 %v1682, %v1802
          %v1810 = vadd.f32 %v1683, %v1804
          %v1811 = vstv %s619
          %v1812 = vmul.f32 %v1811, %v1456
          %v1813 = vmul.f32 %v1811, %v1457
          %v1814 = vmul.f32 %v1811, %v1458
          %1818 = vrot.lane.b32.xlu0 %v1812, 125
          %v1819 = vpop.permute.xlu0 %1818
          %1820 = vrot.lane.b32.xlu0 %v1813, 125
          %v1821 = vpop.permute.xlu0 %1820
          %1822 = vrot.lane.b32.xlu0 %v1814, 125
          %v1823 = vpop.permute.xlu0 %1822
          %v1827 = vadd.f32 %v1700, %v1819
          %v1828 = vadd.f32 %v1701, %v1821
          %v1829 = vadd.f32 %v1702, %v1823
          %v1830 = vstv %s626
          %v1831 = vmul.f32 %v1830, %v1456
          %v1832 = vmul.f32 %v1830, %v1457
          %v1833 = vmul.f32 %v1830, %v1458
          %1837 = vrot.lane.b32.xlu0 %v1831, 125
          %v1838 = vpop.permute.xlu0 %1837
          %1839 = vrot.lane.b32.xlu0 %v1832, 125
          %v1840 = vpop.permute.xlu0 %1839
          %1841 = vrot.lane.b32.xlu0 %v1833, 125
          %v1842 = vpop.permute.xlu0 %1841
          %v1846 = vadd.f32 %v1719, %v1838
          %v1847 = vadd.f32 %v1720, %v1840
          %v1848 = vadd.f32 %v1721, %v1842
          %v1849 = vstv %s633
          %v1850 = vmul.f32 %v1849, %v1456
          %v1851 = vmul.f32 %v1849, %v1457
          %v1852 = vmul.f32 %v1849, %v1458
          %1856 = vrot.lane.b32.xlu0 %v1850, 125
          %v1857 = vpop.permute.xlu0 %1856
          %1858 = vrot.lane.b32.xlu0 %v1851, 125
          %v1859 = vpop.permute.xlu0 %1858
          %1860 = vrot.lane.b32.xlu0 %v1852, 125
          %v1861 = vpop.permute.xlu0 %1860
          %v1865 = vadd.f32 %v1738, %v1857
          %v1866 = vadd.f32 %v1739, %v1859
          %v1867 = vadd.f32 %v1740, %v1861
          %v1868 = vstv %s640
          %v1869 = vmul.f32 %v1868, %v1456
          %v1870 = vmul.f32 %v1868, %v1457
          %v1871 = vmul.f32 %v1868, %v1458
          %1875 = vrot.lane.b32.xlu0 %v1869, 125
          %v1876 = vpop.permute.xlu0 %1875
          %1877 = vrot.lane.b32.xlu0 %v1870, 125
          %v1878 = vpop.permute.xlu0 %1877
          %1879 = vrot.lane.b32.xlu0 %v1871, 125
          %v1880 = vpop.permute.xlu0 %1879
          %v1884 = vadd.f32 %v1757, %v1876
          %v1885 = vadd.f32 %v1758, %v1878
          %v1886 = vadd.f32 %v1759, %v1880
          %v1887 = vstv %s599
          %v1888 = vmul.f32 %v1887, %v1456
          %v1889 = vmul.f32 %v1887, %v1457
          %1892 = vrot.lane.b32.xlu0 %v1888, 124
          %v1893 = vpop.permute.xlu0 %1892
          %1894 = vrot.lane.b32.xlu0 %v1889, 124
          %v1895 = vpop.permute.xlu0 %1894
          %v1898 = vadd.f32 %v1771, %v1893
          %v1899 = vadd.f32 %v1772, %v1895
          %v1900 = vstv %s606
          %v1901 = vmul.f32 %v1900, %v1456
          %v1902 = vmul.f32 %v1900, %v1457
          %v1903 = vmul.f32 %v1900, %v1458
          %1907 = vrot.lane.b32.xlu0 %v1901, 124
          %v1908 = vpop.permute.xlu0 %1907
          %1909 = vrot.lane.b32.xlu0 %v1902, 124
          %v1910 = vpop.permute.xlu0 %1909
          %1911 = vrot.lane.b32.xlu0 %v1903, 124
          %v1912 = vpop.permute.xlu0 %1911
          %v1916 = vadd.f32 %v1789, %v1908
          %v1917 = vadd.f32 %v1790, %v1910
          %v1918 = vadd.f32 %v1791, %v1912
          %v1919 = vstv %s613
          %v1920 = vmul.f32 %v1919, %v1456
          %v1921 = vmul.f32 %v1919, %v1457
          %v1922 = vmul.f32 %v1919, %v1458
          %1926 = vrot.lane.b32.xlu0 %v1920, 124
          %v1927 = vpop.permute.xlu0 %1926
          %1928 = vrot.lane.b32.xlu0 %v1921, 124
          %v1929 = vpop.permute.xlu0 %1928
          %1930 = vrot.lane.b32.xlu0 %v1922, 124
          %v1931 = vpop.permute.xlu0 %1930
          %v1935 = vadd.f32 %v1808, %v1927
          %v1936 = vadd.f32 %v1809, %v1929
          %v1937 = vadd.f32 %v1810, %v1931
          %v1938 = vstv %s620
          %v1939 = vmul.f32 %v1938, %v1456
          %v1940 = vmul.f32 %v1938, %v1457
          %v1941 = vmul.f32 %v1938, %v1458
          %1945 = vrot.lane.b32.xlu0 %v1939, 124
          %v1946 = vpop.permute.xlu0 %1945
          %1947 = vrot.lane.b32.xlu0 %v1940, 124
          %v1948 = vpop.permute.xlu0 %1947
          %1949 = vrot.lane.b32.xlu0 %v1941, 124
          %v1950 = vpop.permute.xlu0 %1949
          %v1954 = vadd.f32 %v1827, %v1946
          %v1955 = vadd.f32 %v1828, %v1948
          %v1956 = vadd.f32 %v1829, %v1950
          %v1957 = vstv %s627
          %v1958 = vmul.f32 %v1957, %v1456
          %v1959 = vmul.f32 %v1957, %v1457
          %v1960 = vmul.f32 %v1957, %v1458
          %1964 = vrot.lane.b32.xlu0 %v1958, 124
          %v1965 = vpop.permute.xlu0 %1964
          %1966 = vrot.lane.b32.xlu0 %v1959, 124
          %v1967 = vpop.permute.xlu0 %1966
          %1968 = vrot.lane.b32.xlu0 %v1960, 124
          %v1969 = vpop.permute.xlu0 %1968
          %v1973 = vadd.f32 %v1846, %v1965
          %v1974 = vadd.f32 %v1847, %v1967
          %v1975 = vadd.f32 %v1848, %v1969
          %v1976 = vstv %s634
          %v1977 = vmul.f32 %v1976, %v1456
          %v1978 = vmul.f32 %v1976, %v1457
          %v1979 = vmul.f32 %v1976, %v1458
          %1983 = vrot.lane.b32.xlu0 %v1977, 124
          %v1984 = vpop.permute.xlu0 %1983
          %1985 = vrot.lane.b32.xlu0 %v1978, 124
          %v1986 = vpop.permute.xlu0 %1985
          %1987 = vrot.lane.b32.xlu0 %v1979, 124
          %v1988 = vpop.permute.xlu0 %1987
          %v1992 = vadd.f32 %v1865, %v1984
          %v1993 = vadd.f32 %v1866, %v1986
          %v1994 = vadd.f32 %v1867, %v1988
          %v1995 = vstv %s641
          %v1996 = vmul.f32 %v1995, %v1456
          %v1997 = vmul.f32 %v1995, %v1457
          %v1998 = vmul.f32 %v1995, %v1458
          %2002 = vrot.lane.b32.xlu0 %v1996, 124
          %v2003 = vpop.permute.xlu0 %2002
          %2004 = vrot.lane.b32.xlu0 %v1997, 124
          %v2005 = vpop.permute.xlu0 %2004
          %2006 = vrot.lane.b32.xlu0 %v1998, 124
          %v2007 = vpop.permute.xlu0 %2006
          %v2011 = vadd.f32 %v1884, %v2003
          %v2012 = vadd.f32 %v1885, %v2005
          %v2013 = vadd.f32 %v1886, %v2007
          %v2014 = vstv %s600
          %v2015 = vmul.f32 %v2014, %v1456
          %v2016 = vmul.f32 %v2014, %v1457
          %2019 = vrot.lane.b32.xlu0 %v2015, 123
          %v2020 = vpop.permute.xlu0 %2019
          %2021 = vrot.lane.b32.xlu0 %v2016, 123
          %v2022 = vpop.permute.xlu0 %2021
          %v2025 = vadd.f32 %v1898, %v2020
          %v2026 = vadd.f32 %v1899, %v2022
          %v2027 = vstv %s607
          %v2028 = vmul.f32 %v2027, %v1456
          %v2029 = vmul.f32 %v2027, %v1457
          %v2030 = vmul.f32 %v2027, %v1458
          %2034 = vrot.lane.b32.xlu0 %v2028, 123
          %v2035 = vpop.permute.xlu0 %2034
          %2036 = vrot.lane.b32.xlu0 %v2029, 123
          %v2037 = vpop.permute.xlu0 %2036
          %2038 = vrot.lane.b32.xlu0 %v2030, 123
          %v2039 = vpop.permute.xlu0 %2038
          %v2043 = vadd.f32 %v1916, %v2035
          %v2044 = vadd.f32 %v1917, %v2037
          %v2045 = vadd.f32 %v1918, %v2039
          %v2046 = vstv %s614
          %v2047 = vmul.f32 %v2046, %v1456
          %v2048 = vmul.f32 %v2046, %v1457
          %v2049 = vmul.f32 %v2046, %v1458
          %2053 = vrot.lane.b32.xlu0 %v2047, 123
          %v2054 = vpop.permute.xlu0 %2053
          %2055 = vrot.lane.b32.xlu0 %v2048, 123
          %v2056 = vpop.permute.xlu0 %2055
          %2057 = vrot.lane.b32.xlu0 %v2049, 123
          %v2058 = vpop.permute.xlu0 %2057
          %v2062 = vadd.f32 %v1935, %v2054
          %v2063 = vadd.f32 %v1936, %v2056
          %v2064 = vadd.f32 %v1937, %v2058
          %v2065 = vstv %s621
          %v2066 = vmul.f32 %v2065, %v1456
          %v2067 = vmul.f32 %v2065, %v1457
          %v2068 = vmul.f32 %v2065, %v1458
          %2072 = vrot.lane.b32.xlu0 %v2066, 123
          %v2073 = vpop.permute.xlu0 %2072
          %2074 = vrot.lane.b32.xlu0 %v2067, 123
          %v2075 = vpop.permute.xlu0 %2074
          %2076 = vrot.lane.b32.xlu0 %v2068, 123
          %v2077 = vpop.permute.xlu0 %2076
          %v2081 = vadd.f32 %v1954, %v2073
          %v2082 = vadd.f32 %v1955, %v2075
          %v2083 = vadd.f32 %v1956, %v2077
          %v2084 = vstv %s628
          %v2085 = vmul.f32 %v2084, %v1456
          %v2086 = vmul.f32 %v2084, %v1457
          %v2087 = vmul.f32 %v2084, %v1458
          %2091 = vrot.lane.b32.xlu0 %v2085, 123
          %v2092 = vpop.permute.xlu0 %2091
          %2093 = vrot.lane.b32.xlu0 %v2086, 123
          %v2094 = vpop.permute.xlu0 %2093
          %2095 = vrot.lane.b32.xlu0 %v2087, 123
          %v2096 = vpop.permute.xlu0 %2095
          %v2100 = vadd.f32 %v1973, %v2092
          %v2101 = vadd.f32 %v1974, %v2094
          %v2102 = vadd.f32 %v1975, %v2096
          %v2103 = vstv %s635
          %v2104 = vmul.f32 %v2103, %v1456
          %v2105 = vmul.f32 %v2103, %v1457
          %v2106 = vmul.f32 %v2103, %v1458
          %2110 = vrot.lane.b32.xlu0 %v2104, 123
          %v2111 = vpop.permute.xlu0 %2110
          %2112 = vrot.lane.b32.xlu0 %v2105, 123
          %v2113 = vpop.permute.xlu0 %2112
          %2114 = vrot.lane.b32.xlu0 %v2106, 123
          %v2115 = vpop.permute.xlu0 %2114
          %v2119 = vadd.f32 %v1992, %v2111
          %v2120 = vadd.f32 %v1993, %v2113
          %v2121 = vadd.f32 %v1994, %v2115
          %v2122 = vstv %s642
          %v2123 = vmul.f32 %v2122, %v1456
          %v2124 = vmul.f32 %v2122, %v1457
          %v2125 = vmul.f32 %v2122, %v1458
          %2129 = vrot.lane.b32.xlu0 %v2123, 123
          %v2130 = vpop.permute.xlu0 %2129
          %2131 = vrot.lane.b32.xlu0 %v2124, 123
          %v2132 = vpop.permute.xlu0 %2131
          %2133 = vrot.lane.b32.xlu0 %v2125, 123
          %v2134 = vpop.permute.xlu0 %2133
          %v2138 = vadd.f32 %v2011, %v2130
          %v2139 = vadd.f32 %v2012, %v2132
          %v2140 = vadd.f32 %v2013, %v2134
          %v2141 = vstv %s601
          %v2142 = vmul.f32 %v2141, %v1456
          %v2143 = vmul.f32 %v2141, %v1457
          %2146 = vrot.lane.b32.xlu0 %v2142, 122
          %v2147 = vpop.permute.xlu0 %2146
          %2148 = vrot.lane.b32.xlu0 %v2143, 122
          %v2149 = vpop.permute.xlu0 %2148
          %v2152 = vadd.f32 %v2025, %v2147
          %v2153 = vadd.f32 %v2026, %v2149
          %v2154 = vstv %s608
          %v2155 = vmul.f32 %v2154, %v1456
          %v2156 = vmul.f32 %v2154, %v1457
          %v2157 = vmul.f32 %v2154, %v1458
          %2161 = vrot.lane.b32.xlu0 %v2155, 122
          %v2162 = vpop.permute.xlu0 %2161
          %2163 = vrot.lane.b32.xlu0 %v2156, 122
          %v2164 = vpop.permute.xlu0 %2163
          %2165 = vrot.lane.b32.xlu0 %v2157, 122
          %v2166 = vpop.permute.xlu0 %2165
          %v2170 = vadd.f32 %v2043, %v2162
          %v2171 = vadd.f32 %v2044, %v2164
          %v2172 = vadd.f32 %v2045, %v2166
          %v2173 = vstv %s615
          %v2174 = vmul.f32 %v2173, %v1456
          %v2175 = vmul.f32 %v2173, %v1457
          %v2176 = vmul.f32 %v2173, %v1458
          %2180 = vrot.lane.b32.xlu0 %v2174, 122
          %v2181 = vpop.permute.xlu0 %2180
          %2182 = vrot.lane.b32.xlu0 %v2175, 122
          %v2183 = vpop.permute.xlu0 %2182
          %2184 = vrot.lane.b32.xlu0 %v2176, 122
          %v2185 = vpop.permute.xlu0 %2184
          %v2189 = vadd.f32 %v2062, %v2181
          %v2190 = vadd.f32 %v2063, %v2183
          %v2191 = vadd.f32 %v2064, %v2185
          %v2192 = vstv %s622
          %v2193 = vmul.f32 %v2192, %v1456
          %v2194 = vmul.f32 %v2192, %v1457
          %v2195 = vmul.f32 %v2192, %v1458
          %2199 = vrot.lane.b32.xlu0 %v2193, 122
          %v2200 = vpop.permute.xlu0 %2199
          %2201 = vrot.lane.b32.xlu0 %v2194, 122
          %v2202 = vpop.permute.xlu0 %2201
          %2203 = vrot.lane.b32.xlu0 %v2195, 122
          %v2204 = vpop.permute.xlu0 %2203
          %v2208 = vadd.f32 %v2081, %v2200
          %v2209 = vadd.f32 %v2082, %v2202
          %v2210 = vadd.f32 %v2083, %v2204
          %v2211 = vstv %s629
          %v2212 = vmul.f32 %v2211, %v1456
          %v2213 = vmul.f32 %v2211, %v1457
          %v2214 = vmul.f32 %v2211, %v1458
          %2218 = vrot.lane.b32.xlu0 %v2212, 122
          %v2219 = vpop.permute.xlu0 %2218
          %2220 = vrot.lane.b32.xlu0 %v2213, 122
          %v2221 = vpop.permute.xlu0 %2220
          %2222 = vrot.lane.b32.xlu0 %v2214, 122
          %v2223 = vpop.permute.xlu0 %2222
          %v2227 = vadd.f32 %v2100, %v2219
          %v2228 = vadd.f32 %v2101, %v2221
          %v2229 = vadd.f32 %v2102, %v2223
          %v2230 = vstv %s636
          %v2231 = vmul.f32 %v2230, %v1456
          %v2232 = vmul.f32 %v2230, %v1457
          %v2233 = vmul.f32 %v2230, %v1458
          %2237 = vrot.lane.b32.xlu0 %v2231, 122
          %v2238 = vpop.permute.xlu0 %2237
          %2239 = vrot.lane.b32.xlu0 %v2232, 122
          %v2240 = vpop.permute.xlu0 %2239
          %2241 = vrot.lane.b32.xlu0 %v2233, 122
          %v2242 = vpop.permute.xlu0 %2241
          %v2246 = vadd.f32 %v2119, %v2238
          %v2247 = vadd.f32 %v2120, %v2240
          %v2248 = vadd.f32 %v2121, %v2242
          %v2249 = vstv %s643
          %v2250 = vmul.f32 %v2249, %v1456
          %v2251 = vmul.f32 %v2249, %v1457
          %v2252 = vmul.f32 %v2249, %v1458
          %2256 = vrot.lane.b32.xlu0 %v2250, 122
          %v2257 = vpop.permute.xlu0 %2256
          %2258 = vrot.lane.b32.xlu0 %v2251, 122
          %v2259 = vpop.permute.xlu0 %2258
          %2260 = vrot.lane.b32.xlu0 %v2252, 122
          %v2261 = vpop.permute.xlu0 %2260
          %v2265 = vadd.f32 %v2138, %v2257
          %v2266 = vadd.f32 %v2139, %v2259
          %v2267 = vadd.f32 %v2140, %v2261
          %vm2271 = vcmask 1046528
          %v2272 = vrot.slane %v2170, 1
          %v2273 = vrot.slane %v2171, 1
          %v2274 = vsel %vm2271, %v2272, %v2273
          %v2275 = vrot.slane %v2172, 1
          %v2276 = vsel %vm2271, %v2273, %v2275
          %v2279 = vadd.f32 %v2152, %v2274
          %v2280 = vadd.f32 %v2153, %v2276
          %v2284 = vrot.slane %v2208, 1
          %v2285 = vrot.slane %v2209, 1
          %v2286 = vsel %vm2271, %v2284, %v2285
          %v2287 = vrot.slane %v2210, 1
          %v2288 = vsel %vm2271, %v2285, %v2287
          %v2292 = vadd.f32 %v2189, %v2286
          %v2293 = vadd.f32 %v2190, %v2288
          %v2294 = vadd.f32 %v2191, %v2287
          %v2298 = vrot.slane %v2246, 1
          %v2299 = vrot.slane %v2247, 1
          %v2300 = vsel %vm2271, %v2298, %v2299
          %v2301 = vrot.slane %v2248, 1
          %v2302 = vsel %vm2271, %v2299, %v2301
          %v2306 = vadd.f32 %v2227, %v2300
          %v2307 = vadd.f32 %v2228, %v2302
          %v2308 = vadd.f32 %v2229, %v2301
          %vm2312 = vcmask 1045504
          %v2313 = vrot.slane %v2292, 2
          %v2314 = vrot.slane %v2293, 2
          %v2315 = vsel %vm2312, %v2313, %v2314
          %v2316 = vrot.slane %v2294, 2
          %v2317 = vsel %vm2312, %v2314, %v2316
          %v2320 = vadd.f32 %v2279, %v2315
          %v2321 = vadd.f32 %v2280, %v2317
          %v2325 = vrot.slane %v2265, 2
          %v2326 = vrot.slane %v2266, 2
          %v2327 = vsel %vm2312, %v2325, %v2326
          %v2328 = vrot.slane %v2267, 2
          %v2329 = vsel %vm2312, %v2326, %v2328
          %v2333 = vadd.f32 %v2306, %v2327
          %v2334 = vadd.f32 %v2307, %v2329
          %v2335 = vadd.f32 %v2308, %v2328
          %v2339 = vrot.slane %v2333, 4
          %v2340 = vrot.slane %v2334, 4
          %v2341 = vsel %vm204, %v2339, %v2340
          %v2342 = vrot.slane %v2335, 4
          %v2343 = vsel %vm204, %v2340, %v2342
          %v2346 = vadd.f32 %v2320, %v2341
          %v2347 = vadd.f32 %v2321, %v2343
          %v2348 = vxor.u32 %v2346, 2147483648
          %v2349 = vxor.u32 %v2347, 2147483648
          %v2350 = vmul.f32 %v2348, 1.442695
          %v2351 = vpow.pop %v2350
          %v2352 = vmul.f32 %v2349, 1.442695
          %v2353 = vpow.pop %v2352
          %v2354 = vadd.f32 %v2351, 1.0
          %v2355 = vadd.f32 %v2353, 1.0
          %v2356 = vrcp.pop %v2354
          %v2357 = vmul.f32 1.0, %v2356
          %v2358 = vrcp.pop %v2355
          %v2359 = vmul.f32 1.0, %v2358
          %vm2360 = vcmp.lt.s32.totalorder %v271, 16
          %vm2361 = vmand %vm272, %vm2360
          %2362 = vst.msk [vmem:[%s187] sm:$0x1] %vm2361, %v2357
          %v2365 = vunpack.c.l.s4 1966171168
          %v2366 = vunpack.c.0.s8 %v2365
          %v2367 = vlaneseq
          %v2368 = vshrl.u32 %v2367, 7
          %v2369 = vsub.s32 %v2366, %v2368
          %v2370 = vrot.slane %v2357, %v2369
          %v2371 = vcombine.high %v2370, %v2370
          %v2373 = vunpack.c.l.s4 1966171168
          %v2374 = vunpack.c.0.s8 %v2373
          %v2375 = vlaneseq
          %v2376 = vshrl.u32 %v2375, 7
          %v2377 = vsub.s32 %v2374, %v2376
          %v2378 = vrot.slane %v2370, %v2377
          %v2380 = vunpack.c.l.s4 1966171168
          %v2381 = vunpack.c.0.s8 %v2380
          %v2382 = vlaneseq
          %v2383 = vshrl.u32 %v2382, 7
          %v2384 = vsub.s32 %v2381, %v2383
          %v2385 = vrot.slane %v2371, %v2384
          %2386 = vrot.lane.b32.xlu0 %v2385, 16
          %v2387 = vpop.permute.xlu0 %2386
          %vm2389 = vcmp.ge.s32.totalorder %v271, 16
          %vm2390 = vcmp.lt.s32.totalorder %v271, 32
          %vm2391 = vmand %vm2389, %vm2390
          %2392 = vst.msk [vmem:[%s187] sm:$0x1] %vm2391, %v2387
          %v2393 = vcombine.high %v2378, %v2378
          %2394 = vrot.lane.b32.xlu0 %v2393, 32
          %v2395 = vpop.permute.xlu0 %2394
          %vm2397 = vcmp.ge.s32.totalorder %v271, 32
          %vm2398 = vcmp.lt.s32.totalorder %v271, 48
          %vm2399 = vmand %vm2397, %vm2398
          %2400 = vst.msk [vmem:[%s187] sm:$0x1] %vm2399, %v2395
          %v2401 = vcombine.high %v2385, %v2385
          %2402 = vrot.lane.b32.xlu0 %v2401, 48
          %v2403 = vpop.permute.xlu0 %2402
          %vm2405 = vcmp.ge.s32.totalorder %v271, 48
          %vm2406 = vcmp.lt.s32.totalorder %v271, 64
          %vm2407 = vmand %vm2405, %vm2406
          %2408 = vst.msk [vmem:[%s187] sm:$0x1] %vm2407, %v2403
          %v2409 = vcombine.high %v2357, %v2357
          %v2411 = vunpack.c.l.s4 1966171168
          %v2412 = vunpack.c.0.s8 %v2411
          %v2413 = vlaneseq
          %v2414 = vshrl.u32 %v2413, 7
          %v2415 = vsub.s32 %v2412, %v2414
          %v2416 = vrot.slane %v2409, %v2415
          %v2418 = vunpack.c.l.s4 1966171168
          %v2419 = vunpack.c.0.s8 %v2418
          %v2420 = vlaneseq
          %v2421 = vshrl.u32 %v2420, 7
          %v2422 = vsub.s32 %v2419, %v2421
          %v2423 = vrot.slane %v2416, %v2422
          %2424 = vrot.lane.b32.xlu0 %v2423, 64
          %v2425 = vpop.permute.xlu0 %2424
          %vm2427 = vcmp.ge.s32.totalorder %v271, 64
          %vm2428 = vcmp.lt.s32.totalorder %v271, 80
          %vm2429 = vmand %vm2427, %vm2428
          %2430 = vst.msk [vmem:[%s187] sm:$0x1] %vm2429, %v2425
          %v2431 = vcombine.high %v2416, %v2416
          %v2433 = vunpack.c.l.s4 1966171168
          %v2434 = vunpack.c.0.s8 %v2433
          %v2435 = vlaneseq
          %v2436 = vshrl.u32 %v2435, 7
          %v2437 = vsub.s32 %v2434, %v2436
          %v2438 = vrot.slane %v2431, %v2437
          %2439 = vrot.lane.b32.xlu0 %v2438, 80
          %v2440 = vpop.permute.xlu0 %2439
          %vm2442 = vcmp.ge.s32.totalorder %v271, 80
          %vm2443 = vcmp.lt.s32.totalorder %v271, 96
          %vm2444 = vmand %vm2442, %vm2443
          %2445 = vst.msk [vmem:[%s187] sm:$0x1] %vm2444, %v2440
          %v2446 = vcombine.high %v2423, %v2423
          %2447 = vrot.lane.b32.xlu0 %v2446, 96
          %v2448 = vpop.permute.xlu0 %2447
          %vm2450 = vcmp.ge.s32.totalorder %v271, 96
          %vm2451 = vcmp.lt.s32.totalorder %v271, 112
          %vm2452 = vmand %vm2450, %vm2451
          %2453 = vst.msk [vmem:[%s187] sm:$0x1] %vm2452, %v2448
          %v2454 = vcombine.high %v2438, %v2438
          %2455 = vrot.lane.b32.xlu0 %v2454, 112
          %v2456 = vpop.permute.xlu0 %2455
          %vm2458 = vcmp.ge.s32.totalorder %v271, 112
          %vm2459 = vcmp.lt.s32.totalorder %v271, 128
          %vm2460 = vmand %vm2458, %vm2459
          %2461 = vst.msk [vmem:[%s187] sm:$0x1] %vm2460, %v2456
          %2462 = vst.msk [vmem:[%s187 + $0x1] sm:$0x1] %vm2361, %v2359
          %v2465 = vunpack.c.l.s4 1966171168
          %v2466 = vunpack.c.0.s8 %v2465
          %v2467 = vlaneseq
          %v2468 = vshrl.u32 %v2467, 7
          %v2469 = vsub.s32 %v2466, %v2468
          %v2470 = vrot.slane %v2359, %v2469
          %v2471 = vcombine.high %v2470, %v2470
          %v2473 = vunpack.c.l.s4 1966171168
          %v2474 = vunpack.c.0.s8 %v2473
          %v2475 = vlaneseq
          %v2476 = vshrl.u32 %v2475, 7
          %v2477 = vsub.s32 %v2474, %v2476
          %v2478 = vrot.slane %v2470, %v2477
          %v2480 = vunpack.c.l.s4 1966171168
          %v2481 = vunpack.c.0.s8 %v2480
          %v2482 = vlaneseq
          %v2483 = vshrl.u32 %v2482, 7
          %v2484 = vsub.s32 %v2481, %v2483
          %v2485 = vrot.slane %v2471, %v2484
          %2486 = vrot.lane.b32.xlu0 %v2485, 16
          %v2487 = vpop.permute.xlu0 %2486
          %2489 = vst.msk [vmem:[%s187 + $0x1] sm:$0x1] %vm2391, %v2487
          %v2490 = vcombine.high %v2478, %v2478
          %2491 = vrot.lane.b32.xlu0 %v2490, 32
          %v2492 = vpop.permute.xlu0 %2491
          %2494 = vst.msk [vmem:[%s187 + $0x1] sm:$0x1] %vm2399, %v2492
          %v2495 = vcombine.high %v2485, %v2485
          %2496 = vrot.lane.b32.xlu0 %v2495, 48
          %v2497 = vpop.permute.xlu0 %2496
          %2499 = vst.msk [vmem:[%s187 + $0x1] sm:$0x1] %vm2407, %v2497
          %v2500 = vcombine.high %v2359, %v2359
          %v2502 = vunpack.c.l.s4 1966171168
          %v2503 = vunpack.c.0.s8 %v2502
          %v2504 = vlaneseq
          %v2505 = vshrl.u32 %v2504, 7
          %v2506 = vsub.s32 %v2503, %v2505
          %v2507 = vrot.slane %v2500, %v2506
          %v2509 = vunpack.c.l.s4 1966171168
          %v2510 = vunpack.c.0.s8 %v2509
          %v2511 = vlaneseq
          %v2512 = vshrl.u32 %v2511, 7
          %v2513 = vsub.s32 %v2510, %v2512
          %v2514 = vrot.slane %v2507, %v2513
          %2515 = vrot.lane.b32.xlu0 %v2514, 64
          %v2516 = vpop.permute.xlu0 %2515
          %2518 = vst.msk [vmem:[%s187 + $0x1] sm:$0x1] %vm2429, %v2516
          %v2519 = vcombine.high %v2507, %v2507
          %v2521 = vunpack.c.l.s4 1966171168
          %v2522 = vunpack.c.0.s8 %v2521
          %v2523 = vlaneseq
          %v2524 = vshrl.u32 %v2523, 7
          %v2525 = vsub.s32 %v2522, %v2524
          %v2526 = vrot.slane %v2519, %v2525
          %2527 = vrot.lane.b32.xlu0 %v2526, 80
          %v2528 = vpop.permute.xlu0 %2527
          %2530 = vst.msk [vmem:[%s187 + $0x1] sm:$0x1] %vm2444, %v2528
          %v2531 = vcombine.high %v2514, %v2514
          %2532 = vrot.lane.b32.xlu0 %v2531, 96
          %v2533 = vpop.permute.xlu0 %2532
          %2535 = vst.msk [vmem:[%s187 + $0x1] sm:$0x1] %vm2452, %v2533
          %v2536 = vcombine.high %v2526, %v2526
          %2537 = vrot.lane.b32.xlu0 %v2536, 112
          %v2538 = vpop.permute.xlu0 %2537
          %2540 = vst.msk [vmem:[%s187 + $0x1] sm:$0x1] %vm2460, %v2538
        $region44: #{tpu_custom_call.1} parent=27 // pred_fallthru
          _
        %s2541 = sand.u32 %s89, 1
        %s2542 = scalar_lea.sflag [#allocation7], %s2541
        %s2543 = sand.u32 %s89, 1
        %s2544 = smul.addr %s2543, 2
        %s2545 = scalar_lea.vmem [#allocation10], %s2544
        // Predicated region
        $region45: #{tpu_custom_call.1} parent=27 // pred_check
          %p2546 = pneg %p99
        $region46: #{tpu_custom_call.1} parent=27 // pred_check_branch
          %2548 = sbr.rel (%p2546) target = $region48
        $region47: #{tpu_custom_call.1} parent=27 // pred_region
          %s2550 = ssub.s32 32, 32
          %2551 = vsyncadd %s2542, %s2550
          %s2552 = smul.addr %s24, 2
          %s2553 = smul.addr %s2552, 16
          %s2554 = scalar_lea.hbm %s2, %s2553
          %s2556 = sshll.u32 %s2545, 4
          %s2557 = int_to_ptr.vmem [resolvable:$true] %s2556
          %2559 = dma.vmem_to_hbm [thread:$0]  %s2557, 32, %s2554, %s2542
        $region48: #{tpu_custom_call.1} parent=27 // pred_fallthru
          _
      $region28: #{tpu_custom_call.1} parent=5 // pred_fallthru
        _
      %p2560 = scmp.le.s32.totalorder 2, %s15
      // Predicated region
      $region49: #{tpu_custom_call.1} parent=5 // pred_check
        %p2561 = pneg %p2560
      $region50: #{tpu_custom_call.1} parent=5 // pred_check_branch
        %2563 = sbr.rel (%p2561) target = $region52
      $region51: #{tpu_custom_call.1} parent=5 // pred_region
        %s2564 = ssub.s32 %s15, 2
        // Predicated region
        $region53: #{tpu_custom_call.1} parent=51 // pred_check
          %p2565 = pneg %p105
        $region54: #{tpu_custom_call.1} parent=51 // pred_check_branch
          %2567 = sbr.rel (%p2565) target = $region56
        $region55: #{tpu_custom_call.1} parent=51 // pred_region
          %s2568 = sand.u32 %s90, 1
          %s2569 = scalar_lea.sflag [#allocation7], %s2568
          %s2570 = sand.u32 %s90, 1
          %s2571 = smul.addr %s2570, 2
          %s2572 = scalar_lea.vmem [#allocation10], %s2571
          %2573 = dma.done %s2569, 32
        $region56: #{tpu_custom_call.1} parent=51 // pred_fallthru
          _
      $region52: #{tpu_custom_call.1} parent=5 // pred_fallthru
        _
    $region6: #{tpu_custom_call.1} parent=1 // loop_footer
      %s19 = sadd.s32 1, %s15
    $region7: #{tpu_custom_call.1} parent=1 // loop_footer_branch
      %14 = sbr.rel target = $region3
    $region8: #{tpu_custom_call.1} parent=1 // loop_exit
      _
    %2574 = vsyncpa [#allocation6], 1
    %s2575 = scalar_lea.sflag [#allocation6], 1
    %2576 = vsyncpa %s2575, 1
    %2577 = vsyncpa [#allocation7], 1
    %s2578 = scalar_lea.sflag [#allocation7], 1
    %2579 = vsyncpa %s2578, 1
    %2580 = vsyncpa [#allocation8], 1
    %s2581 = scalar_lea.sflag [#allocation8], 1
    %2582 = vsyncpa %s2581, 1

</llo_original>
